<compile_context>
chip_gen: v5e
topology: v5e:2x2
jax: 0.10.0
libtpu: 0.0.40
codegen_flags: <defaults>
</compile_context>

<pallas_src>
import functools

import jax
import jax.numpy as jnp
from jax.experimental import pallas as pl
from jax.experimental.pallas import tpu as pltpu

BF16 = jnp.bfloat16
VMEM_LIMIT = 48 * 1024 * 1024   # explicit scoped-VMEM cap; safe on v5e/v6e/v7x


def _ceil_to(x, m):
    return (x + m - 1) // m * m


def _row_tile(n, cap=64):
    """Largest multiple-of-8 divisor of n that is <= cap, else n (full block)."""
    best = n
    for t in range(8, min(n, cap) + 1, 8):
        if n % t == 0:
            best = t
    return best


# ----------------------------------------------------------------------------
# Pallas kernels
# ----------------------------------------------------------------------------
def linear_kernel(x_ref, w_ref, b_ref, o_ref, *, relu):
    """(TM, K) @ (K, N) + (1, N), optional ReLU; bf16 operands, f32 accumulate."""
    y = jnp.dot(x_ref[...], w_ref[...], preferred_element_type=jnp.float32)
    y = y + b_ref[...]
    if relu:
        y = jnp.maximum(y, 0.0)
    o_ref[...] = y.astype(o_ref.dtype)


def linear(x, w, b, relu=False, out_dtype=BF16, tm=512):
    """Row-tiled matmul: grid over the M axis, weight/bias kept as full blocks."""
    m, k = x.shape
    n = w.shape[1]
    tm = min(tm, _ceil_to(m, 8))
    mp = _ceil_to(m, tm)
    if mp != m:
        x = jnp.pad(x, ((0, mp - m), (0, 0)))
    out = pl.pallas_call(
        functools.partial(linear_kernel, relu=relu),
        out_shape=jax.ShapeDtypeStruct((mp, n), out_dtype),
        grid=(mp // tm,),
        in_specs=[
            pl.BlockSpec((tm, k), lambda i: (i, 0)),
            pl.BlockSpec((k, n), lambda i: (0, 0)),
            pl.BlockSpec((1, n), lambda i: (0, 0)),
        ],
        out_specs=pl.BlockSpec((tm, n), lambda i: (i, 0)),
        compiler_params=pltpu.CompilerParams(
            dimension_semantics=("parallel",), vmem_limit_bytes=VMEM_LIMIT),
    )(x, w, b)
    return out[:m] if mp != m else out


def tapmax_kernel(t_ref, o_ref, *, n_taps):
    """Elementwise max over n_taps stacked pooling taps: (T, TR, L) -> (TR, L)."""
    acc = t_ref[0]
    for i in range(1, n_taps):
        acc = jnp.maximum(acc, t_ref[i])
    o_ref[...] = acc


def tap_max(taps):
    t, r, l = taps.shape
    tr = _row_tile(r, cap=64)
    return pl.pallas_call(
        functools.partial(tapmax_kernel, n_taps=t),
        out_shape=jax.ShapeDtypeStruct((r, l), taps.dtype),
        grid=(r // tr,),
        in_specs=[pl.BlockSpec((t, tr, l), lambda i: (0, i, 0))],
        out_specs=pl.BlockSpec((tr, l), lambda i: (i, 0)),
        compiler_params=pltpu.CompilerParams(
            dimension_semantics=("parallel",), vmem_limit_bytes=VMEM_LIMIT),
    )(taps)


def tail_kernel(ah_ref, g3_ref, g1_ref, x_ref, o_ref):
    """Row-direction bilinear interp of the conv4-projected small map, add the
    conv4-projected c1_, sigmoid, gate the input.  Blocks are (TH, W*C) with a
    lane-dense last dimension."""
    up = jnp.dot(ah_ref[...], g3_ref[0], preferred_element_type=jnp.float32)
    z = up + g1_ref[0].astype(jnp.float32)
    gate = pl.reciprocal(1.0 + jnp.exp(-z), approx=True)     # sigmoid on EUP
    o_ref[0] = x_ref[0] * gate


def esa_tail(ah, g3, g1, xv, th):
    n, hh, wc = xv.shape
    h3 = ah.shape[1]
    return pl.pallas_call(
        tail_kernel,
        out_shape=jax.ShapeDtypeStruct((n, hh, wc), jnp.float32),
        grid=(n, hh // th),
        in_specs=[
            pl.BlockSpec((th, h3), lambda b, t: (t, 0)),        # Ah row tile
            pl.BlockSpec((1, h3, wc), lambda b, t: (b, 0, 0)),  # g3 (small map)
            pl.BlockSpec((1, th, wc), lambda b, t: (b, t, 0)),  # g1
            pl.BlockSpec((1, th, wc), lambda b, t: (b, t, 0)),  # x
        ],
        out_specs=pl.BlockSpec((1, th, wc), lambda b, t: (b, t, 0)),
        compiler_params=pltpu.CompilerParams(
            dimension_semantics=("parallel", "parallel"),
            vmem_limit_bytes=VMEM_LIMIT),
    )(ah, g3, g1, xv)


# ----------------------------------------------------------------------------
# Plain-JAX glue: data rearrangement + deterministic parameter setup
# ----------------------------------------------------------------------------
def im2col(a, k, stride, pad):
    """a: (N, H, W, C) -> (N*Ho*Wo, k*k*C), tap-major then input-channel."""
    n, h, w, c = a.shape
    if pad:
        a = jnp.pad(a, ((0, 0), (pad, pad), (pad, pad), (0, 0)))
    hp, wp = h + 2 * pad, w + 2 * pad
    ho = (hp - k) // stride + 1
    wo = (wp - k) // stride + 1
    cols = []
    for kh in range(k):
        for kw in range(k):
            cols.append(a[:, kh:kh + stride * (ho - 1) + 1:stride,
                          kw:kw + stride * (wo - 1) + 1:stride, :])
    cols = jnp.stack(cols, axis=-2)                      # (N, Ho, Wo, k*k, C)
    return cols.reshape(n * ho * wo, k * k * c), ho, wo


def bilinear_matrix(out_size, in_size):
    """Interp matrix matching torch F.interpolate(bilinear, align_corners=False)."""
    scale = in_size / out_size
    i = jnp.arange(out_size, dtype=jnp.float32)
    src = jnp.maximum((i + 0.5) * scale - 0.5, 0.0)      # torch clamps negative to 0
    i0 = jnp.minimum(jnp.floor(src).astype(jnp.int32), in_size - 1)
    i1 = jnp.minimum(i0 + 1, in_size - 1)
    l1 = src - i0.astype(jnp.float32)
    l0 = 1.0 - l1
    return (l0[:, None] * jax.nn.one_hot(i0, in_size, dtype=jnp.float32)
            + l1[:, None] * jax.nn.one_hot(i1, in_size, dtype=jnp.float32))


def conv_w_to_mat(w):
    """torch conv weight (Cout, Cin, kh, kw) -> im2col matrix (kh*kw*Cin, Cout)."""
    return jnp.transpose(w, (2, 3, 1, 0)).reshape(-1, w.shape[0])


def init_params(key, n_feats):
    f = n_feats // 4
    ks = jax.random.split(key, 12)

    def w(k, cout, cin, ksz):
        fan_in = cin * ksz * ksz
        return jax.random.normal(k, (cout, cin, ksz, ksz), jnp.float32) / jnp.sqrt(fan_in)

    def b(k, cout):
        return jax.random.normal(k, (1, cout), jnp.float32) * 0.01

    def wm(k, cout, cin, ksz):
        return conv_w_to_mat(w(k, cout, cin, ksz)).astype(BF16)

    return {
        "w1": wm(ks[0], f, n_feats, 1), "b1": b(ks[1], f),
        "w2": wm(ks[2], f, f, 3), "b2": b(ks[3], f),
        "w31": wm(ks[4], f, f, 3), "b31": b(ks[5], f),
        "w32": wm(ks[6], f, f, 3), "b32": b(ks[7], f),
        "w33": wm(ks[8], f, f, 3), "b33": b(ks[9], f),
        "w4": wm(ks[10], n_feats, f, 1), "b4": b(ks[11], n_feats),
    }


# ----------------------------------------------------------------------------
# ESA forward
# ----------------------------------------------------------------------------
def esa_forward(x_nchw, p):
    n, c, h, w = x_nchw.shape
    f = p["w1"].shape[1]

    xn = jnp.transpose(x_nchw, (0, 2, 3, 1))                    # NHWC, f32
    x_bf = xn.astype(BF16)

    # conv1 (1x1): tiled matmul kernel.
    c1_ = linear(x_bf.reshape(n * h * w, c), p["w1"], p["b1"])  # (N*H*W, f)

    # conv2 (3x3, stride 2, pad 0): im2col glue + tiled matmul kernel.
    cols2, h2, w2 = im2col(c1_.reshape(n, h, w, f), 3, 2, 0)
    c2 = linear(cols2, p["w2"], p["b2"]).reshape(n, h2, w2, f)

    # max_pool2d(kernel=7, stride=3), separable: 7 row taps then 7 col taps.
    h3 = (h2 - 7) // 3 + 1
    w3 = (w2 - 7) // 3 + 1
    row_taps = jnp.stack(
        [c2[:, i:i + 3 * (h3 - 1) + 1:3].reshape(n * h3, w2 * f) for i in range(7)], 0)
    pooled_r = tap_max(row_taps).reshape(n, h3, w2, f)
    col_taps = jnp.stack(
        [pooled_r[:, :, j:j + 3 * (w3 - 1) + 1:3].reshape(n * h3, w3 * f) for j in range(7)], 0)
    c1p = tap_max(col_taps).reshape(n, h3, w3, f)

    # conv3_1 / conv3_2 (with ReLU) / conv3_3  (3x3, pad 1): im2col + tiled matmul.
    cols, _, _ = im2col(c1p, 3, 1, 1)
    c3 = linear(cols, p["w31"], p["b31"], relu=True).reshape(n, h3, w3, f)
    cols, _, _ = im2col(c3, 3, 1, 1)
    c3 = linear(cols, p["w32"], p["b32"], relu=True).reshape(n, h3, w3, f)
    cols, _, _ = im2col(c3, 3, 1, 1)
    c3 = linear(cols, p["w33"], p["b33"])                       # (N*h3*w3, f)

    # Separable bilinear upsample fused with conv4 (1x1 conv commutes with interp):
    #   conv4(interp(c3) + c1_) = row_interp(col_interp(c3) @ W4) + (c1_ @ W4 + b4)
    ah = bilinear_matrix(h, h3).astype(BF16)                    # (H, h3)
    aw = bilinear_matrix(w, w3)                                 # (W, w3)
    aw_e = jnp.einsum("wq,cd->qcwd", aw, jnp.eye(f, dtype=jnp.float32))
    aw_e = aw_e.reshape(w3 * f, w * f).astype(BF16)             # per-channel width interp

    zero_wf = jnp.zeros((1, w * f), jnp.float32)
    zero_c = jnp.zeros((1, c), jnp.float32)
    colb = linear(c3.reshape(n * h3, w3 * f), aw_e, zero_wf)    # (N*h3, W*f)  width interp
    g3 = linear(colb.reshape(n * h3 * w, f), p["w4"], zero_c)   # (N*h3*W, C)  conv4 (small)
    g1 = linear(c1_, p["w4"], p["b4"])                          # (N*H*W, C)   conv4 (big)

    # Tail: row interp + sigmoid gate, tiled over (batch, row-blocks); W*C lane-dense.
    th = _row_tile(h, cap=32)
    out = esa_tail(ah,
                   g3.reshape(n, h3, w * c),
                   g1.reshape(n, h, w * c),
                   xn.reshape(n, h, w * c),
                   th)
    return jnp.transpose(out.reshape(n, h, w, c), (0, 3, 1, 2))  # back to NCHW


# ----------------------------------------------------------------------------
if __name__ == "__main__":
    key = jax.random.PRNGKey(0)
    k_x, k_p = jax.random.split(key)

    N, C, H, W = 2, 16, 32, 32          # n_feats=16 -> f=4; H,W large enough for the 7/3 pool
    x = jax.random.normal(k_x, (N, C, H, W), jnp.float32)
    params = init_params(k_p, n_feats=C)

    out = jax.jit(esa_forward)(x, params)
    out = jax.block_until_ready(out)

    assert out.shape == (N, C, H, W), out.shape
    assert bool(jnp.all(jnp.isfinite(out)))
    print("KERNEL_OK")
</pallas_src>

<mosaic_0001>
module attributes {stable_mosaic.version = 11 : i64} {
  func.func @linear_kernel(%arg0: i32, %arg1: memref<512x16xbf16, #tpu.memory_space<vmem>>, %arg2: memref<16x4xbf16, #tpu.memory_space<vmem>>, %arg3: memref<1x4xf32, #tpu.memory_space<vmem>>, %arg4: memref<512x4xbf16, #tpu.memory_space<vmem>>) attributes {dimension_semantics = [#tpu.dimension_semantics<parallel>], iteration_bounds = array<i64: 4>, scalar_prefetch = 0 : i64, scratch_operands = 0 : i64, tpu.core_type = #tpu.core_type<tc>, window_params = [{transform_indices = @transform_0, window_bounds = array<i64: 512, 16>}, {pipeline_mode = #tpu.pipeline_mode<synchronous>, transform_indices = @transform_1, window_bounds = array<i64: 16, 4>}, {pipeline_mode = #tpu.pipeline_mode<synchronous>, transform_indices = @transform_2, window_bounds = array<i64: 1, 4>}, {transform_indices = @transform_3, window_bounds = array<i64: 512, 4>}]} {
    %c0 = arith.constant 0 : index
    %c0_0 = arith.constant 0 : index
    %0 = vector.load %arg1[%c0, %c0_0] : memref<512x16xbf16, #tpu.memory_space<vmem>>, vector<512x16xbf16>
    %c0_1 = arith.constant 0 : index
    %c0_2 = arith.constant 0 : index
    %1 = vector.load %arg2[%c0_1, %c0_2] : memref<16x4xbf16, #tpu.memory_space<vmem>>, vector<16x4xbf16>
    %cst = arith.constant dense<0.000000e+00> : vector<512x4xf32>
    %2 = tpu.matmul %0, %1, %cst {dimension_numbers = #tpu.dot_dimension_numbers<[1], [0], [0], [1], [0, 0, 1, 1], [], []>} : vector<512x16xbf16>, vector<16x4xbf16>, vector<512x4xf32> -> vector<512x4xf32>
    %c0_3 = arith.constant 0 : index
    %c0_4 = arith.constant 0 : index
    %3 = vector.load %arg3[%c0_3, %c0_4] : memref<1x4xf32, #tpu.memory_space<vmem>>, vector<1x4xf32>
    %4 = vector.broadcast %3 : vector<1x4xf32> to vector<512x4xf32>
    %5 = arith.addf %2, %4 : vector<512x4xf32>
    %6 = arith.truncf %5 : vector<512x4xf32> to vector<512x4xbf16>
    %c0_5 = arith.constant 0 : index
    %c0_6 = arith.constant 0 : index
    %7 = vector.load %arg4[%c0_5, %c0_6] : memref<512x4xbf16, #tpu.memory_space<vmem>>, vector<512x4xbf16>
    tpu.vector_store %arg4[%c0_5, %c0_6], %6 {strides = array<i32>} : memref<512x4xbf16, #tpu.memory_space<vmem>>, vector<512x4xbf16>,
    return
  }
  func.func @transform_0(%arg0: i32) -> (i32, i32) {
    %c0_i32 = arith.constant 0 : i32
    %c0_i32_0 = arith.constant 0 : i32
    return %arg0, %c0_i32 : i32, i32
  }
  func.func @transform_1(%arg0: i32) -> (i32, i32) {
    %c0_i32 = arith.constant 0 : i32
    %c0_i32_0 = arith.constant 0 : i32
    %c0_i32_1 = arith.constant 0 : i32
    return %c0_i32, %c0_i32_0 : i32, i32
  }
  func.func @transform_2(%arg0: i32) -> (i32, i32) {
    %c0_i32 = arith.constant 0 : i32
    %c0_i32_0 = arith.constant 0 : i32
    %c0_i32_1 = arith.constant 0 : i32
    return %c0_i32, %c0_i32_0 : i32, i32
  }
  func.func @transform_3(%arg0: i32) -> (i32, i32) {
    %c0_i32 = arith.constant 0 : i32
    %c0_i32_0 = arith.constant 0 : i32
    return %arg0, %c0_i32 : i32, i32
  }
}

module attributes {stable_mosaic.version = 11 : i64} {
  func.func @linear_kernel(%arg0: i32, %arg1: memref<456x36xbf16, #tpu.memory_space<vmem>>, %arg2: memref<36x4xbf16, #tpu.memory_space<vmem>>, %arg3: memref<1x4xf32, #tpu.memory_space<vmem>>, %arg4: memref<456x4xbf16, #tpu.memory_space<vmem>>) attributes {dimension_semantics = [#tpu.dimension_semantics<parallel>], iteration_bounds = array<i64: 1>, scalar_prefetch = 0 : i64, scratch_operands = 0 : i64, tpu.core_type = #tpu.core_type<tc>, window_params = [{transform_indices = @transform_0, window_bounds = array<i64: 456, 36>}, {pipeline_mode = #tpu.pipeline_mode<synchronous>, transform_indices = @transform_1, window_bounds = array<i64: 36, 4>}, {pipeline_mode = #tpu.pipeline_mode<synchronous>, transform_indices = @transform_2, window_bounds = array<i64: 1, 4>}, {transform_indices = @transform_3, window_bounds = array<i64: 456, 4>}]} {
    %c0 = arith.constant 0 : index
    %c0_0 = arith.constant 0 : index
    %0 = vector.load %arg1[%c0, %c0_0] : memref<456x36xbf16, #tpu.memory_space<vmem>>, vector<456x36xbf16>
    %c0_1 = arith.constant 0 : index
    %c0_2 = arith.constant 0 : index
    %1 = vector.load %arg2[%c0_1, %c0_2] : memref<36x4xbf16, #tpu.memory_space<vmem>>, vector<36x4xbf16>
    %cst = arith.constant dense<0.000000e+00> : vector<456x4xf32>
    %2 = tpu.matmul %0, %1, %cst {dimension_numbers = #tpu.dot_dimension_numbers<[1], [0], [0], [1], [0, 0, 1, 1], [], []>} : vector<456x36xbf16>, vector<36x4xbf16>, vector<456x4xf32> -> vector<456x4xf32>
    %c0_3 = arith.constant 0 : index
    %c0_4 = arith.constant 0 : index
    %3 = vector.load %arg3[%c0_3, %c0_4] : memref<1x4xf32, #tpu.memory_space<vmem>>, vector<1x4xf32>
    %4 = vector.broadcast %3 : vector<1x4xf32> to vector<456x4xf32>
    %5 = arith.addf %2, %4 : vector<456x4xf32>
    %6 = arith.truncf %5 : vector<456x4xf32> to vector<456x4xbf16>
    %c0_5 = arith.constant 0 : index
    %c0_6 = arith.constant 0 : index
    %7 = vector.load %arg4[%c0_5, %c0_6] : memref<456x4xbf16, #tpu.memory_space<vmem>>, vector<456x4xbf16>
    tpu.vector_store %arg4[%c0_5, %c0_6], %6 {strides = array<i32>} : memref<456x4xbf16, #tpu.memory_space<vmem>>, vector<456x4xbf16>,
    return
  }
  func.func @transform_0(%arg0: i32) -> (i32, i32) {
    %c0_i32 = arith.constant 0 : i32
    %c0_i32_0 = arith.constant 0 : i32
    return %arg0, %c0_i32 : i32, i32
  }
  func.func @transform_1(%arg0: i32) -> (i32, i32) {
    %c0_i32 = arith.constant 0 : i32
    %c0_i32_0 = arith.constant 0 : i32
    %c0_i32_1 = arith.constant 0 : i32
    return %c0_i32, %c0_i32_0 : i32, i32
  }
  func.func @transform_2(%arg0: i32) -> (i32, i32) {
    %c0_i32 = arith.constant 0 : i32
    %c0_i32_0 = arith.constant 0 : i32
    %c0_i32_1 = arith.constant 0 : i32
    return %c0_i32, %c0_i32_0 : i32, i32
  }
  func.func @transform_3(%arg0: i32) -> (i32, i32) {
    %c0_i32 = arith.constant 0 : i32
    %c0_i32_0 = arith.constant 0 : i32
    return %arg0, %c0_i32 : i32, i32
  }
}

module attributes {stable_mosaic.version = 11 : i64} {
  func.func @tapmax_kernel(%arg0: i32, %arg1: memref<7x6x60xbf16, #tpu.memory_space<vmem>>, %arg2: memref<6x60xbf16, #tpu.memory_space<vmem>>) attributes {dimension_semantics = [#tpu.dimension_semantics<parallel>], iteration_bounds = array<i64: 1>, scalar_prefetch = 0 : i64, scratch_operands = 0 : i64, tpu.core_type = #tpu.core_type<tc>, window_params = [{transform_indices = @transform_0, window_bounds = array<i64: 7, 6, 60>}, {transform_indices = @transform_1, window_bounds = array<i64: 6, 60>}]} {
    %c0 = arith.constant 0 : index
    %c0_0 = arith.constant 0 : index
    %c0_1 = arith.constant 0 : index
    %0 = vector.load %arg1[%c0, %c0_0, %c0_1] : memref<7x6x60xbf16, #tpu.memory_space<vmem>>, vector<1x6x60xbf16>
    %1 = vector.shape_cast %0 : vector<1x6x60xbf16> to vector<6x60xbf16>
    %c1 = arith.constant 1 : index
    %c0_2 = arith.constant 0 : index
    %c0_3 = arith.constant 0 : index
    %2 = vector.load %arg1[%c1, %c0_2, %c0_3] : memref<7x6x60xbf16, #tpu.memory_space<vmem>>, vector<1x6x60xbf16>
    %3 = vector.shape_cast %2 : vector<1x6x60xbf16> to vector<6x60xbf16>
    %4 = arith.maximumf %1, %3 : vector<6x60xbf16>
    %c2 = arith.constant 2 : index
    %c0_4 = arith.constant 0 : index
    %c0_5 = arith.constant 0 : index
    %5 = vector.load %arg1[%c2, %c0_4, %c0_5] : memref<7x6x60xbf16, #tpu.memory_space<vmem>>, vector<1x6x60xbf16>
    %6 = vector.shape_cast %5 : vector<1x6x60xbf16> to vector<6x60xbf16>
    %7 = arith.maximumf %4, %6 : vector<6x60xbf16>
    %c3 = arith.constant 3 : index
    %c0_6 = arith.constant 0 : index
    %c0_7 = arith.constant 0 : index
    %8 = vector.load %arg1[%c3, %c0_6, %c0_7] : memref<7x6x60xbf16, #tpu.memory_space<vmem>>, vector<1x6x60xbf16>
    %9 = vector.shape_cast %8 : vector<1x6x60xbf16> to vector<6x60xbf16>
    %10 = arith.maximumf %7, %9 : vector<6x60xbf16>
    %c4 = arith.constant 4 : index
    %c0_8 = arith.constant 0 : index
    %c0_9 = arith.constant 0 : index
    %11 = vector.load %arg1[%c4, %c0_8, %c0_9] : memref<7x6x60xbf16, #tpu.memory_space<vmem>>, vector<1x6x60xbf16>
    %12 = vector.shape_cast %11 : vector<1x6x60xbf16> to vector<6x60xbf16>
    %13 = arith.maximumf %10, %12 : vector<6x60xbf16>
    %c5 = arith.constant 5 : index
    %c0_10 = arith.constant 0 : index
    %c0_11 = arith.constant 0 : index
    %14 = vector.load %arg1[%c5, %c0_10, %c0_11] : memref<7x6x60xbf16, #tpu.memory_space<vmem>>, vector<1x6x60xbf16>
    %15 = vector.shape_cast %14 : vector<1x6x60xbf16> to vector<6x60xbf16>
    %16 = arith.maximumf %13, %15 : vector<6x60xbf16>
    %c6 = arith.constant 6 : index
    %c0_12 = arith.constant 0 : index
    %c0_13 = arith.constant 0 : index
    %17 = vector.load %arg1[%c6, %c0_12, %c0_13] : memref<7x6x60xbf16, #tpu.memory_space<vmem>>, vector<1x6x60xbf16>
    %18 = vector.shape_cast %17 : vector<1x6x60xbf16> to vector<6x60xbf16>
    %19 = arith.maximumf %16, %18 : vector<6x60xbf16>
    %c0_14 = arith.constant 0 : index
    %c0_15 = arith.constant 0 : index
    %20 = vector.load %arg2[%c0_14, %c0_15] : memref<6x60xbf16, #tpu.memory_space<vmem>>, vector<6x60xbf16>
    tpu.vector_store %arg2[%c0_14, %c0_15], %19 {strides = array<i32>} : memref<6x60xbf16, #tpu.memory_space<vmem>>, vector<6x60xbf16>,
    return
  }
  func.func @transform_0(%arg0: i32) -> (i32, i32, i32) {
    %c0_i32 = arith.constant 0 : i32
    %c0_i32_0 = arith.constant 0 : i32
    %c0_i32_1 = arith.constant 0 : i32
    return %c0_i32, %arg0, %c0_i32_0 : i32, i32, i32
  }
  func.func @transform_1(%arg0: i32) -> (i32, i32) {
    %c0_i32 = arith.constant 0 : i32
    %c0_i32_0 = arith.constant 0 : i32
    return %arg0, %c0_i32 : i32, i32
  }
}

module attributes {stable_mosaic.version = 11 : i64} {
  func.func @tapmax_kernel(%arg0: i32, %arg1: memref<7x6x12xbf16, #tpu.memory_space<vmem>>, %arg2: memref<6x12xbf16, #tpu.memory_space<vmem>>) attributes {dimension_semantics = [#tpu.dimension_semantics<parallel>], iteration_bounds = array<i64: 1>, scalar_prefetch = 0 : i64, scratch_operands = 0 : i64, tpu.core_type = #tpu.core_type<tc>, window_params = [{transform_indices = @transform_0, window_bounds = array<i64: 7, 6, 12>}, {transform_indices = @transform_1, window_bounds = array<i64: 6, 12>}]} {
    %c0 = arith.constant 0 : index
    %c0_0 = arith.constant 0 : index
    %c0_1 = arith.constant 0 : index
    %0 = vector.load %arg1[%c0, %c0_0, %c0_1] : memref<7x6x12xbf16, #tpu.memory_space<vmem>>, vector<1x6x12xbf16>
    %1 = vector.shape_cast %0 : vector<1x6x12xbf16> to vector<6x12xbf16>
    %c1 = arith.constant 1 : index
    %c0_2 = arith.constant 0 : index
    %c0_3 = arith.constant 0 : index
    %2 = vector.load %arg1[%c1, %c0_2, %c0_3] : memref<7x6x12xbf16, #tpu.memory_space<vmem>>, vector<1x6x12xbf16>
    %3 = vector.shape_cast %2 : vector<1x6x12xbf16> to vector<6x12xbf16>
    %4 = arith.maximumf %1, %3 : vector<6x12xbf16>
    %c2 = arith.constant 2 : index
    %c0_4 = arith.constant 0 : index
    %c0_5 = arith.constant 0 : index
    %5 = vector.load %arg1[%c2, %c0_4, %c0_5] : memref<7x6x12xbf16, #tpu.memory_space<vmem>>, vector<1x6x12xbf16>
    %6 = vector.shape_cast %5 : vector<1x6x12xbf16> to vector<6x12xbf16>
    %7 = arith.maximumf %4, %6 : vector<6x12xbf16>
    %c3 = arith.constant 3 : index
    %c0_6 = arith.constant 0 : index
    %c0_7 = arith.constant 0 : index
    %8 = vector.load %arg1[%c3, %c0_6, %c0_7] : memref<7x6x12xbf16, #tpu.memory_space<vmem>>, vector<1x6x12xbf16>
    %9 = vector.shape_cast %8 : vector<1x6x12xbf16> to vector<6x12xbf16>
    %10 = arith.maximumf %7, %9 : vector<6x12xbf16>
    %c4 = arith.constant 4 : index
    %c0_8 = arith.constant 0 : index
    %c0_9 = arith.constant 0 : index
    %11 = vector.load %arg1[%c4, %c0_8, %c0_9] : memref<7x6x12xbf16, #tpu.memory_space<vmem>>, vector<1x6x12xbf16>
    %12 = vector.shape_cast %11 : vector<1x6x12xbf16> to vector<6x12xbf16>
    %13 = arith.maximumf %10, %12 : vector<6x12xbf16>
    %c5 = arith.constant 5 : index
    %c0_10 = arith.constant 0 : index
    %c0_11 = arith.constant 0 : index
    %14 = vector.load %arg1[%c5, %c0_10, %c0_11] : memref<7x6x12xbf16, #tpu.memory_space<vmem>>, vector<1x6x12xbf16>
    %15 = vector.shape_cast %14 : vector<1x6x12xbf16> to vector<6x12xbf16>
    %16 = arith.maximumf %13, %15 : vector<6x12xbf16>
    %c6 = arith.constant 6 : index
    %c0_12 = arith.constant 0 : index
    %c0_13 = arith.constant 0 : index
    %17 = vector.load %arg1[%c6, %c0_12, %c0_13] : memref<7x6x12xbf16, #tpu.memory_space<vmem>>, vector<1x6x12xbf16>
    %18 = vector.shape_cast %17 : vector<1x6x12xbf16> to vector<6x12xbf16>
    %19 = arith.maximumf %16, %18 : vector<6x12xbf16>
    %c0_14 = arith.constant 0 : index
    %c0_15 = arith.constant 0 : index
    %20 = vector.load %arg2[%c0_14, %c0_15] : memref<6x12xbf16, #tpu.memory_space<vmem>>, vector<6x12xbf16>
    tpu.vector_store %arg2[%c0_14, %c0_15], %19 {strides = array<i32>} : memref<6x12xbf16, #tpu.memory_space<vmem>>, vector<6x12xbf16>,
    return
  }
  func.func @transform_0(%arg0: i32) -> (i32, i32, i32) {
    %c0_i32 = arith.constant 0 : i32
    %c0_i32_0 = arith.constant 0 : i32
    %c0_i32_1 = arith.constant 0 : i32
    return %c0_i32, %arg0, %c0_i32_0 : i32, i32, i32
  }
  func.func @transform_1(%arg0: i32) -> (i32, i32) {
    %c0_i32 = arith.constant 0 : i32
    %c0_i32_0 = arith.constant 0 : i32
    return %arg0, %c0_i32 : i32, i32
  }
}

module attributes {stable_mosaic.version = 11 : i64} {
  func.func @linear_kernel(%arg0: i32, %arg1: memref<24x36xbf16, #tpu.memory_space<vmem>>, %arg2: memref<36x4xbf16, #tpu.memory_space<vmem>>, %arg3: memref<1x4xf32, #tpu.memory_space<vmem>>, %arg4: memref<24x4xbf16, #tpu.memory_space<vmem>>) attributes {dimension_semantics = [#tpu.dimension_semantics<parallel>], iteration_bounds = array<i64: 1>, scalar_prefetch = 0 : i64, scratch_operands = 0 : i64, tpu.core_type = #tpu.core_type<tc>, window_params = [{transform_indices = @transform_0, window_bounds = array<i64: 24, 36>}, {pipeline_mode = #tpu.pipeline_mode<synchronous>, transform_indices = @transform_1, window_bounds = array<i64: 36, 4>}, {pipeline_mode = #tpu.pipeline_mode<synchronous>, transform_indices = @transform_2, window_bounds = array<i64: 1, 4>}, {transform_indices = @transform_3, window_bounds = array<i64: 24, 4>}]} {
    %c0 = arith.constant 0 : index
    %c0_0 = arith.constant 0 : index
    %0 = vector.load %arg1[%c0, %c0_0] : memref<24x36xbf16, #tpu.memory_space<vmem>>, vector<24x36xbf16>
    %c0_1 = arith.constant 0 : index
    %c0_2 = arith.constant 0 : index
    %1 = vector.load %arg2[%c0_1, %c0_2] : memref<36x4xbf16, #tpu.memory_space<vmem>>, vector<36x4xbf16>
    %cst = arith.constant dense<0.000000e+00> : vector<24x4xf32>
    %2 = tpu.matmul %0, %1, %cst {dimension_numbers = #tpu.dot_dimension_numbers<[1], [0], [0], [1], [0, 0, 1, 1], [], []>} : vector<24x36xbf16>, vector<36x4xbf16>, vector<24x4xf32> -> vector<24x4xf32>
    %c0_3 = arith.constant 0 : index
    %c0_4 = arith.constant 0 : index
    %3 = vector.load %arg3[%c0_3, %c0_4] : memref<1x4xf32, #tpu.memory_space<vmem>>, vector<1x4xf32>
    %4 = vector.broadcast %3 : vector<1x4xf32> to vector<24x4xf32>
    %5 = arith.addf %2, %4 : vector<24x4xf32>
    %cst_5 = arith.constant 0.000000e+00 : f32
    %6 = vector.broadcast %cst_5 : f32 to vector<24x4xf32>
    %7 = arith.maximumf %5, %6 : vector<24x4xf32>
    %8 = arith.truncf %7 : vector<24x4xf32> to vector<24x4xbf16>
    %c0_6 = arith.constant 0 : index
    %c0_7 = arith.constant 0 : index
    %9 = vector.load %arg4[%c0_6, %c0_7] : memref<24x4xbf16, #tpu.memory_space<vmem>>, vector<24x4xbf16>
    tpu.vector_store %arg4[%c0_6, %c0_7], %8 {strides = array<i32>} : memref<24x4xbf16, #tpu.memory_space<vmem>>, vector<24x4xbf16>,
    return
  }
  func.func @transform_0(%arg0: i32) -> (i32, i32) {
    %c0_i32 = arith.constant 0 : i32
    %c0_i32_0 = arith.constant 0 : i32
    return %arg0, %c0_i32 : i32, i32
  }
  func.func @transform_1(%arg0: i32) -> (i32, i32) {
    %c0_i32 = arith.constant 0 : i32
    %c0_i32_0 = arith.constant 0 : i32
    %c0_i32_1 = arith.constant 0 : i32
    return %c0_i32, %c0_i32_0 : i32, i32
  }
  func.func @transform_2(%arg0: i32) -> (i32, i32) {
    %c0_i32 = arith.constant 0 : i32
    %c0_i32_0 = arith.constant 0 : i32
    %c0_i32_1 = arith.constant 0 : i32
    return %c0_i32, %c0_i32_0 : i32, i32
  }
  func.func @transform_3(%arg0: i32) -> (i32, i32) {
    %c0_i32 = arith.constant 0 : i32
    %c0_i32_0 = arith.constant 0 : i32
    return %arg0, %c0_i32 : i32, i32
  }
}

module attributes {stable_mosaic.version = 11 : i64} {
  func.func @linear_kernel(%arg0: i32, %arg1: memref<24x36xbf16, #tpu.memory_space<vmem>>, %arg2: memref<36x4xbf16, #tpu.memory_space<vmem>>, %arg3: memref<1x4xf32, #tpu.memory_space<vmem>>, %arg4: memref<24x4xbf16, #tpu.memory_space<vmem>>) attributes {dimension_semantics = [#tpu.dimension_semantics<parallel>], iteration_bounds = array<i64: 1>, scalar_prefetch = 0 : i64, scratch_operands = 0 : i64, tpu.core_type = #tpu.core_type<tc>, window_params = [{transform_indices = @transform_0, window_bounds = array<i64: 24, 36>}, {pipeline_mode = #tpu.pipeline_mode<synchronous>, transform_indices = @transform_1, window_bounds = array<i64: 36, 4>}, {pipeline_mode = #tpu.pipeline_mode<synchronous>, transform_indices = @transform_2, window_bounds = array<i64: 1, 4>}, {transform_indices = @transform_3, window_bounds = array<i64: 24, 4>}]} {
    %c0 = arith.constant 0 : index
    %c0_0 = arith.constant 0 : index
    %0 = vector.load %arg1[%c0, %c0_0] : memref<24x36xbf16, #tpu.memory_space<vmem>>, vector<24x36xbf16>
    %c0_1 = arith.constant 0 : index
    %c0_2 = arith.constant 0 : index
    %1 = vector.load %arg2[%c0_1, %c0_2] : memref<36x4xbf16, #tpu.memory_space<vmem>>, vector<36x4xbf16>
    %cst = arith.constant dense<0.000000e+00> : vector<24x4xf32>
    %2 = tpu.matmul %0, %1, %cst {dimension_numbers = #tpu.dot_dimension_numbers<[1], [0], [0], [1], [0, 0, 1, 1], [], []>} : vector<24x36xbf16>, vector<36x4xbf16>, vector<24x4xf32> -> vector<24x4xf32>
    %c0_3 = arith.constant 0 : index
    %c0_4 = arith.constant 0 : index
    %3 = vector.load %arg3[%c0_3, %c0_4] : memref<1x4xf32, #tpu.memory_space<vmem>>, vector<1x4xf32>
    %4 = vector.broadcast %3 : vector<1x4xf32> to vector<24x4xf32>
    %5 = arith.addf %2, %4 : vector<24x4xf32>
    %6 = arith.truncf %5 : vector<24x4xf32> to vector<24x4xbf16>
    %c0_5 = arith.constant 0 : index
    %c0_6 = arith.constant 0 : index
    %7 = vector.load %arg4[%c0_5, %c0_6] : memref<24x4xbf16, #tpu.memory_space<vmem>>, vector<24x4xbf16>
    tpu.vector_store %arg4[%c0_5, %c0_6], %6 {strides = array<i32>} : memref<24x4xbf16, #tpu.memory_space<vmem>>, vector<24x4xbf16>,
    return
  }
  func.func @transform_0(%arg0: i32) -> (i32, i32) {
    %c0_i32 = arith.constant 0 : i32
    %c0_i32_0 = arith.constant 0 : i32
    return %arg0, %c0_i32 : i32, i32
  }
  func.func @transform_1(%arg0: i32) -> (i32, i32) {
    %c0_i32 = arith.constant 0 : i32
    %c0_i32_0 = arith.constant 0 : i32
    %c0_i32_1 = arith.constant 0 : i32
    return %c0_i32, %c0_i32_0 : i32, i32
  }
  func.func @transform_2(%arg0: i32) -> (i32, i32) {
    %c0_i32 = arith.constant 0 : i32
    %c0_i32_0 = arith.constant 0 : i32
    %c0_i32_1 = arith.constant 0 : i32
    return %c0_i32, %c0_i32_0 : i32, i32
  }
  func.func @transform_3(%arg0: i32) -> (i32, i32) {
    %c0_i32 = arith.constant 0 : i32
    %c0_i32_0 = arith.constant 0 : i32
    return %arg0, %c0_i32 : i32, i32
  }
}

module attributes {stable_mosaic.version = 11 : i64} {
  func.func @linear_kernel(%arg0: i32, %arg1: memref<8x12xbf16, #tpu.memory_space<vmem>>, %arg2: memref<12x128xbf16, #tpu.memory_space<vmem>>, %arg3: memref<1x128xf32, #tpu.memory_space<vmem>>, %arg4: memref<8x128xbf16, #tpu.memory_space<vmem>>) attributes {dimension_semantics = [#tpu.dimension_semantics<parallel>], iteration_bounds = array<i64: 1>, scalar_prefetch = 0 : i64, scratch_operands = 0 : i64, tpu.core_type = #tpu.core_type<tc>, window_params = [{transform_indices = @transform_0, window_bounds = array<i64: 8, 12>}, {pipeline_mode = #tpu.pipeline_mode<synchronous>, transform_indices = @transform_1, window_bounds = array<i64: 12, 128>}, {pipeline_mode = #tpu.pipeline_mode<synchronous>, transform_indices = @transform_2, window_bounds = array<i64: 1, 128>}, {transform_indices = @transform_3, window_bounds = array<i64: 8, 128>}]} {
    %c0 = arith.constant 0 : index
    %c0_0 = arith.constant 0 : index
    %0 = vector.load %arg1[%c0, %c0_0] : memref<8x12xbf16, #tpu.memory_space<vmem>>, vector<8x12xbf16>
    %c0_1 = arith.constant 0 : index
    %c0_2 = arith.constant 0 : index
    %1 = vector.load %arg2[%c0_1, %c0_2] : memref<12x128xbf16, #tpu.memory_space<vmem>>, vector<12x128xbf16>
    %cst = arith.constant dense<0.000000e+00> : vector<8x128xf32>
    %2 = tpu.matmul %0, %1, %cst {dimension_numbers = #tpu.dot_dimension_numbers<[1], [0], [0], [1], [0, 0, 1, 1], [], []>} : vector<8x12xbf16>, vector<12x128xbf16>, vector<8x128xf32> -> vector<8x128xf32>
    %c0_3 = arith.constant 0 : index
    %c0_4 = arith.constant 0 : index
    %3 = vector.load %arg3[%c0_3, %c0_4] : memref<1x128xf32, #tpu.memory_space<vmem>>, vector<1x128xf32>
    %4 = vector.broadcast %3 : vector<1x128xf32> to vector<8x128xf32>
    %5 = arith.addf %2, %4 : vector<8x128xf32>
    %6 = arith.truncf %5 : vector<8x128xf32> to vector<8x128xbf16>
    %c0_5 = arith.constant 0 : index
    %c0_6 = arith.constant 0 : index
    %7 = vector.load %arg4[%c0_5, %c0_6] : memref<8x128xbf16, #tpu.memory_space<vmem>>, vector<8x128xbf16>
    tpu.vector_store %arg4[%c0_5, %c0_6], %6 {strides = array<i32>} : memref<8x128xbf16, #tpu.memory_space<vmem>>, vector<8x128xbf16>,
    return
  }
  func.func @transform_0(%arg0: i32) -> (i32, i32) {
    %c0_i32 = arith.constant 0 : i32
    %c0_i32_0 = arith.constant 0 : i32
    return %arg0, %c0_i32 : i32, i32
  }
  func.func @transform_1(%arg0: i32) -> (i32, i32) {
    %c0_i32 = arith.constant 0 : i32
    %c0_i32_0 = arith.constant 0 : i32
    %c0_i32_1 = arith.constant 0 : i32
    return %c0_i32, %c0_i32_0 : i32, i32
  }
  func.func @transform_2(%arg0: i32) -> (i32, i32) {
    %c0_i32 = arith.constant 0 : i32
    %c0_i32_0 = arith.constant 0 : i32
    %c0_i32_1 = arith.constant 0 : i32
    return %c0_i32, %c0_i32_0 : i32, i32
  }
  func.func @transform_3(%arg0: i32) -> (i32, i32) {
    %c0_i32 = arith.constant 0 : i32
    %c0_i32_0 = arith.constant 0 : i32
    return %arg0, %c0_i32 : i32, i32
  }
}

module attributes {stable_mosaic.version = 11 : i64} {
  func.func @linear_kernel(%arg0: i32, %arg1: memref<192x4xbf16, #tpu.memory_space<vmem>>, %arg2: memref<4x16xbf16, #tpu.memory_space<vmem>>, %arg3: memref<1x16xf32, #tpu.memory_space<vmem>>, %arg4: memref<192x16xbf16, #tpu.memory_space<vmem>>) attributes {dimension_semantics = [#tpu.dimension_semantics<parallel>], iteration_bounds = array<i64: 1>, scalar_prefetch = 0 : i64, scratch_operands = 0 : i64, tpu.core_type = #tpu.core_type<tc>, window_params = [{transform_indices = @transform_0, window_bounds = array<i64: 192, 4>}, {pipeline_mode = #tpu.pipeline_mode<synchronous>, transform_indices = @transform_1, window_bounds = array<i64: 4, 16>}, {pipeline_mode = #tpu.pipeline_mode<synchronous>, transform_indices = @transform_2, window_bounds = array<i64: 1, 16>}, {transform_indices = @transform_3, window_bounds = array<i64: 192, 16>}]} {
    %c0 = arith.constant 0 : index
    %c0_0 = arith.constant 0 : index
    %0 = vector.load %arg1[%c0, %c0_0] : memref<192x4xbf16, #tpu.memory_space<vmem>>, vector<192x4xbf16>
    %c0_1 = arith.constant 0 : index
    %c0_2 = arith.constant 0 : index
    %1 = vector.load %arg2[%c0_1, %c0_2] : memref<4x16xbf16, #tpu.memory_space<vmem>>, vector<4x16xbf16>
    %cst = arith.constant dense<0.000000e+00> : vector<192x16xf32>
    %2 = tpu.matmul %0, %1, %cst {dimension_numbers = #tpu.dot_dimension_numbers<[1], [0], [0], [1], [0, 0, 1, 1], [], []>} : vector<192x4xbf16>, vector<4x16xbf16>, vector<192x16xf32> -> vector<192x16xf32>
    %c0_3 = arith.constant 0 : index
    %c0_4 = arith.constant 0 : index
    %3 = vector.load %arg3[%c0_3, %c0_4] : memref<1x16xf32, #tpu.memory_space<vmem>>, vector<1x16xf32>
    %4 = vector.broadcast %3 : vector<1x16xf32> to vector<192x16xf32>
    %5 = arith.addf %2, %4 : vector<192x16xf32>
    %6 = arith.truncf %5 : vector<192x16xf32> to vector<192x16xbf16>
    %c0_5 = arith.constant 0 : index
    %c0_6 = arith.constant 0 : index
    %7 = vector.load %arg4[%c0_5, %c0_6] : memref<192x16xbf16, #tpu.memory_space<vmem>>, vector<192x16xbf16>
    tpu.vector_store %arg4[%c0_5, %c0_6], %6 {strides = array<i32>} : memref<192x16xbf16, #tpu.memory_space<vmem>>, vector<192x16xbf16>,
    return
  }
  func.func @transform_0(%arg0: i32) -> (i32, i32) {
    %c0_i32 = arith.constant 0 : i32
    %c0_i32_0 = arith.constant 0 : i32
    return %arg0, %c0_i32 : i32, i32
  }
  func.func @transform_1(%arg0: i32) -> (i32, i32) {
    %c0_i32 = arith.constant 0 : i32
    %c0_i32_0 = arith.constant 0 : i32
    %c0_i32_1 = arith.constant 0 : i32
    return %c0_i32, %c0_i32_0 : i32, i32
  }
  func.func @transform_2(%arg0: i32) -> (i32, i32) {
    %c0_i32 = arith.constant 0 : i32
    %c0_i32_0 = arith.constant 0 : i32
    %c0_i32_1 = arith.constant 0 : i32
    return %c0_i32, %c0_i32_0 : i32, i32
  }
  func.func @transform_3(%arg0: i32) -> (i32, i32) {
    %c0_i32 = arith.constant 0 : i32
    %c0_i32_0 = arith.constant 0 : i32
    return %arg0, %c0_i32 : i32, i32
  }
}

module attributes {stable_mosaic.version = 11 : i64} {
  func.func @linear_kernel(%arg0: i32, %arg1: memref<512x4xbf16, #tpu.memory_space<vmem>>, %arg2: memref<4x16xbf16, #tpu.memory_space<vmem>>, %arg3: memref<1x16xf32, #tpu.memory_space<vmem>>, %arg4: memref<512x16xbf16, #tpu.memory_space<vmem>>) attributes {dimension_semantics = [#tpu.dimension_semantics<parallel>], iteration_bounds = array<i64: 4>, scalar_prefetch = 0 : i64, scratch_operands = 0 : i64, tpu.core_type = #tpu.core_type<tc>, window_params = [{transform_indices = @transform_0, window_bounds = array<i64: 512, 4>}, {pipeline_mode = #tpu.pipeline_mode<synchronous>, transform_indices = @transform_1, window_bounds = array<i64: 4, 16>}, {pipeline_mode = #tpu.pipeline_mode<synchronous>, transform_indices = @transform_2, window_bounds = array<i64: 1, 16>}, {transform_indices = @transform_3, window_bounds = array<i64: 512, 16>}]} {
    %c0 = arith.constant 0 : index
    %c0_0 = arith.constant 0 : index
    %0 = vector.load %arg1[%c0, %c0_0] : memref<512x4xbf16, #tpu.memory_space<vmem>>, vector<512x4xbf16>
    %c0_1 = arith.constant 0 : index
    %c0_2 = arith.constant 0 : index
    %1 = vector.load %arg2[%c0_1, %c0_2] : memref<4x16xbf16, #tpu.memory_space<vmem>>, vector<4x16xbf16>
    %cst = arith.constant dense<0.000000e+00> : vector<512x16xf32>
    %2 = tpu.matmul %0, %1, %cst {dimension_numbers = #tpu.dot_dimension_numbers<[1], [0], [0], [1], [0, 0, 1, 1], [], []>} : vector<512x4xbf16>, vector<4x16xbf16>, vector<512x16xf32> -> vector<512x16xf32>
    %c0_3 = arith.constant 0 : index
    %c0_4 = arith.constant 0 : index
    %3 = vector.load %arg3[%c0_3, %c0_4] : memref<1x16xf32, #tpu.memory_space<vmem>>, vector<1x16xf32>
    %4 = vector.broadcast %3 : vector<1x16xf32> to vector<512x16xf32>
    %5 = arith.addf %2, %4 : vector<512x16xf32>
    %6 = arith.truncf %5 : vector<512x16xf32> to vector<512x16xbf16>
    %c0_5 = arith.constant 0 : index
    %c0_6 = arith.constant 0 : index
    %7 = vector.load %arg4[%c0_5, %c0_6] : memref<512x16xbf16, #tpu.memory_space<vmem>>, vector<512x16xbf16>
    tpu.vector_store %arg4[%c0_5, %c0_6], %6 {strides = array<i32>} : memref<512x16xbf16, #tpu.memory_space<vmem>>, vector<512x16xbf16>,
    return
  }
  func.func @transform_0(%arg0: i32) -> (i32, i32) {
    %c0_i32 = arith.constant 0 : i32
    %c0_i32_0 = arith.constant 0 : i32
    return %arg0, %c0_i32 : i32, i32
  }
  func.func @transform_1(%arg0: i32) -> (i32, i32) {
    %c0_i32 = arith.constant 0 : i32
    %c0_i32_0 = arith.constant 0 : i32
    %c0_i32_1 = arith.constant 0 : i32
    return %c0_i32, %c0_i32_0 : i32, i32
  }
  func.func @transform_2(%arg0: i32) -> (i32, i32) {
    %c0_i32 = arith.constant 0 : i32
    %c0_i32_0 = arith.constant 0 : i32
    %c0_i32_1 = arith.constant 0 : i32
    return %c0_i32, %c0_i32_0 : i32, i32
  }
  func.func @transform_3(%arg0: i32) -> (i32, i32) {
    %c0_i32 = arith.constant 0 : i32
    %c0_i32_0 = arith.constant 0 : i32
    return %arg0, %c0_i32 : i32, i32
  }
}

module attributes {stable_mosaic.version = 11 : i64} {
  func.func @tail_kernel(%arg0: i32, %arg1: i32, %arg2: memref<32x3xbf16, #tpu.memory_space<vmem>>, %arg3: memref<1x3x512xbf16, #tpu.memory_space<vmem>>, %arg4: memref<1x32x512xbf16, #tpu.memory_space<vmem>>, %arg5: memref<1x32x512xf32, #tpu.memory_space<vmem>>, %arg6: memref<1x32x512xf32, #tpu.memory_space<vmem>>) attributes {dimension_semantics = [#tpu.dimension_semantics<parallel>, #tpu.dimension_semantics<parallel>], iteration_bounds = array<i64: 2, 1>, scalar_prefetch = 0 : i64, scratch_operands = 0 : i64, tpu.core_type = #tpu.core_type<tc>, window_params = [{transform_indices = @transform_0, window_bounds = array<i64: 32, 3>}, {transform_indices = @transform_1, window_bounds = array<i64: 1, 3, 512>}, {transform_indices = @transform_2, window_bounds = array<i64: 1, 32, 512>}, {transform_indices = @transform_3, window_bounds = array<i64: 1, 32, 512>}, {transform_indices = @transform_4, window_bounds = array<i64: 1, 32, 512>}]} {
    %c0 = arith.constant 0 : index
    %c0_0 = arith.constant 0 : index
    %0 = vector.load %arg2[%c0, %c0_0] : memref<32x3xbf16, #tpu.memory_space<vmem>>, vector<32x3xbf16>
    %c0_1 = arith.constant 0 : index
    %c0_2 = arith.constant 0 : index
    %c0_3 = arith.constant 0 : index
    %1 = vector.load %arg3[%c0_1, %c0_2, %c0_3] : memref<1x3x512xbf16, #tpu.memory_space<vmem>>, vector<1x3x512xbf16>
    %2 = vector.shape_cast %1 : vector<1x3x512xbf16> to vector<3x512xbf16>
    %cst = arith.constant dense<0.000000e+00> : vector<32x512xf32>
    %3 = tpu.matmul %0, %2, %cst {dimension_numbers = #tpu.dot_dimension_numbers<[1], [0], [0], [1], [0, 0, 1, 1], [], []>} : vector<32x3xbf16>, vector<3x512xbf16>, vector<32x512xf32> -> vector<32x512xf32>
    %c0_4 = arith.constant 0 : index
    %c0_5 = arith.constant 0 : index
    %c0_6 = arith.constant 0 : index
    %4 = vector.load %arg4[%c0_4, %c0_5, %c0_6] : memref<1x32x512xbf16, #tpu.memory_space<vmem>>, vector<1x32x512xbf16>
    %5 = vector.shape_cast %4 : vector<1x32x512xbf16> to vector<32x512xbf16>
    %6 = arith.extf %5 : vector<32x512xbf16> to vector<32x512xf32>
    %7 = arith.addf %3, %6 : vector<32x512xf32>
    %cst_7 = arith.constant 0.000000e+00 : f32
    %8 = vector.broadcast %cst_7 : f32 to vector<32x512xf32>
    %9 = arith.subf %8, %7 : vector<32x512xf32>
    %10 = math.exp %9 : vector<32x512xf32>
    %cst_8 = arith.constant 1.000000e+00 : f32
    %11 = vector.broadcast %cst_8 : f32 to vector<32x512xf32>
    %12 = arith.addf %11, %10 : vector<32x512xf32>
    %13 = tpu.reciprocal %12 {approx = true} : vector<32x512xf32> -> vector<32x512xf32>
    %c0_9 = arith.constant 0 : index
    %c0_10 = arith.constant 0 : index
    %c0_11 = arith.constant 0 : index
    %14 = vector.load %arg5[%c0_9, %c0_10, %c0_11] : memref<1x32x512xf32, #tpu.memory_space<vmem>>, vector<1x32x512xf32>
    %15 = vector.shape_cast %14 : vector<1x32x512xf32> to vector<32x512xf32>
    %16 = arith.mulf %15, %13 : vector<32x512xf32>
    %c0_12 = arith.constant 0 : index
    %c0_13 = arith.constant 0 : index
    %c0_14 = arith.constant 0 : index
    %17 = vector.load %arg6[%c0_12, %c0_13, %c0_14] : memref<1x32x512xf32, #tpu.memory_space<vmem>>, vector<1x32x512xf32>
    %18 = vector.shape_cast %17 : vector<1x32x512xf32> to vector<32x512xf32>
    %19 = vector.shape_cast %16 : vector<32x512xf32> to vector<1x32x512xf32>
    tpu.vector_store %arg6[%c0_12, %c0_13, %c0_14], %19 {strides = array<i32>} : memref<1x32x512xf32, #tpu.memory_space<vmem>>, vector<1x32x512xf32>,
    return
  }
  func.func @transform_0(%arg0: i32, %arg1: i32) -> (i32, i32) {
    %c0_i32 = arith.constant 0 : i32
    %c0_i32_0 = arith.constant 0 : i32
    return %arg1, %c0_i32 : i32, i32
  }
  func.func @transform_1(%arg0: i32, %arg1: i32) -> (i32, i32, i32) {
    %c0_i32 = arith.constant 0 : i32
    %c0_i32_0 = arith.constant 0 : i32
    %c0_i32_1 = arith.constant 0 : i32
    return %arg0, %c0_i32, %c0_i32_0 : i32, i32, i32
  }
  func.func @transform_2(%arg0: i32, %arg1: i32) -> (i32, i32, i32) {
    %c0_i32 = arith.constant 0 : i32
    %c0_i32_0 = arith.constant 0 : i32
    return %arg0, %arg1, %c0_i32 : i32, i32, i32
  }
  func.func @transform_3(%arg0: i32, %arg1: i32) -> (i32, i32, i32) {
    %c0_i32 = arith.constant 0 : i32
    %c0_i32_0 = arith.constant 0 : i32
    return %arg0, %arg1, %c0_i32 : i32, i32, i32
  }
  func.func @transform_4(%arg0: i32, %arg1: i32) -> (i32, i32, i32) {
    %c0_i32 = arith.constant 0 : i32
    %c0_i32_0 = arith.constant 0 : i32
    return %arg0, %arg1, %c0_i32 : i32, i32, i32
  }
}

</mosaic_0001>

<llo_original>
// kernel: esa_forward.11
$region0: #{esa_forward.11}
  #allocation0 [shape = 'u32[]', space=smem, size = 0x4, offset = 0x4, fixed_abs, tag = 'smem constant byte address 0x4 - core index']
  #allocation1 [shape = 'u32[72,128]{1,0:T(1,128)}', space=vmem, size = 0x9000, scoped, tag = 'internal scratch']
  %s0 = inlined_call_operand.vmem [shape: bf16[2048,16], index: 0, kind: input, shape index: {}]
  %s1 = inlined_call_operand.vmem [shape: bf16[16,4], index: 1, kind: input, shape index: {}]
  %s2 = inlined_call_operand.vmem [shape: f32[1,4], index: 2, kind: input, shape index: {}]
  %s3 = inlined_call_operand.vmem [shape: bf16[2048,4], index: 3, kind: output, shape index: {}]
  %s4 = sld [smem:[#allocation0]]
  $region45: #{esa_forward.11} parent=0
    _
  %s6 = ssub.s32 1, %s4
  %s7 = scalar_select 0, %s6, %s4
  loop: start=0, step=1, limit=6
  $region2: #{esa_forward.11} parent=0 // loop_pre_header
    _
  $region3: #{esa_forward.11} parent=0 // loop_header
    %s9 = sphi 0, %s13
    %p10 = scmp.ge.s32.totalorder %s9, 6
    %s19 = sphi 0, %s21
    %s22 = sphi 0, %s19
    %s23 = sphi 0, %s22
    %s39 = sphi 0, %s23
    %s43 = sphi 0, %s43
    %s45 = sphi 0, %s43
    %s46 = sphi 0, %s45
    %s60 = sphi 0, %s46
    %s64 = sphi 0, %s64
    %s66 = sphi 0, %s64
    %s67 = sphi 0, %s66
    %s81 = sphi 0, %s67
    %s87 = sphi 0, %s89
    %s90 = sphi 0, %s87
    %s91 = sphi 0, %s90
    %s107 = sphi 0, %s91
  $region4: #{esa_forward.11} parent=0 // loop_header_branch
    %12 = sbr.rel (%p10) target = $region8
  $region5: #{esa_forward.11} parent=0 // loop_body
    %s14 = ssub.s32 %s9, 1
    %s15 = ssub.s32 %s9, 2
    %s16 = sadd.s32 %s9, 1
    %s17 = ssub.s32 %s9, %s16
    %p18 = scmp.eq.s32.totalorder %s17, 0
    %s20 = sadd.s32 %s19, 1
    %s21 = scalar_select %p18, %s19, %s20
    %p24 = pneg %p18
    %p25 = scmp.eq.s32.totalorder %s9, 3
    %p26 = por %p24, %p25
    %p27 = scmp.ne.s32.totalorder %s19, %s22
    %p28 = scmp.eq.s32.totalorder %s9, 0
    %p29 = por %p27, %p28
    %p30 = scmp.ne.s32.totalorder %s19, %s22
    %p31 = scmp.eq.s32.totalorder %s14, 3
    %p32 = por %p30, %p31
    %p33 = scmp.ne.s32.totalorder %s22, %s23
    %p34 = scmp.eq.s32.totalorder %s14, 0
    %p35 = por %p33, %p34
    %p36 = scmp.ne.s32.totalorder %s22, %s23
    %p37 = scmp.eq.s32.totalorder %s15, 3
    %p38 = por %p36, %p37
    %p40 = scmp.ne.s32.totalorder %s23, %s39
    %p41 = scmp.eq.s32.totalorder %s15, 0
    %p42 = por %p40, %p41
    %s44 = sadd.s32 %s43, 1
    %p47 = scmp.eq.s32.totalorder %s9, 3
    %p48 = scmp.ne.s32.totalorder %s43, %s45
    %p49 = scmp.eq.s32.totalorder %s9, 0
    %p50 = por %p48, %p49
    %p51 = scmp.ne.s32.totalorder %s43, %s45
    %p52 = scmp.eq.s32.totalorder %s14, 3
    %p53 = por %p51, %p52
    %p54 = scmp.ne.s32.totalorder %s45, %s46
    %p55 = scmp.eq.s32.totalorder %s14, 0
    %p56 = por %p54, %p55
    %p57 = scmp.ne.s32.totalorder %s45, %s46
    %p58 = scmp.eq.s32.totalorder %s15, 3
    %p59 = por %p57, %p58
    %p61 = scmp.ne.s32.totalorder %s46, %s60
    %p62 = scmp.eq.s32.totalorder %s15, 0
    %p63 = por %p61, %p62
    %s65 = sadd.s32 %s64, 1
    %p68 = scmp.eq.s32.totalorder %s9, 3
    %p69 = scmp.ne.s32.totalorder %s64, %s66
    %p70 = scmp.eq.s32.totalorder %s9, 0
    %p71 = por %p69, %p70
    %p72 = scmp.ne.s32.totalorder %s64, %s66
    %p73 = scmp.eq.s32.totalorder %s14, 3
    %p74 = por %p72, %p73
    %p75 = scmp.ne.s32.totalorder %s66, %s67
    %p76 = scmp.eq.s32.totalorder %s14, 0
    %p77 = por %p75, %p76
    %p78 = scmp.ne.s32.totalorder %s66, %s67
    %p79 = scmp.eq.s32.totalorder %s15, 3
    %p80 = por %p78, %p79
    %p82 = scmp.ne.s32.totalorder %s67, %s81
    %p83 = scmp.eq.s32.totalorder %s15, 0
    %p84 = por %p82, %p83
    %s85 = ssub.s32 %s9, %s16
    %p86 = scmp.eq.s32.totalorder %s85, 0
    %s88 = sadd.s32 %s87, 1
    %s89 = scalar_select %p86, %s87, %s88
    %p92 = pneg %p86
    %p93 = scmp.eq.s32.totalorder %s9, 3
    %p94 = por %p92, %p93
    %p95 = scmp.ne.s32.totalorder %s87, %s90
    %p96 = scmp.eq.s32.totalorder %s9, 0
    %p97 = por %p95, %p96
    %p98 = scmp.ne.s32.totalorder %s87, %s90
    %p99 = scmp.eq.s32.totalorder %s14, 3
    %p100 = por %p98, %p99
    %p101 = scmp.ne.s32.totalorder %s90, %s91
    %p102 = scmp.eq.s32.totalorder %s14, 0
    %p103 = por %p101, %p102
    %p104 = scmp.ne.s32.totalorder %s90, %s91
    %p105 = scmp.eq.s32.totalorder %s15, 3
    %p106 = por %p104, %p105
    %p108 = scmp.ne.s32.totalorder %s91, %s107
    %p109 = scmp.eq.s32.totalorder %s15, 0
    %p110 = por %p108, %p109
    %p111 = scmp.le.s32.totalorder 1, %s9
    %p112 = scmp.lt.s32.totalorder %s9, 5
    %p113 = pnand %p111, %p112
    %p114 = pneg %p113
    // Predicated region
    $region9: #{esa_forward.11} parent=5 // pred_check
      _
    $region10: #{esa_forward.11} parent=5 // pred_check_branch
      %116 = sbr.rel (%p113) target = $region12
    $region11: #{esa_forward.11} parent=5 // pred_region
      %s117 = ssub.s32 %s9, 1
      // Predicated region
      $region13: #{esa_forward.11} parent=11 // pred_check
        %p118 = pneg %p56
      $region14: #{esa_forward.11} parent=11 // pred_check_branch
        %120 = sbr.rel (%p118) target = $region16
      $region15: #{esa_forward.11} parent=11 // pred_region
        _
      $region16: #{esa_forward.11} parent=11 // pred_fallthru
        _
      // Predicated region
      $region17: #{esa_forward.11} parent=11 // pred_check
        %p121 = pneg %p77
      $region18: #{esa_forward.11} parent=11 // pred_check_branch
        %123 = sbr.rel (%p121) target = $region20
      $region19: #{esa_forward.11} parent=11 // pred_region
        _
      $region20: #{esa_forward.11} parent=11 // pred_fallthru
        _
    $region12: #{esa_forward.11} parent=5 // pred_fallthru
      _
    %p124 = scmp.lt.s32.totalorder %s9, 4
    // Predicated region
    $region21: #{esa_forward.11} parent=5 // pred_check
      %p125 = pneg %p124
    $region22: #{esa_forward.11} parent=5 // pred_check_branch
      %127 = sbr.rel (%p125) target = $region24
    $region23: #{esa_forward.11} parent=5 // pred_region
      // Predicated region
      $region25: #{esa_forward.11} parent=23 // pred_check
        %p128 = pneg %p29
      $region26: #{esa_forward.11} parent=23 // pred_check_branch
        %130 = sbr.rel (%p128) target = $region28
      $region27: #{esa_forward.11} parent=23 // pred_region
        %s131 = smul.u32 64, %s9
        %p132 = scmp.lt.s32.totalorder %s131, 255
        %s133 = scalar_select %p132, %s131, 255
        %s134 = smul.addr %s133, 4
        %s135 = scalar_lea.vmem %s0, %s134
        %s136 = smul.u32 64, %s9
      $region28: #{esa_forward.11} parent=23 // pred_fallthru
        _
    $region24: #{esa_forward.11} parent=5 // pred_fallthru
      _
    %p137 = scmp.le.s32.totalorder 1, %s9
    %p138 = scmp.lt.s32.totalorder %s9, 5
    %p139 = pnand %p137, %p138
    %p140 = pneg %p139
    // Predicated region
    $region29: #{esa_forward.11} parent=5 // pred_check
      _
    $region30: #{esa_forward.11} parent=5 // pred_check_branch
      %142 = sbr.rel (%p139) target = $region32
    $region31: #{esa_forward.11} parent=5 // pred_region
      %s143 = ssub.s32 %s9, 1
      %s144 = smul.u32 64, %s14
      %p145 = scmp.lt.s32.totalorder %s144, 255
      %s146 = scalar_select %p145, %s144, 255
      %s147 = smul.addr %s146, 4
      %s148 = scalar_lea.vmem %s0, %s147
      %p149 = pneg %p35
      %p150 = pneg %p32
      %p151 = pneg %p56
      %p152 = pneg %p53
      %p153 = pneg %p77
      %p154 = pneg %p74
      %p155 = pneg %p103
      %p156 = pneg %p100
      %s157 = smul.u32 64, %s14
      %p158 = scmp.lt.s32.totalorder %s157, 255
      %s159 = scalar_select %p158, %s157, 255
      %s160 = smul.addr %s159, 4
      %s161 = scalar_lea.vmem %s3, %s160
      %s162 = smul.u32 64, %s14
      %p163 = scmp.lt.s32.totalorder %s162, 255
      %s164 = scalar_select %p163, %s162, 255
      %s165 = smul.addr %s164, 4
      %s166 = scalar_lea.vmem %s0, %s165
      %s167 = smul.u32 64, %s14
      %s168 = smul.u32 64, %s14
      %p169 = scmp.lt.s32.totalorder %s168, 255
      %s170 = scalar_select %p169, %s168, 255
      %s171 = smul.addr %s170, 4
      %s172 = scalar_lea.vmem %s3, %s171
      %s173 = smul.u32 64, %s14
      %v175 = vld [vmem:[%s166] sm:$0xf]
      %v176 = vld [vmem:[%s166 + $0x4] sm:$0xf]
      %v177 = vld [vmem:[%s166 + $0x8] sm:$0xf]
      %v178 = vld [vmem:[%s166 + $0xc] sm:$0xf]
      %v179 = vld [vmem:[%s166 + $0x10] sm:$0xf]
      %v180 = vld [vmem:[%s166 + $0x14] sm:$0xf]
      %v181 = vld [vmem:[%s166 + $0x18] sm:$0xf]
      %v182 = vld [vmem:[%s166 + $0x1c] sm:$0xf]
      %v183 = vld [vmem:[%s166 + $0x20] sm:$0xf]
      %v184 = vld [vmem:[%s166 + $0x24] sm:$0xf]
      %v185 = vld [vmem:[%s166 + $0x28] sm:$0xf]
      %v186 = vld [vmem:[%s166 + $0x2c] sm:$0xf]
      %v187 = vld [vmem:[%s166 + $0x30] sm:$0xf]
      %v188 = vld [vmem:[%s166 + $0x34] sm:$0xf]
      %v189 = vld [vmem:[%s166 + $0x38] sm:$0xf]
      %v190 = vld [vmem:[%s166 + $0x3c] sm:$0xf]
      %v191 = vld [vmem:[%s166 + $0x40] sm:$0xf]
      %v192 = vld [vmem:[%s166 + $0x44] sm:$0xf]
      %v193 = vld [vmem:[%s166 + $0x48] sm:$0xf]
      %v194 = vld [vmem:[%s166 + $0x4c] sm:$0xf]
      %v195 = vld [vmem:[%s166 + $0x50] sm:$0xf]
      %v196 = vld [vmem:[%s166 + $0x54] sm:$0xf]
      %v197 = vld [vmem:[%s166 + $0x58] sm:$0xf]
      %v198 = vld [vmem:[%s166 + $0x5c] sm:$0xf]
      %v199 = vld [vmem:[%s166 + $0x60] sm:$0xf]
      %v200 = vld [vmem:[%s166 + $0x64] sm:$0xf]
      %v201 = vld [vmem:[%s166 + $0x68] sm:$0xf]
      %v202 = vld [vmem:[%s166 + $0x6c] sm:$0xf]
      %v203 = vld [vmem:[%s166 + $0x70] sm:$0xf]
      %v204 = vld [vmem:[%s166 + $0x74] sm:$0xf]
      %v205 = vld [vmem:[%s166 + $0x78] sm:$0xf]
      %v206 = vld [vmem:[%s166 + $0x7c] sm:$0xf]
      %v207 = vld [vmem:[%s166 + $0x80] sm:$0xf]
      %v208 = vld [vmem:[%s166 + $0x84] sm:$0xf]
      %v209 = vld [vmem:[%s166 + $0x88] sm:$0xf]
      %v210 = vld [vmem:[%s166 + $0x8c] sm:$0xf]
      %v211 = vld [vmem:[%s166 + $0x90] sm:$0xf]
      %v212 = vld [vmem:[%s166 + $0x94] sm:$0xf]
      %v213 = vld [vmem:[%s166 + $0x98] sm:$0xf]
      %v214 = vld [vmem:[%s166 + $0x9c] sm:$0xf]
      %v215 = vld [vmem:[%s166 + $0xa0] sm:$0xf]
      %v216 = vld [vmem:[%s166 + $0xa4] sm:$0xf]
      %v217 = vld [vmem:[%s166 + $0xa8] sm:$0xf]
      %v218 = vld [vmem:[%s166 + $0xac] sm:$0xf]
      %v219 = vld [vmem:[%s166 + $0xb0] sm:$0xf]
      %v220 = vld [vmem:[%s166 + $0xb4] sm:$0xf]
      %v221 = vld [vmem:[%s166 + $0xb8] sm:$0xf]
      %v222 = vld [vmem:[%s166 + $0xbc] sm:$0xf]
      %v223 = vld [vmem:[%s166 + $0xc0] sm:$0xf]
      %v224 = vld [vmem:[%s166 + $0xc4] sm:$0xf]
      %v225 = vld [vmem:[%s166 + $0xc8] sm:$0xf]
      %v226 = vld [vmem:[%s166 + $0xcc] sm:$0xf]
      %v227 = vld [vmem:[%s166 + $0xd0] sm:$0xf]
      %v228 = vld [vmem:[%s166 + $0xd4] sm:$0xf]
      %v229 = vld [vmem:[%s166 + $0xd8] sm:$0xf]
      %v230 = vld [vmem:[%s166 + $0xdc] sm:$0xf]
      %v231 = vld [vmem:[%s166 + $0xe0] sm:$0xf]
      %v232 = vld [vmem:[%s166 + $0xe4] sm:$0xf]
      %v233 = vld [vmem:[%s166 + $0xe8] sm:$0xf]
      %v234 = vld [vmem:[%s166 + $0xec] sm:$0xf]
      %v235 = vld [vmem:[%s166 + $0xf0] sm:$0xf]
      %v236 = vld [vmem:[%s166 + $0xf4] sm:$0xf]
      %v237 = vld [vmem:[%s166 + $0xf8] sm:$0xf]
      %v238 = vld [vmem:[%s166 + $0xfc] sm:$0xf]
      %v239 = vld [vmem:[%s1] sm:$0xf]
      %v240 = vld [vmem:[%s1 + $0x4] sm:$0xf]
      %v241 = vld [vmem:[%s2] sm:$0x1]
      %v243 = vperm.slane %v241, 0
      %v309 = vunpack.c.l.b16 %v175
      %v310 = vunpack.c.l.b16 %v176
      %v311 = vunpack.c.l.b16 %v177
      %v312 = vunpack.c.l.b16 %v178
      %v313 = vunpack.c.l.b16 %v179
      %v314 = vunpack.c.l.b16 %v180
      %v315 = vunpack.c.l.b16 %v181
      %v316 = vunpack.c.l.b16 %v182
      %v317 = vunpack.c.l.b16 %v183
      %v318 = vunpack.c.l.b16 %v184
      %v319 = vunpack.c.l.b16 %v185
      %v320 = vunpack.c.l.b16 %v186
      %v321 = vunpack.c.l.b16 %v187
      %v322 = vunpack.c.l.b16 %v188
      %v323 = vunpack.c.l.b16 %v189
      %v324 = vunpack.c.l.b16 %v190
      %v325 = vunpack.c.l.b16 %v191
      %v326 = vunpack.c.l.b16 %v192
      %v327 = vunpack.c.l.b16 %v193
      %v328 = vunpack.c.l.b16 %v194
      %v329 = vunpack.c.l.b16 %v195
      %v330 = vunpack.c.l.b16 %v196
      %v331 = vunpack.c.l.b16 %v197
      %v332 = vunpack.c.l.b16 %v198
      %v333 = vunpack.c.l.b16 %v199
      %v334 = vunpack.c.l.b16 %v200
      %v335 = vunpack.c.l.b16 %v201
      %v336 = vunpack.c.l.b16 %v202
      %v337 = vunpack.c.l.b16 %v203
      %v338 = vunpack.c.l.b16 %v204
      %v339 = vunpack.c.l.b16 %v205
      %v340 = vunpack.c.l.b16 %v206
      %v341 = vunpack.c.l.b16 %v207
      %v342 = vunpack.c.l.b16 %v208
      %v343 = vunpack.c.l.b16 %v209
      %v344 = vunpack.c.l.b16 %v210
      %v345 = vunpack.c.l.b16 %v211
      %v346 = vunpack.c.l.b16 %v212
      %v347 = vunpack.c.l.b16 %v213
      %v348 = vunpack.c.l.b16 %v214
      %v349 = vunpack.c.l.b16 %v215
      %v350 = vunpack.c.l.b16 %v216
      %v351 = vunpack.c.l.b16 %v217
      %v352 = vunpack.c.l.b16 %v218
      %v353 = vunpack.c.l.b16 %v219
      %v354 = vunpack.c.l.b16 %v220
      %v355 = vunpack.c.l.b16 %v221
      %v356 = vunpack.c.l.b16 %v222
      %v357 = vunpack.c.l.b16 %v223
      %v358 = vunpack.c.l.b16 %v224
      %v359 = vunpack.c.l.b16 %v225
      %v360 = vunpack.c.l.b16 %v226
      %v361 = vunpack.c.l.b16 %v227
      %v362 = vunpack.c.l.b16 %v228
      %v363 = vunpack.c.l.b16 %v229
      %v364 = vunpack.c.l.b16 %v230
      %v365 = vunpack.c.l.b16 %v231
      %v366 = vunpack.c.l.b16 %v232
      %v367 = vunpack.c.l.b16 %v233
      %v368 = vunpack.c.l.b16 %v234
      %v369 = vunpack.c.l.b16 %v235
      %v370 = vunpack.c.l.b16 %v236
      %v371 = vunpack.c.l.b16 %v237
      %v372 = vunpack.c.l.b16 %v238
      %v373 = vpack.c.b16 %v310, %v309
      %v374 = vpack.c.b16 %v312, %v311
      %v375 = vpack.c.b16 %v314, %v313
      %v376 = vpack.c.b16 %v316, %v315
      %v377 = vpack.c.b16 %v318, %v317
      %v378 = vpack.c.b16 %v320, %v319
      %v379 = vpack.c.b16 %v322, %v321
      %v380 = vpack.c.b16 %v324, %v323
      %v381 = vpack.c.b16 %v326, %v325
      %v382 = vpack.c.b16 %v328, %v327
      %v383 = vpack.c.b16 %v330, %v329
      %v384 = vpack.c.b16 %v332, %v331
      %v385 = vpack.c.b16 %v334, %v333
      %v386 = vpack.c.b16 %v336, %v335
      %v387 = vpack.c.b16 %v338, %v337
      %v388 = vpack.c.b16 %v340, %v339
      %v389 = vpack.c.b16 %v342, %v341
      %v390 = vpack.c.b16 %v344, %v343
      %v391 = vpack.c.b16 %v346, %v345
      %v392 = vpack.c.b16 %v348, %v347
      %v393 = vpack.c.b16 %v350, %v349
      %v394 = vpack.c.b16 %v352, %v351
      %v395 = vpack.c.b16 %v354, %v353
      %v396 = vpack.c.b16 %v356, %v355
      %v397 = vpack.c.b16 %v358, %v357
      %v398 = vpack.c.b16 %v360, %v359
      %v399 = vpack.c.b16 %v362, %v361
      %v400 = vpack.c.b16 %v364, %v363
      %v401 = vpack.c.b16 %v366, %v365
      %v402 = vpack.c.b16 %v368, %v367
      %v403 = vpack.c.b16 %v370, %v369
      %v404 = vpack.c.b16 %v372, %v371
      %v407 = vunpack.c.l.b16 %v239
      %v408 = vunpack.c.l.b16 %v240
      %v409 = vpack.c.b16 %v408, %v407
      %vm411 = vcmask 130048
      %v413 = vsel %vm411, %v373, 0
      %v416 = vsel %vm411, %v374, 0
      %v419 = vsel %vm411, %v375, 0
      %v422 = vsel %vm411, %v376, 0
      %v425 = vsel %vm411, %v377, 0
      %v428 = vsel %vm411, %v378, 0
      %v431 = vsel %vm411, %v379, 0
      %v434 = vsel %vm411, %v380, 0
      %v437 = vsel %vm411, %v381, 0
      %v440 = vsel %vm411, %v382, 0
      %v443 = vsel %vm411, %v383, 0
      %v446 = vsel %vm411, %v384, 0
      %v449 = vsel %vm411, %v385, 0
      %v452 = vsel %vm411, %v386, 0
      %v455 = vsel %vm411, %v387, 0
      %v458 = vsel %vm411, %v388, 0
      %v461 = vsel %vm411, %v389, 0
      %v464 = vsel %vm411, %v390, 0
      %v467 = vsel %vm411, %v391, 0
      %v470 = vsel %vm411, %v392, 0
      %v473 = vsel %vm411, %v393, 0
      %v476 = vsel %vm411, %v394, 0
      %v479 = vsel %vm411, %v395, 0
      %v482 = vsel %vm411, %v396, 0
      %v485 = vsel %vm411, %v397, 0
      %v488 = vsel %vm411, %v398, 0
      %v491 = vsel %vm411, %v399, 0
      %v494 = vsel %vm411, %v400, 0
      %v497 = vsel %vm411, %v401, 0
      %v500 = vsel %vm411, %v402, 0
      %v503 = vsel %vm411, %v403, 0
      %v506 = vsel %vm411, %v404, 0
      %508 = vmatpush.bf16.msra.mxu0 0
      %509 = vmatpush.bf16.msra.mxu0 0
      %510 = vmatpush.bf16.msra.mxu0 0
      %511 = vmatpush.bf16.msra.mxu0 0
      %512 = vmatpush.bf16.msra.mxu0 0
      %513 = vmatpush.bf16.msra.mxu0 0
      %514 = vmatpush.bf16.msra.mxu0 0
      %515 = vmatpush.bf16.msra.mxu0 %v409
      %516 = vmatmul.bf16.gmra.mxu0 %v413
      %v517 = vpop.f32.mrf.mxu0
      %v518 = vadd.f32 %v243, %v517
      %v519 = vpop.f32.mrf.mxu0
      %v520 = vadd.f32 %v243, %v519
      %521 = vmatmul.bf16.gmra.mxu0 %v416
      %v522 = vpop.f32.mrf.mxu0
      %v523 = vadd.f32 %v243, %v522
      %v524 = vpop.f32.mrf.mxu0
      %v525 = vadd.f32 %v243, %v524
      %526 = vmatmul.bf16.gmra.mxu0 %v419
      %v527 = vpop.f32.mrf.mxu0
      %v528 = vadd.f32 %v243, %v527
      %v529 = vpop.f32.mrf.mxu0
      %v530 = vadd.f32 %v243, %v529
      %531 = vmatmul.bf16.gmra.mxu0 %v422
      %v532 = vpop.f32.mrf.mxu0
      %v533 = vadd.f32 %v243, %v532
      %v534 = vpop.f32.mrf.mxu0
      %v535 = vadd.f32 %v243, %v534
      %536 = vmatmul.bf16.gmra.mxu0 %v425
      %v537 = vpop.f32.mrf.mxu0
      %v538 = vadd.f32 %v243, %v537
      %v539 = vpop.f32.mrf.mxu0
      %v540 = vadd.f32 %v243, %v539
      %541 = vmatmul.bf16.gmra.mxu0 %v428
      %v542 = vpop.f32.mrf.mxu0
      %v543 = vadd.f32 %v243, %v542
      %v544 = vpop.f32.mrf.mxu0
      %v545 = vadd.f32 %v243, %v544
      %546 = vmatmul.bf16.gmra.mxu0 %v431
      %v547 = vpop.f32.mrf.mxu0
      %v548 = vadd.f32 %v243, %v547
      %v549 = vpop.f32.mrf.mxu0
      %v550 = vadd.f32 %v243, %v549
      %551 = vmatmul.bf16.gmra.mxu0 %v434
      %v552 = vpop.f32.mrf.mxu0
      %v553 = vadd.f32 %v243, %v552
      %v554 = vpop.f32.mrf.mxu0
      %v555 = vadd.f32 %v243, %v554
      %556 = vmatmul.bf16.gmra.mxu0 %v437
      %v557 = vpop.f32.mrf.mxu0
      %v558 = vadd.f32 %v243, %v557
      %v559 = vpop.f32.mrf.mxu0
      %v560 = vadd.f32 %v243, %v559
      %561 = vmatmul.bf16.gmra.mxu0 %v440
      %v562 = vpop.f32.mrf.mxu0
      %v563 = vadd.f32 %v243, %v562
      %v564 = vpop.f32.mrf.mxu0
      %v565 = vadd.f32 %v243, %v564
      %566 = vmatmul.bf16.gmra.mxu0 %v443
      %v567 = vpop.f32.mrf.mxu0
      %v568 = vadd.f32 %v243, %v567
      %v569 = vpop.f32.mrf.mxu0
      %v570 = vadd.f32 %v243, %v569
      %571 = vmatmul.bf16.gmra.mxu0 %v446
      %v572 = vpop.f32.mrf.mxu0
      %v573 = vadd.f32 %v243, %v572
      %v574 = vpop.f32.mrf.mxu0
      %v575 = vadd.f32 %v243, %v574
      %576 = vmatmul.bf16.gmra.mxu0 %v449
      %v577 = vpop.f32.mrf.mxu0
      %v578 = vadd.f32 %v243, %v577
      %v579 = vpop.f32.mrf.mxu0
      %v580 = vadd.f32 %v243, %v579
      %581 = vmatmul.bf16.gmra.mxu0 %v452
      %v582 = vpop.f32.mrf.mxu0
      %v583 = vadd.f32 %v243, %v582
      %v584 = vpop.f32.mrf.mxu0
      %v585 = vadd.f32 %v243, %v584
      %586 = vmatmul.bf16.gmra.mxu0 %v455
      %v587 = vpop.f32.mrf.mxu0
      %v588 = vadd.f32 %v243, %v587
      %v589 = vpop.f32.mrf.mxu0
      %v590 = vadd.f32 %v243, %v589
      %591 = vmatmul.bf16.gmra.mxu0 %v458
      %v592 = vpop.f32.mrf.mxu0
      %v593 = vadd.f32 %v243, %v592
      %v594 = vpop.f32.mrf.mxu0
      %v595 = vadd.f32 %v243, %v594
      %596 = vmatmul.bf16.gmra.mxu0 %v461
      %v597 = vpop.f32.mrf.mxu0
      %v598 = vadd.f32 %v243, %v597
      %v599 = vpop.f32.mrf.mxu0
      %v600 = vadd.f32 %v243, %v599
      %601 = vmatmul.bf16.gmra.mxu0 %v464
      %v602 = vpop.f32.mrf.mxu0
      %v603 = vadd.f32 %v243, %v602
      %v604 = vpop.f32.mrf.mxu0
      %v605 = vadd.f32 %v243, %v604
      %606 = vmatmul.bf16.gmra.mxu0 %v467
      %v607 = vpop.f32.mrf.mxu0
      %v608 = vadd.f32 %v243, %v607
      %v609 = vpop.f32.mrf.mxu0
      %v610 = vadd.f32 %v243, %v609
      %611 = vmatmul.bf16.gmra.mxu0 %v470
      %v612 = vpop.f32.mrf.mxu0
      %v613 = vadd.f32 %v243, %v612
      %v614 = vpop.f32.mrf.mxu0
      %v615 = vadd.f32 %v243, %v614
      %616 = vmatmul.bf16.gmra.mxu0 %v473
      %v617 = vpop.f32.mrf.mxu0
      %v618 = vadd.f32 %v243, %v617
      %v619 = vpop.f32.mrf.mxu0
      %v620 = vadd.f32 %v243, %v619
      %621 = vmatmul.bf16.gmra.mxu0 %v476
      %v622 = vpop.f32.mrf.mxu0
      %v623 = vadd.f32 %v243, %v622
      %v624 = vpop.f32.mrf.mxu0
      %v625 = vadd.f32 %v243, %v624
      %626 = vmatmul.bf16.gmra.mxu0 %v479
      %v627 = vpop.f32.mrf.mxu0
      %v628 = vadd.f32 %v243, %v627
      %v629 = vpop.f32.mrf.mxu0
      %v630 = vadd.f32 %v243, %v629
      %631 = vmatmul.bf16.gmra.mxu0 %v482
      %v632 = vpop.f32.mrf.mxu0
      %v633 = vadd.f32 %v243, %v632
      %v634 = vpop.f32.mrf.mxu0
      %v635 = vadd.f32 %v243, %v634
      %636 = vmatmul.bf16.gmra.mxu0 %v485
      %v637 = vpop.f32.mrf.mxu0
      %v638 = vadd.f32 %v243, %v637
      %v639 = vpop.f32.mrf.mxu0
      %v640 = vadd.f32 %v243, %v639
      %641 = vmatmul.bf16.gmra.mxu0 %v488
      %v642 = vpop.f32.mrf.mxu0
      %v643 = vadd.f32 %v243, %v642
      %v644 = vpop.f32.mrf.mxu0
      %v645 = vadd.f32 %v243, %v644
      %646 = vmatmul.bf16.gmra.mxu0 %v491
      %v647 = vpop.f32.mrf.mxu0
      %v648 = vadd.f32 %v243, %v647
      %v649 = vpop.f32.mrf.mxu0
      %v650 = vadd.f32 %v243, %v649
      %651 = vmatmul.bf16.gmra.mxu0 %v494
      %v652 = vpop.f32.mrf.mxu0
      %v653 = vadd.f32 %v243, %v652
      %v654 = vpop.f32.mrf.mxu0
      %v655 = vadd.f32 %v243, %v654
      %656 = vmatmul.bf16.gmra.mxu0 %v497
      %v657 = vpop.f32.mrf.mxu0
      %v658 = vadd.f32 %v243, %v657
      %v659 = vpop.f32.mrf.mxu0
      %v660 = vadd.f32 %v243, %v659
      %661 = vmatmul.bf16.gmra.mxu0 %v500
      %v662 = vpop.f32.mrf.mxu0
      %v663 = vadd.f32 %v243, %v662
      %v664 = vpop.f32.mrf.mxu0
      %v665 = vadd.f32 %v243, %v664
      %666 = vmatmul.bf16.gmra.mxu0 %v503
      %v667 = vpop.f32.mrf.mxu0
      %v668 = vadd.f32 %v243, %v667
      %v669 = vpop.f32.mrf.mxu0
      %v670 = vadd.f32 %v243, %v669
      %671 = vmatmul.bf16.gmra.mxu0 %v506
      %v672 = vpop.f32.mrf.mxu0
      %v673 = vadd.f32 %v243, %v672
      %v674 = vpop.f32.mrf.mxu0
      %v675 = vadd.f32 %v243, %v674
      %676 = vdwg.mxu0
      %v677 = vpack.c.bf16 %v518, %v518
      %v678 = vpack.c.bf16 %v520, %v520
      %v679 = vpack.c.bf16 %v523, %v523
      %v680 = vpack.c.bf16 %v525, %v525
      %v681 = vpack.c.bf16 %v528, %v528
      %v682 = vpack.c.bf16 %v530, %v530
      %v683 = vpack.c.bf16 %v533, %v533
      %v684 = vpack.c.bf16 %v535, %v535
      %v685 = vpack.c.bf16 %v538, %v538
      %v686 = vpack.c.bf16 %v540, %v540
      %v687 = vpack.c.bf16 %v543, %v543
      %v688 = vpack.c.bf16 %v545, %v545
      %v689 = vpack.c.bf16 %v548, %v548
      %v690 = vpack.c.bf16 %v550, %v550
      %v691 = vpack.c.bf16 %v553, %v553
      %v692 = vpack.c.bf16 %v555, %v555
      %v693 = vpack.c.bf16 %v558, %v558
      %v694 = vpack.c.bf16 %v560, %v560
      %v695 = vpack.c.bf16 %v563, %v563
      %v696 = vpack.c.bf16 %v565, %v565
      %v697 = vpack.c.bf16 %v568, %v568
      %v698 = vpack.c.bf16 %v570, %v570
      %v699 = vpack.c.bf16 %v573, %v573
      %v700 = vpack.c.bf16 %v575, %v575
      %v701 = vpack.c.bf16 %v578, %v578
      %v702 = vpack.c.bf16 %v580, %v580
      %v703 = vpack.c.bf16 %v583, %v583
      %v704 = vpack.c.bf16 %v585, %v585
      %v705 = vpack.c.bf16 %v588, %v588
      %v706 = vpack.c.bf16 %v590, %v590
      %v707 = vpack.c.bf16 %v593, %v593
      %v708 = vpack.c.bf16 %v595, %v595
      %v709 = vpack.c.bf16 %v598, %v598
      %v710 = vpack.c.bf16 %v600, %v600
      %v711 = vpack.c.bf16 %v603, %v603
      %v712 = vpack.c.bf16 %v605, %v605
      %v713 = vpack.c.bf16 %v608, %v608
      %v714 = vpack.c.bf16 %v610, %v610
      %v715 = vpack.c.bf16 %v613, %v613
      %v716 = vpack.c.bf16 %v615, %v615
      %v717 = vpack.c.bf16 %v618, %v618
      %v718 = vpack.c.bf16 %v620, %v620
      %v719 = vpack.c.bf16 %v623, %v623
      %v720 = vpack.c.bf16 %v625, %v625
      %v721 = vpack.c.bf16 %v628, %v628
      %v722 = vpack.c.bf16 %v630, %v630
      %v723 = vpack.c.bf16 %v633, %v633
      %v724 = vpack.c.bf16 %v635, %v635
      %v725 = vpack.c.bf16 %v638, %v638
      %v726 = vpack.c.bf16 %v640, %v640
      %v727 = vpack.c.bf16 %v643, %v643
      %v728 = vpack.c.bf16 %v645, %v645
      %v729 = vpack.c.bf16 %v648, %v648
      %v730 = vpack.c.bf16 %v650, %v650
      %v731 = vpack.c.bf16 %v653, %v653
      %v732 = vpack.c.bf16 %v655, %v655
      %v733 = vpack.c.bf16 %v658, %v658
      %v734 = vpack.c.bf16 %v660, %v660
      %v735 = vpack.c.bf16 %v663, %v663
      %v736 = vpack.c.bf16 %v665, %v665
      %v737 = vpack.c.bf16 %v668, %v668
      %v738 = vpack.c.bf16 %v670, %v670
      %v739 = vpack.c.bf16 %v673, %v673
      %v740 = vpack.c.bf16 %v675, %v675
      %vm741 = vcmask 27648
      %742 = vst.msk [vmem:[%s172] sm:$0xf] %vm741, %v677
      %743 = vst.msk [vmem:[%s172 + $0x4] sm:$0xf] %vm741, %v678
      %744 = vst.msk [vmem:[%s172 + $0x8] sm:$0xf] %vm741, %v679
      %745 = vst.msk [vmem:[%s172 + $0xc] sm:$0xf] %vm741, %v680
      %746 = vst.msk [vmem:[%s172 + $0x10] sm:$0xf] %vm741, %v681
      %747 = vst.msk [vmem:[%s172 + $0x14] sm:$0xf] %vm741, %v682
      %748 = vst.msk [vmem:[%s172 + $0x18] sm:$0xf] %vm741, %v683
      %749 = vst.msk [vmem:[%s172 + $0x1c] sm:$0xf] %vm741, %v684
      %750 = vst.msk [vmem:[%s172 + $0x20] sm:$0xf] %vm741, %v685
      %751 = vst.msk [vmem:[%s172 + $0x24] sm:$0xf] %vm741, %v686
      %752 = vst.msk [vmem:[%s172 + $0x28] sm:$0xf] %vm741, %v687
      %753 = vst.msk [vmem:[%s172 + $0x2c] sm:$0xf] %vm741, %v688
      %754 = vst.msk [vmem:[%s172 + $0x30] sm:$0xf] %vm741, %v689
      %755 = vst.msk [vmem:[%s172 + $0x34] sm:$0xf] %vm741, %v690
      %756 = vst.msk [vmem:[%s172 + $0x38] sm:$0xf] %vm741, %v691
      %757 = vst.msk [vmem:[%s172 + $0x3c] sm:$0xf] %vm741, %v692
      %758 = vst.msk [vmem:[%s172 + $0x40] sm:$0xf] %vm741, %v693
      %759 = vst.msk [vmem:[%s172 + $0x44] sm:$0xf] %vm741, %v694
      %760 = vst.msk [vmem:[%s172 + $0x48] sm:$0xf] %vm741, %v695
      %761 = vst.msk [vmem:[%s172 + $0x4c] sm:$0xf] %vm741, %v696
      %762 = vst.msk [vmem:[%s172 + $0x50] sm:$0xf] %vm741, %v697
      %763 = vst.msk [vmem:[%s172 + $0x54] sm:$0xf] %vm741, %v698
      %764 = vst.msk [vmem:[%s172 + $0x58] sm:$0xf] %vm741, %v699
      %765 = vst.msk [vmem:[%s172 + $0x5c] sm:$0xf] %vm741, %v700
      %766 = vst.msk [vmem:[%s172 + $0x60] sm:$0xf] %vm741, %v701
      %767 = vst.msk [vmem:[%s172 + $0x64] sm:$0xf] %vm741, %v702
      %768 = vst.msk [vmem:[%s172 + $0x68] sm:$0xf] %vm741, %v703
      %769 = vst.msk [vmem:[%s172 + $0x6c] sm:$0xf] %vm741, %v704
      %770 = vst.msk [vmem:[%s172 + $0x70] sm:$0xf] %vm741, %v705
      %771 = vst.msk [vmem:[%s172 + $0x74] sm:$0xf] %vm741, %v706
      %772 = vst.msk [vmem:[%s172 + $0x78] sm:$0xf] %vm741, %v707
      %773 = vst.msk [vmem:[%s172 + $0x7c] sm:$0xf] %vm741, %v708
      %774 = vst.msk [vmem:[%s172 + $0x80] sm:$0xf] %vm741, %v709
      %775 = vst.msk [vmem:[%s172 + $0x84] sm:$0xf] %vm741, %v710
      %776 = vst.msk [vmem:[%s172 + $0x88] sm:$0xf] %vm741, %v711
      %777 = vst.msk [vmem:[%s172 + $0x8c] sm:$0xf] %vm741, %v712
      %778 = vst.msk [vmem:[%s172 + $0x90] sm:$0xf] %vm741, %v713
      %779 = vst.msk [vmem:[%s172 + $0x94] sm:$0xf] %vm741, %v714
      %780 = vst.msk [vmem:[%s172 + $0x98] sm:$0xf] %vm741, %v715
      %781 = vst.msk [vmem:[%s172 + $0x9c] sm:$0xf] %vm741, %v716
      %782 = vst.msk [vmem:[%s172 + $0xa0] sm:$0xf] %vm741, %v717
      %783 = vst.msk [vmem:[%s172 + $0xa4] sm:$0xf] %vm741, %v718
      %784 = vst.msk [vmem:[%s172 + $0xa8] sm:$0xf] %vm741, %v719
      %785 = vst.msk [vmem:[%s172 + $0xac] sm:$0xf] %vm741, %v720
      %786 = vst.msk [vmem:[%s172 + $0xb0] sm:$0xf] %vm741, %v721
      %787 = vst.msk [vmem:[%s172 + $0xb4] sm:$0xf] %vm741, %v722
      %788 = vst.msk [vmem:[%s172 + $0xb8] sm:$0xf] %vm741, %v723
      %789 = vst.msk [vmem:[%s172 + $0xbc] sm:$0xf] %vm741, %v724
      %790 = vst.msk [vmem:[%s172 + $0xc0] sm:$0xf] %vm741, %v725
      %791 = vst.msk [vmem:[%s172 + $0xc4] sm:$0xf] %vm741, %v726
      %792 = vst.msk [vmem:[%s172 + $0xc8] sm:$0xf] %vm741, %v727
      %793 = vst.msk [vmem:[%s172 + $0xcc] sm:$0xf] %vm741, %v728
      %794 = vst.msk [vmem:[%s172 + $0xd0] sm:$0xf] %vm741, %v729
      %795 = vst.msk [vmem:[%s172 + $0xd4] sm:$0xf] %vm741, %v730
      %796 = vst.msk [vmem:[%s172 + $0xd8] sm:$0xf] %vm741, %v731
      %797 = vst.msk [vmem:[%s172 + $0xdc] sm:$0xf] %vm741, %v732
      %798 = vst.msk [vmem:[%s172 + $0xe0] sm:$0xf] %vm741, %v733
      %799 = vst.msk [vmem:[%s172 + $0xe4] sm:$0xf] %vm741, %v734
      %800 = vst.msk [vmem:[%s172 + $0xe8] sm:$0xf] %vm741, %v735
      %801 = vst.msk [vmem:[%s172 + $0xec] sm:$0xf] %vm741, %v736
      %802 = vst.msk [vmem:[%s172 + $0xf0] sm:$0xf] %vm741, %v737
      %803 = vst.msk [vmem:[%s172 + $0xf4] sm:$0xf] %vm741, %v738
      %804 = vst.msk [vmem:[%s172 + $0xf8] sm:$0xf] %vm741, %v739
      %805 = vst.msk [vmem:[%s172 + $0xfc] sm:$0xf] %vm741, %v740
      %s806 = smul.u32 64, %s14
      %p807 = scmp.lt.s32.totalorder %s806, 255
      %s808 = scalar_select %p807, %s806, 255
      %s809 = smul.addr %s808, 4
      %s810 = scalar_lea.vmem %s3, %s809
      // Predicated region
      $region33: #{esa_forward.11} parent=31 // pred_check
        %p811 = pneg %p100
      $region34: #{esa_forward.11} parent=31 // pred_check_branch
        %813 = sbr.rel (%p811) target = $region36
      $region35: #{esa_forward.11} parent=31 // pred_region
        %s814 = smul.u32 64, %s14
      $region36: #{esa_forward.11} parent=31 // pred_fallthru
        _
    $region32: #{esa_forward.11} parent=5 // pred_fallthru
      _
    %p815 = scmp.le.s32.totalorder 2, %s9
    // Predicated region
    $region37: #{esa_forward.11} parent=5 // pred_check
      %p816 = pneg %p815
    $region38: #{esa_forward.11} parent=5 // pred_check_branch
      %818 = sbr.rel (%p816) target = $region40
    $region39: #{esa_forward.11} parent=5 // pred_region
      %s819 = ssub.s32 %s9, 2
      // Predicated region
      $region41: #{esa_forward.11} parent=39 // pred_check
        %p820 = pneg %p106
      $region42: #{esa_forward.11} parent=39 // pred_check_branch
        %822 = sbr.rel (%p820) target = $region44
      $region43: #{esa_forward.11} parent=39 // pred_region
        %s823 = smul.u32 64, %s15
        %p824 = scmp.lt.s32.totalorder %s823, 255
        %s825 = scalar_select %p824, %s823, 255
        %s826 = smul.addr %s825, 4
        %s827 = scalar_lea.vmem %s3, %s826
      $region44: #{esa_forward.11} parent=39 // pred_fallthru
        _
    $region40: #{esa_forward.11} parent=5 // pred_fallthru
      _
  $region6: #{esa_forward.11} parent=0 // loop_footer
    %s13 = sadd.s32 1, %s9
  $region7: #{esa_forward.11} parent=0 // loop_footer_branch
    %8 = sbr.rel target = $region3
  $region8: #{esa_forward.11} parent=0 // loop_exit
    _

// kernel: esa_forward.12
$region0: #{esa_forward.12}
  #allocation0 [shape = 'u32[]', space=smem, size = 0x4, offset = 0x4, fixed_abs, tag = 'smem constant byte address 0x4 - core index']
  #allocation1 [shape = 'u32[72,128]{1,0:T(1,128)}', space=vmem, size = 0x9000, scoped, tag = 'internal scratch']
  %s0 = inlined_call_operand.vmem [shape: bf16[456,36], index: 0, kind: input, shape index: {}]
  %s1 = inlined_call_operand.vmem [shape: bf16[36,4], index: 1, kind: input, shape index: {}]
  %s2 = inlined_call_operand.vmem [shape: f32[1,4], index: 2, kind: input, shape index: {}]
  %s3 = inlined_call_operand.vmem [shape: bf16[456,4], index: 3, kind: output, shape index: {}]
  %s4 = sld [smem:[#allocation0]]
  $region22: #{esa_forward.12} parent=0
    _
  %s6 = ssub.s32 1, %s4
  %s7 = scalar_select 0, %s6, %s4
  // Predicated region
  $region2: #{esa_forward.12} parent=0 // pred_check
    _
  $region3: #{esa_forward.12} parent=0 // pred_check_branch
    %9 = sbr.rel (0) target = $region5
  $region4: #{esa_forward.12} parent=0 // pred_region
    _
  $region5: #{esa_forward.12} parent=0 // pred_fallthru
    _
  // Predicated region
  $region6: #{esa_forward.12} parent=0 // pred_check
    _
  $region7: #{esa_forward.12} parent=0 // pred_check_branch
    %11 = sbr.rel (0) target = $region9
  $region8: #{esa_forward.12} parent=0 // pred_region
    _
  $region9: #{esa_forward.12} parent=0 // pred_fallthru
    _
  // Predicated region
  $region10: #{esa_forward.12} parent=0 // pred_check
    _
  $region11: #{esa_forward.12} parent=0 // pred_check_branch
    %13 = sbr.rel (0) target = $region13
  $region12: #{esa_forward.12} parent=0 // pred_region
    _
  $region13: #{esa_forward.12} parent=0 // pred_fallthru
    _
  %v15 = vld [vmem:[%s0] sm:$0xf]
  %v16 = vld [vmem:[%s0 + $0x4] sm:$0xf]
  %v17 = vld [vmem:[%s0 + $0x8] sm:$0xf]
  %v18 = vld [vmem:[%s0 + $0xc] sm:$0xf]
  %v19 = vld [vmem:[%s0 + $0x10] sm:$0xf]
  %v20 = vld [vmem:[%s0 + $0x14] sm:$0xf]
  %v21 = vld [vmem:[%s0 + $0x18] sm:$0xf]
  %v22 = vld [vmem:[%s0 + $0x1c] sm:$0xf]
  %v23 = vld [vmem:[%s0 + $0x20] sm:$0xf]
  %v24 = vld [vmem:[%s0 + $0x24] sm:$0xf]
  %v25 = vld [vmem:[%s0 + $0x28] sm:$0xf]
  %v26 = vld [vmem:[%s0 + $0x2c] sm:$0xf]
  %v27 = vld [vmem:[%s0 + $0x30] sm:$0xf]
  %v28 = vld [vmem:[%s0 + $0x34] sm:$0xf]
  %v29 = vld [vmem:[%s0 + $0x38] sm:$0xf]
  %v30 = vld [vmem:[%s0 + $0x3c] sm:$0xf]
  %v31 = vld [vmem:[%s0 + $0x40] sm:$0xf]
  %v32 = vld [vmem:[%s0 + $0x44] sm:$0xf]
  %v33 = vld [vmem:[%s0 + $0x48] sm:$0xf]
  %v34 = vld [vmem:[%s0 + $0x4c] sm:$0xf]
  %v35 = vld [vmem:[%s0 + $0x50] sm:$0xf]
  %v36 = vld [vmem:[%s0 + $0x54] sm:$0xf]
  %v37 = vld [vmem:[%s0 + $0x58] sm:$0xf]
  %v38 = vld [vmem:[%s0 + $0x5c] sm:$0xf]
  %v39 = vld [vmem:[%s0 + $0x60] sm:$0xf]
  %v40 = vld [vmem:[%s0 + $0x64] sm:$0xf]
  %v41 = vld [vmem:[%s0 + $0x68] sm:$0xf]
  %v42 = vld [vmem:[%s0 + $0x6c] sm:$0xf]
  %v43 = vld [vmem:[%s0 + $0x70] sm:$0xf]
  %v44 = vld [vmem:[%s0 + $0x74] sm:$0xf]
  %v45 = vld [vmem:[%s0 + $0x78] sm:$0xf]
  %v46 = vld [vmem:[%s0 + $0x7c] sm:$0xf]
  %v47 = vld [vmem:[%s0 + $0x80] sm:$0xf]
  %v48 = vld [vmem:[%s0 + $0x84] sm:$0xf]
  %v49 = vld [vmem:[%s0 + $0x88] sm:$0xf]
  %v50 = vld [vmem:[%s0 + $0x8c] sm:$0xf]
  %v51 = vld [vmem:[%s0 + $0x90] sm:$0xf]
  %v52 = vld [vmem:[%s0 + $0x94] sm:$0xf]
  %v53 = vld [vmem:[%s0 + $0x98] sm:$0xf]
  %v54 = vld [vmem:[%s0 + $0x9c] sm:$0xf]
  %v55 = vld [vmem:[%s0 + $0xa0] sm:$0xf]
  %v56 = vld [vmem:[%s0 + $0xa4] sm:$0xf]
  %v57 = vld [vmem:[%s0 + $0xa8] sm:$0xf]
  %v58 = vld [vmem:[%s0 + $0xac] sm:$0xf]
  %v59 = vld [vmem:[%s0 + $0xb0] sm:$0xf]
  %v60 = vld [vmem:[%s0 + $0xb4] sm:$0xf]
  %v61 = vld [vmem:[%s0 + $0xb8] sm:$0xf]
  %v62 = vld [vmem:[%s0 + $0xbc] sm:$0xf]
  %v63 = vld [vmem:[%s0 + $0xc0] sm:$0xf]
  %v64 = vld [vmem:[%s0 + $0xc4] sm:$0xf]
  %v65 = vld [vmem:[%s0 + $0xc8] sm:$0xf]
  %v66 = vld [vmem:[%s0 + $0xcc] sm:$0xf]
  %v67 = vld [vmem:[%s0 + $0xd0] sm:$0xf]
  %v68 = vld [vmem:[%s0 + $0xd4] sm:$0xf]
  %v69 = vld [vmem:[%s0 + $0xd8] sm:$0xf]
  %v70 = vld [vmem:[%s0 + $0xdc] sm:$0xf]
  %v71 = vld [vmem:[%s0 + $0xe0] sm:$0xf]
  %v72 = vld [vmem:[%s1] sm:$0xf]
  %v73 = vld [vmem:[%s1 + $0x4] sm:$0xf]
  %v74 = vld [vmem:[%s1 + $0x8] sm:$0xf]
  %v75 = vld [vmem:[%s1 + $0xc] sm:$0xf]
  %v76 = vld [vmem:[%s1 + $0x10] sm:$0x3]
  %v77 = vld [vmem:[%s2] sm:$0x1]
  %v79 = vperm.slane %v77, 0
  %v138 = vunpack.c.l.b16 %v15
  %v139 = vunpack.c.l.b16 %v16
  %v140 = vunpack.c.l.b16 %v17
  %v141 = vunpack.c.l.b16 %v18
  %v142 = vunpack.c.l.b16 %v19
  %v143 = vunpack.c.l.b16 %v20
  %v144 = vunpack.c.l.b16 %v21
  %v145 = vunpack.c.l.b16 %v22
  %v146 = vunpack.c.l.b16 %v23
  %v147 = vunpack.c.l.b16 %v24
  %v148 = vunpack.c.l.b16 %v25
  %v149 = vunpack.c.l.b16 %v26
  %v150 = vunpack.c.l.b16 %v27
  %v151 = vunpack.c.l.b16 %v28
  %v152 = vunpack.c.l.b16 %v29
  %v153 = vunpack.c.l.b16 %v30
  %v154 = vunpack.c.l.b16 %v31
  %v155 = vunpack.c.l.b16 %v32
  %v156 = vunpack.c.l.b16 %v33
  %v157 = vunpack.c.l.b16 %v34
  %v158 = vunpack.c.l.b16 %v35
  %v159 = vunpack.c.l.b16 %v36
  %v160 = vunpack.c.l.b16 %v37
  %v161 = vunpack.c.l.b16 %v38
  %v162 = vunpack.c.l.b16 %v39
  %v163 = vunpack.c.l.b16 %v40
  %v164 = vunpack.c.l.b16 %v41
  %v165 = vunpack.c.l.b16 %v42
  %v166 = vunpack.c.l.b16 %v43
  %v167 = vunpack.c.l.b16 %v44
  %v168 = vunpack.c.l.b16 %v45
  %v169 = vunpack.c.l.b16 %v46
  %v170 = vunpack.c.l.b16 %v47
  %v171 = vunpack.c.l.b16 %v48
  %v172 = vunpack.c.l.b16 %v49
  %v173 = vunpack.c.l.b16 %v50
  %v174 = vunpack.c.l.b16 %v51
  %v175 = vunpack.c.l.b16 %v52
  %v176 = vunpack.c.l.b16 %v53
  %v177 = vunpack.c.l.b16 %v54
  %v178 = vunpack.c.l.b16 %v55
  %v179 = vunpack.c.l.b16 %v56
  %v180 = vunpack.c.l.b16 %v57
  %v181 = vunpack.c.l.b16 %v58
  %v182 = vunpack.c.l.b16 %v59
  %v183 = vunpack.c.l.b16 %v60
  %v184 = vunpack.c.l.b16 %v61
  %v185 = vunpack.c.l.b16 %v62
  %v186 = vunpack.c.l.b16 %v63
  %v187 = vunpack.c.l.b16 %v64
  %v188 = vunpack.c.l.b16 %v65
  %v189 = vunpack.c.l.b16 %v66
  %v190 = vunpack.c.l.b16 %v67
  %v191 = vunpack.c.l.b16 %v68
  %v192 = vunpack.c.l.b16 %v69
  %v193 = vunpack.c.l.b16 %v70
  %v194 = vunpack.c.l.b16 %v71
  %v195 = vpack.c.b16 %v139, %v138
  %v196 = vpack.c.b16 %v141, %v140
  %v197 = vpack.c.b16 %v143, %v142
  %v198 = vpack.c.b16 %v145, %v144
  %v199 = vpack.c.b16 %v147, %v146
  %v200 = vpack.c.b16 %v149, %v148
  %v201 = vpack.c.b16 %v151, %v150
  %v202 = vpack.c.b16 %v153, %v152
  %v203 = vpack.c.b16 %v155, %v154
  %v204 = vpack.c.b16 %v157, %v156
  %v205 = vpack.c.b16 %v159, %v158
  %v206 = vpack.c.b16 %v161, %v160
  %v207 = vpack.c.b16 %v163, %v162
  %v208 = vpack.c.b16 %v165, %v164
  %v209 = vpack.c.b16 %v167, %v166
  %v210 = vpack.c.b16 %v169, %v168
  %v211 = vpack.c.b16 %v171, %v170
  %v212 = vpack.c.b16 %v173, %v172
  %v213 = vpack.c.b16 %v175, %v174
  %v214 = vpack.c.b16 %v177, %v176
  %v215 = vpack.c.b16 %v179, %v178
  %v216 = vpack.c.b16 %v181, %v180
  %v217 = vpack.c.b16 %v183, %v182
  %v218 = vpack.c.b16 %v185, %v184
  %v219 = vpack.c.b16 %v187, %v186
  %v220 = vpack.c.b16 %v189, %v188
  %v221 = vpack.c.b16 %v191, %v190
  %v222 = vpack.c.b16 %v193, %v192
  %v223 = vpack.c.b16 %v194, %v194
  %v229 = vunpack.c.l.b16 %v72
  %v230 = vunpack.c.l.b16 %v73
  %v231 = vunpack.c.l.b16 %v74
  %v232 = vunpack.c.l.b16 %v75
  %v233 = vunpack.c.l.b16 %v76
  %v234 = vpack.c.b16 %v230, %v229
  %v235 = vpack.c.b16 %v232, %v231
  %v236 = vpack.c.b16 %v233, %v233
  %vm239 = vcmask 293888
  %v241 = vsel %vm239, %v195, 0
  %v244 = vsel %vm239, %v196, 0
  %v247 = vsel %vm239, %v197, 0
  %v250 = vsel %vm239, %v198, 0
  %v253 = vsel %vm239, %v199, 0
  %v256 = vsel %vm239, %v200, 0
  %v259 = vsel %vm239, %v201, 0
  %v262 = vsel %vm239, %v202, 0
  %v265 = vsel %vm239, %v203, 0
  %v268 = vsel %vm239, %v204, 0
  %v271 = vsel %vm239, %v205, 0
  %v274 = vsel %vm239, %v206, 0
  %v277 = vsel %vm239, %v207, 0
  %v280 = vsel %vm239, %v208, 0
  %v283 = vsel %vm239, %v209, 0
  %v286 = vsel %vm239, %v210, 0
  %v289 = vsel %vm239, %v211, 0
  %v292 = vsel %vm239, %v212, 0
  %v295 = vsel %vm239, %v213, 0
  %v298 = vsel %vm239, %v214, 0
  %v301 = vsel %vm239, %v215, 0
  %v304 = vsel %vm239, %v216, 0
  %v307 = vsel %vm239, %v217, 0
  %v310 = vsel %vm239, %v218, 0
  %v313 = vsel %vm239, %v219, 0
  %v316 = vsel %vm239, %v220, 0
  %v319 = vsel %vm239, %v221, 0
  %v322 = vsel %vm239, %v222, 0
  %v325 = vsel %vm239, %v223, 0
  %vm327 = vcmask 1041408
  %v329 = vsel %vm327, %v236, 0
  %331 = vmatpush.bf16.msra.mxu0 0
  %332 = vmatpush.bf16.msra.mxu0 0
  %333 = vmatpush.bf16.msra.mxu0 0
  %334 = vmatpush.bf16.msra.mxu0 0
  %335 = vmatpush.bf16.msra.mxu0 0
  %336 = vmatpush.bf16.msra.mxu0 %v329
  %337 = vmatpush.bf16.msra.mxu0 %v235
  %338 = vmatpush.bf16.msra.mxu0 %v234
  %339 = vmatmul.bf16.gmra.mxu0 %v241
  %v340 = vpop.f32.mrf.mxu0
  %v341 = vadd.f32 %v79, %v340
  %v342 = vpop.f32.mrf.mxu0
  %v343 = vadd.f32 %v79, %v342
  %344 = vmatmul.bf16.gmra.mxu0 %v244
  %v345 = vpop.f32.mrf.mxu0
  %v346 = vadd.f32 %v79, %v345
  %v347 = vpop.f32.mrf.mxu0
  %v348 = vadd.f32 %v79, %v347
  %349 = vmatmul.bf16.gmra.mxu0 %v247
  %v350 = vpop.f32.mrf.mxu0
  %v351 = vadd.f32 %v79, %v350
  %v352 = vpop.f32.mrf.mxu0
  %v353 = vadd.f32 %v79, %v352
  %354 = vmatmul.bf16.gmra.mxu0 %v250
  %v355 = vpop.f32.mrf.mxu0
  %v356 = vadd.f32 %v79, %v355
  %v357 = vpop.f32.mrf.mxu0
  %v358 = vadd.f32 %v79, %v357
  %359 = vmatmul.bf16.gmra.mxu0 %v253
  %v360 = vpop.f32.mrf.mxu0
  %v361 = vadd.f32 %v79, %v360
  %v362 = vpop.f32.mrf.mxu0
  %v363 = vadd.f32 %v79, %v362
  %364 = vmatmul.bf16.gmra.mxu0 %v256
  %v365 = vpop.f32.mrf.mxu0
  %v366 = vadd.f32 %v79, %v365
  %v367 = vpop.f32.mrf.mxu0
  %v368 = vadd.f32 %v79, %v367
  %369 = vmatmul.bf16.gmra.mxu0 %v259
  %v370 = vpop.f32.mrf.mxu0
  %v371 = vadd.f32 %v79, %v370
  %v372 = vpop.f32.mrf.mxu0
  %v373 = vadd.f32 %v79, %v372
  %374 = vmatmul.bf16.gmra.mxu0 %v262
  %v375 = vpop.f32.mrf.mxu0
  %v376 = vadd.f32 %v79, %v375
  %v377 = vpop.f32.mrf.mxu0
  %v378 = vadd.f32 %v79, %v377
  %379 = vmatmul.bf16.gmra.mxu0 %v265
  %v380 = vpop.f32.mrf.mxu0
  %v381 = vadd.f32 %v79, %v380
  %v382 = vpop.f32.mrf.mxu0
  %v383 = vadd.f32 %v79, %v382
  %384 = vmatmul.bf16.gmra.mxu0 %v268
  %v385 = vpop.f32.mrf.mxu0
  %v386 = vadd.f32 %v79, %v385
  %v387 = vpop.f32.mrf.mxu0
  %v388 = vadd.f32 %v79, %v387
  %389 = vmatmul.bf16.gmra.mxu0 %v271
  %v390 = vpop.f32.mrf.mxu0
  %v391 = vadd.f32 %v79, %v390
  %v392 = vpop.f32.mrf.mxu0
  %v393 = vadd.f32 %v79, %v392
  %394 = vmatmul.bf16.gmra.mxu0 %v274
  %v395 = vpop.f32.mrf.mxu0
  %v396 = vadd.f32 %v79, %v395
  %v397 = vpop.f32.mrf.mxu0
  %v398 = vadd.f32 %v79, %v397
  %399 = vmatmul.bf16.gmra.mxu0 %v277
  %v400 = vpop.f32.mrf.mxu0
  %v401 = vadd.f32 %v79, %v400
  %v402 = vpop.f32.mrf.mxu0
  %v403 = vadd.f32 %v79, %v402
  %404 = vmatmul.bf16.gmra.mxu0 %v280
  %v405 = vpop.f32.mrf.mxu0
  %v406 = vadd.f32 %v79, %v405
  %v407 = vpop.f32.mrf.mxu0
  %v408 = vadd.f32 %v79, %v407
  %409 = vmatmul.bf16.gmra.mxu0 %v283
  %v410 = vpop.f32.mrf.mxu0
  %v411 = vadd.f32 %v79, %v410
  %v412 = vpop.f32.mrf.mxu0
  %v413 = vadd.f32 %v79, %v412
  %414 = vmatmul.bf16.gmra.mxu0 %v286
  %v415 = vpop.f32.mrf.mxu0
  %v416 = vadd.f32 %v79, %v415
  %v417 = vpop.f32.mrf.mxu0
  %v418 = vadd.f32 %v79, %v417
  %419 = vmatmul.bf16.gmra.mxu0 %v289
  %v420 = vpop.f32.mrf.mxu0
  %v421 = vadd.f32 %v79, %v420
  %v422 = vpop.f32.mrf.mxu0
  %v423 = vadd.f32 %v79, %v422
  %424 = vmatmul.bf16.gmra.mxu0 %v292
  %v425 = vpop.f32.mrf.mxu0
  %v426 = vadd.f32 %v79, %v425
  %v427 = vpop.f32.mrf.mxu0
  %v428 = vadd.f32 %v79, %v427
  %429 = vmatmul.bf16.gmra.mxu0 %v295
  %v430 = vpop.f32.mrf.mxu0
  %v431 = vadd.f32 %v79, %v430
  %v432 = vpop.f32.mrf.mxu0
  %v433 = vadd.f32 %v79, %v432
  %434 = vmatmul.bf16.gmra.mxu0 %v298
  %v435 = vpop.f32.mrf.mxu0
  %v436 = vadd.f32 %v79, %v435
  %v437 = vpop.f32.mrf.mxu0
  %v438 = vadd.f32 %v79, %v437
  %439 = vmatmul.bf16.gmra.mxu0 %v301
  %v440 = vpop.f32.mrf.mxu0
  %v441 = vadd.f32 %v79, %v440
  %v442 = vpop.f32.mrf.mxu0
  %v443 = vadd.f32 %v79, %v442
  %444 = vmatmul.bf16.gmra.mxu0 %v304
  %v445 = vpop.f32.mrf.mxu0
  %v446 = vadd.f32 %v79, %v445
  %v447 = vpop.f32.mrf.mxu0
  %v448 = vadd.f32 %v79, %v447
  %449 = vmatmul.bf16.gmra.mxu0 %v307
  %v450 = vpop.f32.mrf.mxu0
  %v451 = vadd.f32 %v79, %v450
  %v452 = vpop.f32.mrf.mxu0
  %v453 = vadd.f32 %v79, %v452
  %454 = vmatmul.bf16.gmra.mxu0 %v310
  %v455 = vpop.f32.mrf.mxu0
  %v456 = vadd.f32 %v79, %v455
  %v457 = vpop.f32.mrf.mxu0
  %v458 = vadd.f32 %v79, %v457
  %459 = vmatmul.bf16.gmra.mxu0 %v313
  %v460 = vpop.f32.mrf.mxu0
  %v461 = vadd.f32 %v79, %v460
  %v462 = vpop.f32.mrf.mxu0
  %v463 = vadd.f32 %v79, %v462
  %464 = vmatmul.bf16.gmra.mxu0 %v316
  %v465 = vpop.f32.mrf.mxu0
  %v466 = vadd.f32 %v79, %v465
  %v467 = vpop.f32.mrf.mxu0
  %v468 = vadd.f32 %v79, %v467
  %469 = vmatmul.bf16.gmra.mxu0 %v319
  %v470 = vpop.f32.mrf.mxu0
  %v471 = vadd.f32 %v79, %v470
  %v472 = vpop.f32.mrf.mxu0
  %v473 = vadd.f32 %v79, %v472
  %474 = vmatmul.bf16.gmra.mxu0 %v322
  %v475 = vpop.f32.mrf.mxu0
  %v476 = vadd.f32 %v79, %v475
  %v477 = vpop.f32.mrf.mxu0
  %v478 = vadd.f32 %v79, %v477
  %479 = vmatmul.bf16.gmra.mxu0 %v325
  %v480 = vpop.f32.mrf.mxu0
  %v481 = vadd.f32 %v79, %v480
  %v482 = vpop.f32.mrf.mxu0
  %483 = vdwg.mxu0
  %v484 = vpack.c.bf16 %v341, %v341
  %v485 = vpack.c.bf16 %v343, %v343
  %v486 = vpack.c.bf16 %v346, %v346
  %v487 = vpack.c.bf16 %v348, %v348
  %v488 = vpack.c.bf16 %v351, %v351
  %v489 = vpack.c.bf16 %v353, %v353
  %v490 = vpack.c.bf16 %v356, %v356
  %v491 = vpack.c.bf16 %v358, %v358
  %v492 = vpack.c.bf16 %v361, %v361
  %v493 = vpack.c.bf16 %v363, %v363
  %v494 = vpack.c.bf16 %v366, %v366
  %v495 = vpack.c.bf16 %v368, %v368
  %v496 = vpack.c.bf16 %v371, %v371
  %v497 = vpack.c.bf16 %v373, %v373
  %v498 = vpack.c.bf16 %v376, %v376
  %v499 = vpack.c.bf16 %v378, %v378
  %v500 = vpack.c.bf16 %v381, %v381
  %v501 = vpack.c.bf16 %v383, %v383
  %v502 = vpack.c.bf16 %v386, %v386
  %v503 = vpack.c.bf16 %v388, %v388
  %v504 = vpack.c.bf16 %v391, %v391
  %v505 = vpack.c.bf16 %v393, %v393
  %v506 = vpack.c.bf16 %v396, %v396
  %v507 = vpack.c.bf16 %v398, %v398
  %v508 = vpack.c.bf16 %v401, %v401
  %v509 = vpack.c.bf16 %v403, %v403
  %v510 = vpack.c.bf16 %v406, %v406
  %v511 = vpack.c.bf16 %v408, %v408
  %v512 = vpack.c.bf16 %v411, %v411
  %v513 = vpack.c.bf16 %v413, %v413
  %v514 = vpack.c.bf16 %v416, %v416
  %v515 = vpack.c.bf16 %v418, %v418
  %v516 = vpack.c.bf16 %v421, %v421
  %v517 = vpack.c.bf16 %v423, %v423
  %v518 = vpack.c.bf16 %v426, %v426
  %v519 = vpack.c.bf16 %v428, %v428
  %v520 = vpack.c.bf16 %v431, %v431
  %v521 = vpack.c.bf16 %v433, %v433
  %v522 = vpack.c.bf16 %v436, %v436
  %v523 = vpack.c.bf16 %v438, %v438
  %v524 = vpack.c.bf16 %v441, %v441
  %v525 = vpack.c.bf16 %v443, %v443
  %v526 = vpack.c.bf16 %v446, %v446
  %v527 = vpack.c.bf16 %v448, %v448
  %v528 = vpack.c.bf16 %v451, %v451
  %v529 = vpack.c.bf16 %v453, %v453
  %v530 = vpack.c.bf16 %v456, %v456
  %v531 = vpack.c.bf16 %v458, %v458
  %v532 = vpack.c.bf16 %v461, %v461
  %v533 = vpack.c.bf16 %v463, %v463
  %v534 = vpack.c.bf16 %v466, %v466
  %v535 = vpack.c.bf16 %v468, %v468
  %v536 = vpack.c.bf16 %v471, %v471
  %v537 = vpack.c.bf16 %v473, %v473
  %v538 = vpack.c.bf16 %v476, %v476
  %v539 = vpack.c.bf16 %v478, %v478
  %v540 = vpack.c.bf16 %v481, %v481
  %vm541 = vcmask 27648
  %542 = vst.msk [vmem:[%s3] sm:$0xf] %vm541, %v484
  %543 = vst.msk [vmem:[%s3 + $0x4] sm:$0xf] %vm541, %v485
  %544 = vst.msk [vmem:[%s3 + $0x8] sm:$0xf] %vm541, %v486
  %545 = vst.msk [vmem:[%s3 + $0xc] sm:$0xf] %vm541, %v487
  %546 = vst.msk [vmem:[%s3 + $0x10] sm:$0xf] %vm541, %v488
  %547 = vst.msk [vmem:[%s3 + $0x14] sm:$0xf] %vm541, %v489
  %548 = vst.msk [vmem:[%s3 + $0x18] sm:$0xf] %vm541, %v490
  %549 = vst.msk [vmem:[%s3 + $0x1c] sm:$0xf] %vm541, %v491
  %550 = vst.msk [vmem:[%s3 + $0x20] sm:$0xf] %vm541, %v492
  %551 = vst.msk [vmem:[%s3 + $0x24] sm:$0xf] %vm541, %v493
  %552 = vst.msk [vmem:[%s3 + $0x28] sm:$0xf] %vm541, %v494
  %553 = vst.msk [vmem:[%s3 + $0x2c] sm:$0xf] %vm541, %v495
  %554 = vst.msk [vmem:[%s3 + $0x30] sm:$0xf] %vm541, %v496
  %555 = vst.msk [vmem:[%s3 + $0x34] sm:$0xf] %vm541, %v497
  %556 = vst.msk [vmem:[%s3 + $0x38] sm:$0xf] %vm541, %v498
  %557 = vst.msk [vmem:[%s3 + $0x3c] sm:$0xf] %vm541, %v499
  %558 = vst.msk [vmem:[%s3 + $0x40] sm:$0xf] %vm541, %v500
  %559 = vst.msk [vmem:[%s3 + $0x44] sm:$0xf] %vm541, %v501
  %560 = vst.msk [vmem:[%s3 + $0x48] sm:$0xf] %vm541, %v502
  %561 = vst.msk [vmem:[%s3 + $0x4c] sm:$0xf] %vm541, %v503
  %562 = vst.msk [vmem:[%s3 + $0x50] sm:$0xf] %vm541, %v504
  %563 = vst.msk [vmem:[%s3 + $0x54] sm:$0xf] %vm541, %v505
  %564 = vst.msk [vmem:[%s3 + $0x58] sm:$0xf] %vm541, %v506
  %565 = vst.msk [vmem:[%s3 + $0x5c] sm:$0xf] %vm541, %v507
  %566 = vst.msk [vmem:[%s3 + $0x60] sm:$0xf] %vm541, %v508
  %567 = vst.msk [vmem:[%s3 + $0x64] sm:$0xf] %vm541, %v509
  %568 = vst.msk [vmem:[%s3 + $0x68] sm:$0xf] %vm541, %v510
  %569 = vst.msk [vmem:[%s3 + $0x6c] sm:$0xf] %vm541, %v511
  %570 = vst.msk [vmem:[%s3 + $0x70] sm:$0xf] %vm541, %v512
  %571 = vst.msk [vmem:[%s3 + $0x74] sm:$0xf] %vm541, %v513
  %572 = vst.msk [vmem:[%s3 + $0x78] sm:$0xf] %vm541, %v514
  %573 = vst.msk [vmem:[%s3 + $0x7c] sm:$0xf] %vm541, %v515
  %574 = vst.msk [vmem:[%s3 + $0x80] sm:$0xf] %vm541, %v516
  %575 = vst.msk [vmem:[%s3 + $0x84] sm:$0xf] %vm541, %v517
  %576 = vst.msk [vmem:[%s3 + $0x88] sm:$0xf] %vm541, %v518
  %577 = vst.msk [vmem:[%s3 + $0x8c] sm:$0xf] %vm541, %v519
  %578 = vst.msk [vmem:[%s3 + $0x90] sm:$0xf] %vm541, %v520
  %579 = vst.msk [vmem:[%s3 + $0x94] sm:$0xf] %vm541, %v521
  %580 = vst.msk [vmem:[%s3 + $0x98] sm:$0xf] %vm541, %v522
  %581 = vst.msk [vmem:[%s3 + $0x9c] sm:$0xf] %vm541, %v523
  %582 = vst.msk [vmem:[%s3 + $0xa0] sm:$0xf] %vm541, %v524
  %583 = vst.msk [vmem:[%s3 + $0xa4] sm:$0xf] %vm541, %v525
  %584 = vst.msk [vmem:[%s3 + $0xa8] sm:$0xf] %vm541, %v526
  %585 = vst.msk [vmem:[%s3 + $0xac] sm:$0xf] %vm541, %v527
  %586 = vst.msk [vmem:[%s3 + $0xb0] sm:$0xf] %vm541, %v528
  %587 = vst.msk [vmem:[%s3 + $0xb4] sm:$0xf] %vm541, %v529
  %588 = vst.msk [vmem:[%s3 + $0xb8] sm:$0xf] %vm541, %v530
  %589 = vst.msk [vmem:[%s3 + $0xbc] sm:$0xf] %vm541, %v531
  %590 = vst.msk [vmem:[%s3 + $0xc0] sm:$0xf] %vm541, %v532
  %591 = vst.msk [vmem:[%s3 + $0xc4] sm:$0xf] %vm541, %v533
  %592 = vst.msk [vmem:[%s3 + $0xc8] sm:$0xf] %vm541, %v534
  %593 = vst.msk [vmem:[%s3 + $0xcc] sm:$0xf] %vm541, %v535
  %594 = vst.msk [vmem:[%s3 + $0xd0] sm:$0xf] %vm541, %v536
  %595 = vst.msk [vmem:[%s3 + $0xd4] sm:$0xf] %vm541, %v537
  %596 = vst.msk [vmem:[%s3 + $0xd8] sm:$0xf] %vm541, %v538
  %597 = vst.msk [vmem:[%s3 + $0xdc] sm:$0xf] %vm541, %v539
  %598 = vst.msk [vmem:[%s3 + $0xe0] sm:$0xf] %vm541, %v540
  // Predicated region
  $region14: #{esa_forward.12} parent=0 // pred_check
    _
  $region15: #{esa_forward.12} parent=0 // pred_check_branch
    %600 = sbr.rel (0) target = $region17
  $region16: #{esa_forward.12} parent=0 // pred_region
    _
  $region17: #{esa_forward.12} parent=0 // pred_fallthru
    _
  // Predicated region
  $region18: #{esa_forward.12} parent=0 // pred_check
    _
  $region19: #{esa_forward.12} parent=0 // pred_check_branch
    %602 = sbr.rel (0) target = $region21
  $region20: #{esa_forward.12} parent=0 // pred_region
    _
  $region21: #{esa_forward.12} parent=0 // pred_fallthru
    _

// kernel: esa_forward.13
$region0: #{esa_forward.13}
  #allocation0 [shape = 'u32[]', space=smem, size = 0x4, offset = 0x4, fixed_abs, tag = 'smem constant byte address 0x4 - core index']
  #allocation1 [shape = 'u32[72,128]{1,0:T(1,128)}', space=vmem, size = 0x9000, scoped, tag = 'internal scratch']
  %s0 = inlined_call_operand.vmem [shape: bf16[7,6,60], index: 0, kind: input, shape index: {}]
  %s1 = inlined_call_operand.vmem [shape: bf16[6,60], index: 1, kind: output, shape index: {}]
  %s2 = sld [smem:[#allocation0]]
  $region14: #{esa_forward.13} parent=0
    _
  %s4 = ssub.s32 1, %s2
  %s5 = scalar_select 0, %s4, %s2
  // Predicated region
  $region2: #{esa_forward.13} parent=0 // pred_check
    _
  $region3: #{esa_forward.13} parent=0 // pred_check_branch
    %7 = sbr.rel (0) target = $region5
  $region4: #{esa_forward.13} parent=0 // pred_region
    _
  $region5: #{esa_forward.13} parent=0 // pred_fallthru
    _
  %v8 = vld [vmem:[%s0] sm:$0x7]
  %s9 = scalar_lea.vmem %s0, 4
  %v10 = vld [vmem:[%s9] sm:$0x7]
  %v11 = vunpack.c.l.bf16 %v8
  %v12 = vunpack.c.l.bf16 %v10
  %v13 = vmax.f32 %v11, %v12
  %v14 = vpack.c.bf16 %v13, %v13
  %s15 = scalar_lea.vmem %s0, 8
  %v16 = vld [vmem:[%s15] sm:$0x7]
  %v17 = vunpack.c.l.bf16 %v14
  %v18 = vunpack.c.l.bf16 %v16
  %v19 = vmax.f32 %v17, %v18
  %v20 = vpack.c.bf16 %v19, %v19
  %s21 = scalar_lea.vmem %s0, 12
  %v22 = vld [vmem:[%s21] sm:$0x7]
  %v23 = vunpack.c.l.bf16 %v20
  %v24 = vunpack.c.l.bf16 %v22
  %v25 = vmax.f32 %v23, %v24
  %v26 = vpack.c.bf16 %v25, %v25
  %s27 = scalar_lea.vmem %s0, 16
  %v28 = vld [vmem:[%s27] sm:$0x7]
  %v29 = vunpack.c.l.bf16 %v26
  %v30 = vunpack.c.l.bf16 %v28
  %v31 = vmax.f32 %v29, %v30
  %v32 = vpack.c.bf16 %v31, %v31
  %s33 = scalar_lea.vmem %s0, 20
  %v34 = vld [vmem:[%s33] sm:$0x7]
  %v35 = vunpack.c.l.bf16 %v32
  %v36 = vunpack.c.l.bf16 %v34
  %v37 = vmax.f32 %v35, %v36
  %v38 = vpack.c.bf16 %v37, %v37
  %s39 = scalar_lea.vmem %s0, 24
  %v40 = vld [vmem:[%s39] sm:$0x7]
  %v41 = vunpack.c.l.bf16 %v38
  %v42 = vunpack.c.l.bf16 %v40
  %v43 = vmax.f32 %v41, %v42
  %v44 = vpack.c.bf16 %v43, %v43
  %vm45 = vcmask 485376
  %46 = vst.msk [vmem:[%s1] sm:$0x7] %vm45, %v44
  // Predicated region
  $region6: #{esa_forward.13} parent=0 // pred_check
    _
  $region7: #{esa_forward.13} parent=0 // pred_check_branch
    %48 = sbr.rel (0) target = $region9
  $region8: #{esa_forward.13} parent=0 // pred_region
    _
  $region9: #{esa_forward.13} parent=0 // pred_fallthru
    _
  // Predicated region
  $region10: #{esa_forward.13} parent=0 // pred_check
    _
  $region11: #{esa_forward.13} parent=0 // pred_check_branch
    %50 = sbr.rel (0) target = $region13
  $region12: #{esa_forward.13} parent=0 // pred_region
    _
  $region13: #{esa_forward.13} parent=0 // pred_fallthru
    _

// kernel: esa_forward.14
$region0: #{esa_forward.14}
  #allocation0 [shape = 'u32[]', space=smem, size = 0x4, offset = 0x4, fixed_abs, tag = 'smem constant byte address 0x4 - core index']
  #allocation1 [shape = 'u32[72,128]{1,0:T(1,128)}', space=vmem, size = 0x9000, scoped, tag = 'internal scratch']
  %s0 = inlined_call_operand.vmem [shape: bf16[7,6,12], index: 0, kind: input, shape index: {}]
  %s1 = inlined_call_operand.vmem [shape: bf16[6,12], index: 1, kind: output, shape index: {}]
  %s2 = sld [smem:[#allocation0]]
  $region14: #{esa_forward.14} parent=0
    _
  %s4 = ssub.s32 1, %s2
  %s5 = scalar_select 0, %s4, %s2
  // Predicated region
  $region2: #{esa_forward.14} parent=0 // pred_check
    _
  $region3: #{esa_forward.14} parent=0 // pred_check_branch
    %7 = sbr.rel (0) target = $region5
  $region4: #{esa_forward.14} parent=0 // pred_region
    _
  $region5: #{esa_forward.14} parent=0 // pred_fallthru
    _
  %v8 = vld [vmem:[%s0] sm:$0x7]
  %s9 = scalar_lea.vmem %s0, 4
  %v10 = vld [vmem:[%s9] sm:$0x7]
  %v11 = vunpack.c.l.bf16 %v8
  %v12 = vunpack.c.l.bf16 %v10
  %v13 = vmax.f32 %v11, %v12
  %v14 = vpack.c.bf16 %v13, %v13
  %s15 = scalar_lea.vmem %s0, 8
  %v16 = vld [vmem:[%s15] sm:$0x7]
  %v17 = vunpack.c.l.bf16 %v14
  %v18 = vunpack.c.l.bf16 %v16
  %v19 = vmax.f32 %v17, %v18
  %v20 = vpack.c.bf16 %v19, %v19
  %s21 = scalar_lea.vmem %s0, 12
  %v22 = vld [vmem:[%s21] sm:$0x7]
  %v23 = vunpack.c.l.bf16 %v20
  %v24 = vunpack.c.l.bf16 %v22
  %v25 = vmax.f32 %v23, %v24
  %v26 = vpack.c.bf16 %v25, %v25
  %s27 = scalar_lea.vmem %s0, 16
  %v28 = vld [vmem:[%s27] sm:$0x7]
  %v29 = vunpack.c.l.bf16 %v26
  %v30 = vunpack.c.l.bf16 %v28
  %v31 = vmax.f32 %v29, %v30
  %v32 = vpack.c.bf16 %v31, %v31
  %s33 = scalar_lea.vmem %s0, 20
  %v34 = vld [vmem:[%s33] sm:$0x7]
  %v35 = vunpack.c.l.bf16 %v32
  %v36 = vunpack.c.l.bf16 %v34
  %v37 = vmax.f32 %v35, %v36
  %v38 = vpack.c.bf16 %v37, %v37
  %s39 = scalar_lea.vmem %s0, 24
  %v40 = vld [vmem:[%s39] sm:$0x7]
  %v41 = vunpack.c.l.bf16 %v38
  %v42 = vunpack.c.l.bf16 %v40
  %v43 = vmax.f32 %v41, %v42
  %v44 = vpack.c.bf16 %v43, %v43
  %vm45 = vcmask 92160
  %46 = vst.msk [vmem:[%s1] sm:$0x7] %vm45, %v44
  // Predicated region
  $region6: #{esa_forward.14} parent=0 // pred_check
    _
  $region7: #{esa_forward.14} parent=0 // pred_check_branch
    %48 = sbr.rel (0) target = $region9
  $region8: #{esa_forward.14} parent=0 // pred_region
    _
  $region9: #{esa_forward.14} parent=0 // pred_fallthru
    _
  // Predicated region
  $region10: #{esa_forward.14} parent=0 // pred_check
    _
  $region11: #{esa_forward.14} parent=0 // pred_check_branch
    %50 = sbr.rel (0) target = $region13
  $region12: #{esa_forward.14} parent=0 // pred_region
    _
  $region13: #{esa_forward.14} parent=0 // pred_fallthru
    _

// kernel: esa_forward.15
$region0: #{esa_forward.15}
  #allocation0 [shape = 'u32[]', space=smem, size = 0x4, offset = 0x4, fixed_abs, tag = 'smem constant byte address 0x4 - core index']
  #allocation1 [shape = 'u32[72,128]{1,0:T(1,128)}', space=vmem, size = 0x9000, scoped, tag = 'internal scratch']
  %s0 = inlined_call_operand.vmem [shape: bf16[24,36], index: 0, kind: input, shape index: {}]
  %s1 = inlined_call_operand.vmem [shape: bf16[36,4], index: 1, kind: input, shape index: {}]
  %s2 = inlined_call_operand.vmem [shape: f32[1,4], index: 2, kind: input, shape index: {}]
  %s3 = inlined_call_operand.vmem [shape: bf16[24,4], index: 3, kind: output, shape index: {}]
  %s4 = sld [smem:[#allocation0]]
  $region22: #{esa_forward.15} parent=0
    _
  %s6 = ssub.s32 1, %s4
  %s7 = scalar_select 0, %s6, %s4
  // Predicated region
  $region2: #{esa_forward.15} parent=0 // pred_check
    _
  $region3: #{esa_forward.15} parent=0 // pred_check_branch
    %9 = sbr.rel (0) target = $region5
  $region4: #{esa_forward.15} parent=0 // pred_region
    _
  $region5: #{esa_forward.15} parent=0 // pred_fallthru
    _
  // Predicated region
  $region6: #{esa_forward.15} parent=0 // pred_check
    _
  $region7: #{esa_forward.15} parent=0 // pred_check_branch
    %11 = sbr.rel (0) target = $region9
  $region8: #{esa_forward.15} parent=0 // pred_region
    _
  $region9: #{esa_forward.15} parent=0 // pred_fallthru
    _
  // Predicated region
  $region10: #{esa_forward.15} parent=0 // pred_check
    _
  $region11: #{esa_forward.15} parent=0 // pred_check_branch
    %13 = sbr.rel (0) target = $region13
  $region12: #{esa_forward.15} parent=0 // pred_region
    _
  $region13: #{esa_forward.15} parent=0 // pred_fallthru
    _
  %v15 = vld [vmem:[%s0] sm:$0xf]
  %v16 = vld [vmem:[%s0 + $0x4] sm:$0xf]
  %v17 = vld [vmem:[%s0 + $0x8] sm:$0xf]
  %v18 = vld [vmem:[%s1] sm:$0xf]
  %v19 = vld [vmem:[%s1 + $0x4] sm:$0xf]
  %v20 = vld [vmem:[%s1 + $0x8] sm:$0xf]
  %v21 = vld [vmem:[%s1 + $0xc] sm:$0xf]
  %v22 = vld [vmem:[%s1 + $0x10] sm:$0x3]
  %v23 = vld [vmem:[%s2] sm:$0x1]
  %v25 = vperm.slane %v23, 0
  %v30 = vunpack.c.l.b16 %v15
  %v31 = vunpack.c.l.b16 %v16
  %v32 = vunpack.c.l.b16 %v17
  %v33 = vpack.c.b16 %v31, %v30
  %v34 = vpack.c.b16 %v32, %v32
  %v40 = vunpack.c.l.b16 %v18
  %v41 = vunpack.c.l.b16 %v19
  %v42 = vunpack.c.l.b16 %v20
  %v43 = vunpack.c.l.b16 %v21
  %v44 = vunpack.c.l.b16 %v22
  %v45 = vpack.c.b16 %v41, %v40
  %v46 = vpack.c.b16 %v43, %v42
  %v47 = vpack.c.b16 %v44, %v44
  %vm50 = vcmask 293888
  %v52 = vsel %vm50, %v33, 0
  %v55 = vsel %vm50, %v34, 0
  %vm57 = vcmask 1041408
  %v59 = vsel %vm57, %v47, 0
  %61 = vmatpush.bf16.msra.mxu0 0
  %62 = vmatpush.bf16.msra.mxu0 0
  %63 = vmatpush.bf16.msra.mxu0 0
  %64 = vmatpush.bf16.msra.mxu0 0
  %65 = vmatpush.bf16.msra.mxu0 0
  %66 = vmatpush.bf16.msra.mxu0 %v59
  %67 = vmatpush.bf16.msra.mxu0 %v46
  %68 = vmatpush.bf16.msra.mxu0 %v45
  %69 = vmatmul.bf16.gmra.mxu0 %v52
  %v70 = vpop.f32.mrf.mxu0
  %v71 = vadd.f32 %v25, %v70
  %v72 = vpop.f32.mrf.mxu0
  %v73 = vadd.f32 %v25, %v72
  %74 = vmatmul.bf16.gmra.mxu0 %v55
  %v75 = vpop.f32.mrf.mxu0
  %v76 = vadd.f32 %v25, %v75
  %v77 = vpop.f32.mrf.mxu0
  %78 = vdwg.mxu0
  %v79 = vmax.f32 %v71, 0.0
  %v80 = vmax.f32 %v73, 0.0
  %v81 = vmax.f32 %v76, 0.0
  %v82 = vpack.c.bf16 %v79, %v79
  %v83 = vpack.c.bf16 %v80, %v80
  %v84 = vpack.c.bf16 %v81, %v81
  %vm85 = vcmask 27648
  %86 = vst.msk [vmem:[%s3] sm:$0xf] %vm85, %v82
  %87 = vst.msk [vmem:[%s3 + $0x4] sm:$0xf] %vm85, %v83
  %88 = vst.msk [vmem:[%s3 + $0x8] sm:$0xf] %vm85, %v84
  // Predicated region
  $region14: #{esa_forward.15} parent=0 // pred_check
    _
  $region15: #{esa_forward.15} parent=0 // pred_check_branch
    %90 = sbr.rel (0) target = $region17
  $region16: #{esa_forward.15} parent=0 // pred_region
    _
  $region17: #{esa_forward.15} parent=0 // pred_fallthru
    _
  // Predicated region
  $region18: #{esa_forward.15} parent=0 // pred_check
    _
  $region19: #{esa_forward.15} parent=0 // pred_check_branch
    %92 = sbr.rel (0) target = $region21
  $region20: #{esa_forward.15} parent=0 // pred_region
    _
  $region21: #{esa_forward.15} parent=0 // pred_fallthru
    _

// kernel: esa_forward.17
$region0: #{esa_forward.17}
  #allocation0 [shape = 'u32[]', space=smem, size = 0x4, offset = 0x4, fixed_abs, tag = 'smem constant byte address 0x4 - core index']
  #allocation1 [shape = 'u32[72,128]{1,0:T(1,128)}', space=vmem, size = 0x9000, scoped, tag = 'internal scratch']
  %s0 = inlined_call_operand.vmem [shape: bf16[24,36], index: 0, kind: input, shape index: {}]
  %s1 = inlined_call_operand.vmem [shape: bf16[36,4], index: 1, kind: input, shape index: {}]
  %s2 = inlined_call_operand.vmem [shape: f32[1,4], index: 2, kind: input, shape index: {}]
  %s3 = inlined_call_operand.vmem [shape: bf16[24,4], index: 3, kind: output, shape index: {}]
  %s4 = sld [smem:[#allocation0]]
  $region22: #{esa_forward.17} parent=0
    _
  %s6 = ssub.s32 1, %s4
  %s7 = scalar_select 0, %s6, %s4
  // Predicated region
  $region2: #{esa_forward.17} parent=0 // pred_check
    _
  $region3: #{esa_forward.17} parent=0 // pred_check_branch
    %9 = sbr.rel (0) target = $region5
  $region4: #{esa_forward.17} parent=0 // pred_region
    _
  $region5: #{esa_forward.17} parent=0 // pred_fallthru
    _
  // Predicated region
  $region6: #{esa_forward.17} parent=0 // pred_check
    _
  $region7: #{esa_forward.17} parent=0 // pred_check_branch
    %11 = sbr.rel (0) target = $region9
  $region8: #{esa_forward.17} parent=0 // pred_region
    _
  $region9: #{esa_forward.17} parent=0 // pred_fallthru
    _
  // Predicated region
  $region10: #{esa_forward.17} parent=0 // pred_check
    _
  $region11: #{esa_forward.17} parent=0 // pred_check_branch
    %13 = sbr.rel (0) target = $region13
  $region12: #{esa_forward.17} parent=0 // pred_region
    _
  $region13: #{esa_forward.17} parent=0 // pred_fallthru
    _
  %v15 = vld [vmem:[%s0] sm:$0xf]
  %v16 = vld [vmem:[%s0 + $0x4] sm:$0xf]
  %v17 = vld [vmem:[%s0 + $0x8] sm:$0xf]
  %v18 = vld [vmem:[%s1] sm:$0xf]
  %v19 = vld [vmem:[%s1 + $0x4] sm:$0xf]
  %v20 = vld [vmem:[%s1 + $0x8] sm:$0xf]
  %v21 = vld [vmem:[%s1 + $0xc] sm:$0xf]
  %v22 = vld [vmem:[%s1 + $0x10] sm:$0x3]
  %v23 = vld [vmem:[%s2] sm:$0x1]
  %v25 = vperm.slane %v23, 0
  %v30 = vunpack.c.l.b16 %v15
  %v31 = vunpack.c.l.b16 %v16
  %v32 = vunpack.c.l.b16 %v17
  %v33 = vpack.c.b16 %v31, %v30
  %v34 = vpack.c.b16 %v32, %v32
  %v40 = vunpack.c.l.b16 %v18
  %v41 = vunpack.c.l.b16 %v19
  %v42 = vunpack.c.l.b16 %v20
  %v43 = vunpack.c.l.b16 %v21
  %v44 = vunpack.c.l.b16 %v22
  %v45 = vpack.c.b16 %v41, %v40
  %v46 = vpack.c.b16 %v43, %v42
  %v47 = vpack.c.b16 %v44, %v44
  %vm50 = vcmask 293888
  %v52 = vsel %vm50, %v33, 0
  %v55 = vsel %vm50, %v34, 0
  %vm57 = vcmask 1041408
  %v59 = vsel %vm57, %v47, 0
  %61 = vmatpush.bf16.msra.mxu0 0
  %62 = vmatpush.bf16.msra.mxu0 0
  %63 = vmatpush.bf16.msra.mxu0 0
  %64 = vmatpush.bf16.msra.mxu0 0
  %65 = vmatpush.bf16.msra.mxu0 0
  %66 = vmatpush.bf16.msra.mxu0 %v59
  %67 = vmatpush.bf16.msra.mxu0 %v46
  %68 = vmatpush.bf16.msra.mxu0 %v45
  %69 = vmatmul.bf16.gmra.mxu0 %v52
  %v70 = vpop.f32.mrf.mxu0
  %v71 = vadd.f32 %v25, %v70
  %v72 = vpop.f32.mrf.mxu0
  %v73 = vadd.f32 %v25, %v72
  %74 = vmatmul.bf16.gmra.mxu0 %v55
  %v75 = vpop.f32.mrf.mxu0
  %v76 = vadd.f32 %v25, %v75
  %v77 = vpop.f32.mrf.mxu0
  %78 = vdwg.mxu0
  %v79 = vpack.c.bf16 %v71, %v71
  %v80 = vpack.c.bf16 %v73, %v73
  %v81 = vpack.c.bf16 %v76, %v76
  %vm82 = vcmask 27648
  %83 = vst.msk [vmem:[%s3] sm:$0xf] %vm82, %v79
  %84 = vst.msk [vmem:[%s3 + $0x4] sm:$0xf] %vm82, %v80
  %85 = vst.msk [vmem:[%s3 + $0x8] sm:$0xf] %vm82, %v81
  // Predicated region
  $region14: #{esa_forward.17} parent=0 // pred_check
    _
  $region15: #{esa_forward.17} parent=0 // pred_check_branch
    %87 = sbr.rel (0) target = $region17
  $region16: #{esa_forward.17} parent=0 // pred_region
    _
  $region17: #{esa_forward.17} parent=0 // pred_fallthru
    _
  // Predicated region
  $region18: #{esa_forward.17} parent=0 // pred_check
    _
  $region19: #{esa_forward.17} parent=0 // pred_check_branch
    %89 = sbr.rel (0) target = $region21
  $region20: #{esa_forward.17} parent=0 // pred_region
    _
  $region21: #{esa_forward.17} parent=0 // pred_fallthru
    _

// kernel: esa_forward.18
$region0: #{esa_forward.18}
  #allocation0 [shape = 'u32[]', space=smem, size = 0x4, offset = 0x4, fixed_abs, tag = 'smem constant byte address 0x4 - core index']
  #allocation1 [shape = 'u32[72,128]{1,0:T(1,128)}', space=vmem, size = 0x9000, scoped, tag = 'internal scratch']
  %s0 = inlined_call_operand.vmem [shape: bf16[8,12], index: 0, kind: input, shape index: {}]
  %s1 = inlined_call_operand.vmem [shape: bf16[12,128], index: 1, kind: input, shape index: {}]
  %s2 = inlined_call_operand.vmem [shape: f32[1,128], index: 2, kind: input, shape index: {}]
  %s3 = inlined_call_operand.vmem [shape: bf16[8,128], index: 3, kind: output, shape index: {}]
  %s4 = sld [smem:[#allocation0]]
  $region22: #{esa_forward.18} parent=0
    _
  %s6 = ssub.s32 1, %s4
  %s7 = scalar_select 0, %s6, %s4
  // Predicated region
  $region2: #{esa_forward.18} parent=0 // pred_check
    _
  $region3: #{esa_forward.18} parent=0 // pred_check_branch
    %9 = sbr.rel (0) target = $region5
  $region4: #{esa_forward.18} parent=0 // pred_region
    _
  $region5: #{esa_forward.18} parent=0 // pred_fallthru
    _
  // Predicated region
  $region6: #{esa_forward.18} parent=0 // pred_check
    _
  $region7: #{esa_forward.18} parent=0 // pred_check_branch
    %11 = sbr.rel (0) target = $region9
  $region8: #{esa_forward.18} parent=0 // pred_region
    _
  $region9: #{esa_forward.18} parent=0 // pred_fallthru
    _
  // Predicated region
  $region10: #{esa_forward.18} parent=0 // pred_check
    _
  $region11: #{esa_forward.18} parent=0 // pred_check_branch
    %13 = sbr.rel (0) target = $region13
  $region12: #{esa_forward.18} parent=0 // pred_region
    _
  $region13: #{esa_forward.18} parent=0 // pred_fallthru
    _
  %v15 = vld [vmem:[%s0] sm:$0xf]
  %v16 = vld [vmem:[%s1] sm:$0xf]
  %v17 = vld [vmem:[%s1 + $0x4] sm:$0x3]
  %v18 = vld [vmem:[%s2] sm:$0x1]
  %v20 = vperm.slane %v18, 0
  %v24 = vunpack.c.l.b16 %v16
  %v25 = vunpack.c.l.b16 %v17
  %v26 = vpack.c.b16 %v25, %v24
  %vm27 = vcmask 97280
  %v29 = vsel %vm27, %v15, 0
  %vm31 = vcmask 1045504
  %v33 = vsel %vm31, %v26, 0
  %35 = vmatpush.bf16.msra.mxu0 0
  %36 = vmatpush.bf16.msra.mxu0 0
  %37 = vmatpush.bf16.msra.mxu0 0
  %38 = vmatpush.bf16.msra.mxu0 0
  %39 = vmatpush.bf16.msra.mxu0 0
  %40 = vmatpush.bf16.msra.mxu0 0
  %41 = vmatpush.bf16.msra.mxu0 0
  %42 = vmatpush.bf16.msra.mxu0 %v33
  %43 = vmatmul.bf16.gmra.mxu0 %v29
  %v44 = vpop.f32.mrf.mxu0
  %v45 = vadd.f32 %v20, %v44
  %v46 = vpop.f32.mrf.mxu0
  %47 = vdwg.mxu0
  %v48 = vpack.c.bf16 %v45, %v45
  %49 = vst [vmem:[%s3] sm:$0xf] %v48
  // Predicated region
  $region14: #{esa_forward.18} parent=0 // pred_check
    _
  $region15: #{esa_forward.18} parent=0 // pred_check_branch
    %51 = sbr.rel (0) target = $region17
  $region16: #{esa_forward.18} parent=0 // pred_region
    _
  $region17: #{esa_forward.18} parent=0 // pred_fallthru
    _
  // Predicated region
  $region18: #{esa_forward.18} parent=0 // pred_check
    _
  $region19: #{esa_forward.18} parent=0 // pred_check_branch
    %53 = sbr.rel (0) target = $region21
  $region20: #{esa_forward.18} parent=0 // pred_region
    _
  $region21: #{esa_forward.18} parent=0 // pred_fallthru
    _

// kernel: esa_forward.19
$region0: #{esa_forward.19}
  #allocation0 [shape = 'u32[]', space=smem, size = 0x4, offset = 0x4, fixed_abs, tag = 'smem constant byte address 0x4 - core index']
  #allocation1 [shape = 'u32[72,128]{1,0:T(1,128)}', space=vmem, size = 0x9000, scoped, tag = 'internal scratch']
  %s0 = inlined_call_operand.vmem [shape: bf16[192,4], index: 0, kind: input, shape index: {}]
  %s1 = inlined_call_operand.vmem [shape: bf16[4,16], index: 1, kind: input, shape index: {}]
  %s2 = inlined_call_operand.vmem [shape: f32[1,16], index: 2, kind: input, shape index: {}]
  %s3 = inlined_call_operand.vmem [shape: bf16[192,16], index: 3, kind: output, shape index: {}]
  %s4 = sld [smem:[#allocation0]]
  $region22: #{esa_forward.19} parent=0
    _
  %s6 = ssub.s32 1, %s4
  %s7 = scalar_select 0, %s6, %s4
  // Predicated region
  $region2: #{esa_forward.19} parent=0 // pred_check
    _
  $region3: #{esa_forward.19} parent=0 // pred_check_branch
    %9 = sbr.rel (0) target = $region5
  $region4: #{esa_forward.19} parent=0 // pred_region
    _
  $region5: #{esa_forward.19} parent=0 // pred_fallthru
    _
  // Predicated region
  $region6: #{esa_forward.19} parent=0 // pred_check
    _
  $region7: #{esa_forward.19} parent=0 // pred_check_branch
    %11 = sbr.rel (0) target = $region9
  $region8: #{esa_forward.19} parent=0 // pred_region
    _
  $region9: #{esa_forward.19} parent=0 // pred_fallthru
    _
  // Predicated region
  $region10: #{esa_forward.19} parent=0 // pred_check
    _
  $region11: #{esa_forward.19} parent=0 // pred_check_branch
    %13 = sbr.rel (0) target = $region13
  $region12: #{esa_forward.19} parent=0 // pred_region
    _
  $region13: #{esa_forward.19} parent=0 // pred_fallthru
    _
  %v15 = vld [vmem:[%s0] sm:$0xf]
  %v16 = vld [vmem:[%s0 + $0x4] sm:$0xf]
  %v17 = vld [vmem:[%s0 + $0x8] sm:$0xf]
  %v18 = vld [vmem:[%s0 + $0xc] sm:$0xf]
  %v19 = vld [vmem:[%s0 + $0x10] sm:$0xf]
  %v20 = vld [vmem:[%s0 + $0x14] sm:$0xf]
  %v21 = vld [vmem:[%s0 + $0x18] sm:$0xf]
  %v22 = vld [vmem:[%s0 + $0x1c] sm:$0xf]
  %v23 = vld [vmem:[%s0 + $0x20] sm:$0xf]
  %v24 = vld [vmem:[%s0 + $0x24] sm:$0xf]
  %v25 = vld [vmem:[%s0 + $0x28] sm:$0xf]
  %v26 = vld [vmem:[%s0 + $0x2c] sm:$0xf]
  %v27 = vld [vmem:[%s0 + $0x30] sm:$0xf]
  %v28 = vld [vmem:[%s0 + $0x34] sm:$0xf]
  %v29 = vld [vmem:[%s0 + $0x38] sm:$0xf]
  %v30 = vld [vmem:[%s0 + $0x3c] sm:$0xf]
  %v31 = vld [vmem:[%s0 + $0x40] sm:$0xf]
  %v32 = vld [vmem:[%s0 + $0x44] sm:$0xf]
  %v33 = vld [vmem:[%s0 + $0x48] sm:$0xf]
  %v34 = vld [vmem:[%s0 + $0x4c] sm:$0xf]
  %v35 = vld [vmem:[%s0 + $0x50] sm:$0xf]
  %v36 = vld [vmem:[%s0 + $0x54] sm:$0xf]
  %v37 = vld [vmem:[%s0 + $0x58] sm:$0xf]
  %v38 = vld [vmem:[%s0 + $0x5c] sm:$0xf]
  %v39 = vld [vmem:[%s1] sm:$0x3]
  %v40 = vld [vmem:[%s2] sm:$0x1]
  %v42 = vperm.slane %v40, 0
  %v68 = vunpack.c.l.b16 %v15
  %v69 = vunpack.c.l.b16 %v16
  %v70 = vunpack.c.l.b16 %v17
  %v71 = vunpack.c.l.b16 %v18
  %v72 = vunpack.c.l.b16 %v19
  %v73 = vunpack.c.l.b16 %v20
  %v74 = vunpack.c.l.b16 %v21
  %v75 = vunpack.c.l.b16 %v22
  %v76 = vunpack.c.l.b16 %v23
  %v77 = vunpack.c.l.b16 %v24
  %v78 = vunpack.c.l.b16 %v25
  %v79 = vunpack.c.l.b16 %v26
  %v80 = vunpack.c.l.b16 %v27
  %v81 = vunpack.c.l.b16 %v28
  %v82 = vunpack.c.l.b16 %v29
  %v83 = vunpack.c.l.b16 %v30
  %v84 = vunpack.c.l.b16 %v31
  %v85 = vunpack.c.l.b16 %v32
  %v86 = vunpack.c.l.b16 %v33
  %v87 = vunpack.c.l.b16 %v34
  %v88 = vunpack.c.l.b16 %v35
  %v89 = vunpack.c.l.b16 %v36
  %v90 = vunpack.c.l.b16 %v37
  %v91 = vunpack.c.l.b16 %v38
  %v92 = vpack.c.b16 %v69, %v68
  %v93 = vpack.c.b16 %v71, %v70
  %v94 = vpack.c.b16 %v73, %v72
  %v95 = vpack.c.b16 %v75, %v74
  %v96 = vpack.c.b16 %v77, %v76
  %v97 = vpack.c.b16 %v79, %v78
  %v98 = vpack.c.b16 %v81, %v80
  %v99 = vpack.c.b16 %v83, %v82
  %v100 = vpack.c.b16 %v85, %v84
  %v101 = vpack.c.b16 %v87, %v86
  %v102 = vpack.c.b16 %v89, %v88
  %v103 = vpack.c.b16 %v91, %v90
  %vm104 = vcmask 31744
  %v106 = vsel %vm104, %v92, 0
  %v109 = vsel %vm104, %v93, 0
  %v112 = vsel %vm104, %v94, 0
  %v115 = vsel %vm104, %v95, 0
  %v118 = vsel %vm104, %v96, 0
  %v121 = vsel %vm104, %v97, 0
  %v124 = vsel %vm104, %v98, 0
  %v127 = vsel %vm104, %v99, 0
  %v130 = vsel %vm104, %v100, 0
  %v133 = vsel %vm104, %v101, 0
  %v136 = vsel %vm104, %v102, 0
  %v139 = vsel %vm104, %v103, 0
  %vm141 = vcmask 1041408
  %v143 = vsel %vm141, %v39, 0
  %145 = vmatpush.bf16.msra.mxu0 0
  %146 = vmatpush.bf16.msra.mxu0 0
  %147 = vmatpush.bf16.msra.mxu0 0
  %148 = vmatpush.bf16.msra.mxu0 0
  %149 = vmatpush.bf16.msra.mxu0 0
  %150 = vmatpush.bf16.msra.mxu0 0
  %151 = vmatpush.bf16.msra.mxu0 0
  %152 = vmatpush.bf16.msra.mxu0 %v143
  %153 = vmatmul.bf16.gmra.mxu0 %v106
  %v154 = vpop.f32.mrf.mxu0
  %v155 = vadd.f32 %v42, %v154
  %v156 = vpop.f32.mrf.mxu0
  %v157 = vadd.f32 %v42, %v156
  %158 = vmatmul.bf16.gmra.mxu0 %v109
  %v159 = vpop.f32.mrf.mxu0
  %v160 = vadd.f32 %v42, %v159
  %v161 = vpop.f32.mrf.mxu0
  %v162 = vadd.f32 %v42, %v161
  %163 = vmatmul.bf16.gmra.mxu0 %v112
  %v164 = vpop.f32.mrf.mxu0
  %v165 = vadd.f32 %v42, %v164
  %v166 = vpop.f32.mrf.mxu0
  %v167 = vadd.f32 %v42, %v166
  %168 = vmatmul.bf16.gmra.mxu0 %v115
  %v169 = vpop.f32.mrf.mxu0
  %v170 = vadd.f32 %v42, %v169
  %v171 = vpop.f32.mrf.mxu0
  %v172 = vadd.f32 %v42, %v171
  %173 = vmatmul.bf16.gmra.mxu0 %v118
  %v174 = vpop.f32.mrf.mxu0
  %v175 = vadd.f32 %v42, %v174
  %v176 = vpop.f32.mrf.mxu0
  %v177 = vadd.f32 %v42, %v176
  %178 = vmatmul.bf16.gmra.mxu0 %v121
  %v179 = vpop.f32.mrf.mxu0
  %v180 = vadd.f32 %v42, %v179
  %v181 = vpop.f32.mrf.mxu0
  %v182 = vadd.f32 %v42, %v181
  %183 = vmatmul.bf16.gmra.mxu0 %v124
  %v184 = vpop.f32.mrf.mxu0
  %v185 = vadd.f32 %v42, %v184
  %v186 = vpop.f32.mrf.mxu0
  %v187 = vadd.f32 %v42, %v186
  %188 = vmatmul.bf16.gmra.mxu0 %v127
  %v189 = vpop.f32.mrf.mxu0
  %v190 = vadd.f32 %v42, %v189
  %v191 = vpop.f32.mrf.mxu0
  %v192 = vadd.f32 %v42, %v191
  %193 = vmatmul.bf16.gmra.mxu0 %v130
  %v194 = vpop.f32.mrf.mxu0
  %v195 = vadd.f32 %v42, %v194
  %v196 = vpop.f32.mrf.mxu0
  %v197 = vadd.f32 %v42, %v196
  %198 = vmatmul.bf16.gmra.mxu0 %v133
  %v199 = vpop.f32.mrf.mxu0
  %v200 = vadd.f32 %v42, %v199
  %v201 = vpop.f32.mrf.mxu0
  %v202 = vadd.f32 %v42, %v201
  %203 = vmatmul.bf16.gmra.mxu0 %v136
  %v204 = vpop.f32.mrf.mxu0
  %v205 = vadd.f32 %v42, %v204
  %v206 = vpop.f32.mrf.mxu0
  %v207 = vadd.f32 %v42, %v206
  %208 = vmatmul.bf16.gmra.mxu0 %v139
  %v209 = vpop.f32.mrf.mxu0
  %v210 = vadd.f32 %v42, %v209
  %v211 = vpop.f32.mrf.mxu0
  %v212 = vadd.f32 %v42, %v211
  %213 = vdwg.mxu0
  %v214 = vpack.c.bf16 %v155, %v155
  %v215 = vpack.c.bf16 %v157, %v157
  %v216 = vpack.c.bf16 %v160, %v160
  %v217 = vpack.c.bf16 %v162, %v162
  %v218 = vpack.c.bf16 %v165, %v165
  %v219 = vpack.c.bf16 %v167, %v167
  %v220 = vpack.c.bf16 %v170, %v170
  %v221 = vpack.c.bf16 %v172, %v172
  %v222 = vpack.c.bf16 %v175, %v175
  %v223 = vpack.c.bf16 %v177, %v177
  %v224 = vpack.c.bf16 %v180, %v180
  %v225 = vpack.c.bf16 %v182, %v182
  %v226 = vpack.c.bf16 %v185, %v185
  %v227 = vpack.c.bf16 %v187, %v187
  %v228 = vpack.c.bf16 %v190, %v190
  %v229 = vpack.c.bf16 %v192, %v192
  %v230 = vpack.c.bf16 %v195, %v195
  %v231 = vpack.c.bf16 %v197, %v197
  %v232 = vpack.c.bf16 %v200, %v200
  %v233 = vpack.c.bf16 %v202, %v202
  %v234 = vpack.c.bf16 %v205, %v205
  %v235 = vpack.c.bf16 %v207, %v207
  %v236 = vpack.c.bf16 %v210, %v210
  %v237 = vpack.c.bf16 %v212, %v212
  %vm238 = vcmask 125952
  %239 = vst.msk [vmem:[%s3] sm:$0xf] %vm238, %v214
  %240 = vst.msk [vmem:[%s3 + $0x4] sm:$0xf] %vm238, %v215
  %241 = vst.msk [vmem:[%s3 + $0x8] sm:$0xf] %vm238, %v216
  %242 = vst.msk [vmem:[%s3 + $0xc] sm:$0xf] %vm238, %v217
  %243 = vst.msk [vmem:[%s3 + $0x10] sm:$0xf] %vm238, %v218
  %244 = vst.msk [vmem:[%s3 + $0x14] sm:$0xf] %vm238, %v219
  %245 = vst.msk [vmem:[%s3 + $0x18] sm:$0xf] %vm238, %v220
  %246 = vst.msk [vmem:[%s3 + $0x1c] sm:$0xf] %vm238, %v221
  %247 = vst.msk [vmem:[%s3 + $0x20] sm:$0xf] %vm238, %v222
  %248 = vst.msk [vmem:[%s3 + $0x24] sm:$0xf] %vm238, %v223
  %249 = vst.msk [vmem:[%s3 + $0x28] sm:$0xf] %vm238, %v224
  %250 = vst.msk [vmem:[%s3 + $0x2c] sm:$0xf] %vm238, %v225
  %251 = vst.msk [vmem:[%s3 + $0x30] sm:$0xf] %vm238, %v226
  %252 = vst.msk [vmem:[%s3 + $0x34] sm:$0xf] %vm238, %v227
  %253 = vst.msk [vmem:[%s3 + $0x38] sm:$0xf] %vm238, %v228
  %254 = vst.msk [vmem:[%s3 + $0x3c] sm:$0xf] %vm238, %v229
  %255 = vst.msk [vmem:[%s3 + $0x40] sm:$0xf] %vm238, %v230
  %256 = vst.msk [vmem:[%s3 + $0x44] sm:$0xf] %vm238, %v231
  %257 = vst.msk [vmem:[%s3 + $0x48] sm:$0xf] %vm238, %v232
  %258 = vst.msk [vmem:[%s3 + $0x4c] sm:$0xf] %vm238, %v233
  %259 = vst.msk [vmem:[%s3 + $0x50] sm:$0xf] %vm238, %v234
  %260 = vst.msk [vmem:[%s3 + $0x54] sm:$0xf] %vm238, %v235
  %261 = vst.msk [vmem:[%s3 + $0x58] sm:$0xf] %vm238, %v236
  %262 = vst.msk [vmem:[%s3 + $0x5c] sm:$0xf] %vm238, %v237
  // Predicated region
  $region14: #{esa_forward.19} parent=0 // pred_check
    _
  $region15: #{esa_forward.19} parent=0 // pred_check_branch
    %264 = sbr.rel (0) target = $region17
  $region16: #{esa_forward.19} parent=0 // pred_region
    _
  $region17: #{esa_forward.19} parent=0 // pred_fallthru
    _
  // Predicated region
  $region18: #{esa_forward.19} parent=0 // pred_check
    _
  $region19: #{esa_forward.19} parent=0 // pred_check_branch
    %266 = sbr.rel (0) target = $region21
  $region20: #{esa_forward.19} parent=0 // pred_region
    _
  $region21: #{esa_forward.19} parent=0 // pred_fallthru
    _

// kernel: esa_forward.20
$region0: #{esa_forward.20}
  #allocation0 [shape = 'u32[]', space=smem, size = 0x4, offset = 0x4, fixed_abs, tag = 'smem constant byte address 0x4 - core index']
  #allocation1 [shape = 'u32[72,128]{1,0:T(1,128)}', space=vmem, size = 0x9000, scoped, tag = 'internal scratch']
  %s0 = inlined_call_operand.vmem [shape: bf16[2048,4], index: 0, kind: input, shape index: {}]
  %s1 = inlined_call_operand.vmem [shape: bf16[4,16], index: 1, kind: input, shape index: {}]
  %s2 = inlined_call_operand.vmem [shape: f32[1,16], index: 2, kind: input, shape index: {}]
  %s3 = inlined_call_operand.vmem [shape: bf16[2048,16], index: 3, kind: output, shape index: {}]
  %s4 = sld [smem:[#allocation0]]
  $region45: #{esa_forward.20} parent=0
    _
  %s6 = ssub.s32 1, %s4
  %s7 = scalar_select 0, %s6, %s4
  loop: start=0, step=1, limit=6
  $region2: #{esa_forward.20} parent=0 // loop_pre_header
    _
  $region3: #{esa_forward.20} parent=0 // loop_header
    %s9 = sphi 0, %s13
    %p10 = scmp.ge.s32.totalorder %s9, 6
    %s19 = sphi 0, %s21
    %s22 = sphi 0, %s19
    %s23 = sphi 0, %s22
    %s39 = sphi 0, %s23
    %s43 = sphi 0, %s43
    %s45 = sphi 0, %s43
    %s46 = sphi 0, %s45
    %s60 = sphi 0, %s46
    %s64 = sphi 0, %s64
    %s66 = sphi 0, %s64
    %s67 = sphi 0, %s66
    %s81 = sphi 0, %s67
    %s87 = sphi 0, %s89
    %s90 = sphi 0, %s87
    %s91 = sphi 0, %s90
    %s107 = sphi 0, %s91
  $region4: #{esa_forward.20} parent=0 // loop_header_branch
    %12 = sbr.rel (%p10) target = $region8
  $region5: #{esa_forward.20} parent=0 // loop_body
    %s14 = ssub.s32 %s9, 1
    %s15 = ssub.s32 %s9, 2
    %s16 = sadd.s32 %s9, 1
    %s17 = ssub.s32 %s9, %s16
    %p18 = scmp.eq.s32.totalorder %s17, 0
    %s20 = sadd.s32 %s19, 1
    %s21 = scalar_select %p18, %s19, %s20
    %p24 = pneg %p18
    %p25 = scmp.eq.s32.totalorder %s9, 3
    %p26 = por %p24, %p25
    %p27 = scmp.ne.s32.totalorder %s19, %s22
    %p28 = scmp.eq.s32.totalorder %s9, 0
    %p29 = por %p27, %p28
    %p30 = scmp.ne.s32.totalorder %s19, %s22
    %p31 = scmp.eq.s32.totalorder %s14, 3
    %p32 = por %p30, %p31
    %p33 = scmp.ne.s32.totalorder %s22, %s23
    %p34 = scmp.eq.s32.totalorder %s14, 0
    %p35 = por %p33, %p34
    %p36 = scmp.ne.s32.totalorder %s22, %s23
    %p37 = scmp.eq.s32.totalorder %s15, 3
    %p38 = por %p36, %p37
    %p40 = scmp.ne.s32.totalorder %s23, %s39
    %p41 = scmp.eq.s32.totalorder %s15, 0
    %p42 = por %p40, %p41
    %s44 = sadd.s32 %s43, 1
    %p47 = scmp.eq.s32.totalorder %s9, 3
    %p48 = scmp.ne.s32.totalorder %s43, %s45
    %p49 = scmp.eq.s32.totalorder %s9, 0
    %p50 = por %p48, %p49
    %p51 = scmp.ne.s32.totalorder %s43, %s45
    %p52 = scmp.eq.s32.totalorder %s14, 3
    %p53 = por %p51, %p52
    %p54 = scmp.ne.s32.totalorder %s45, %s46
    %p55 = scmp.eq.s32.totalorder %s14, 0
    %p56 = por %p54, %p55
    %p57 = scmp.ne.s32.totalorder %s45, %s46
    %p58 = scmp.eq.s32.totalorder %s15, 3
    %p59 = por %p57, %p58
    %p61 = scmp.ne.s32.totalorder %s46, %s60
    %p62 = scmp.eq.s32.totalorder %s15, 0
    %p63 = por %p61, %p62
    %s65 = sadd.s32 %s64, 1
    %p68 = scmp.eq.s32.totalorder %s9, 3
    %p69 = scmp.ne.s32.totalorder %s64, %s66
    %p70 = scmp.eq.s32.totalorder %s9, 0
    %p71 = por %p69, %p70
    %p72 = scmp.ne.s32.totalorder %s64, %s66
    %p73 = scmp.eq.s32.totalorder %s14, 3
    %p74 = por %p72, %p73
    %p75 = scmp.ne.s32.totalorder %s66, %s67
    %p76 = scmp.eq.s32.totalorder %s14, 0
    %p77 = por %p75, %p76
    %p78 = scmp.ne.s32.totalorder %s66, %s67
    %p79 = scmp.eq.s32.totalorder %s15, 3
    %p80 = por %p78, %p79
    %p82 = scmp.ne.s32.totalorder %s67, %s81
    %p83 = scmp.eq.s32.totalorder %s15, 0
    %p84 = por %p82, %p83
    %s85 = ssub.s32 %s9, %s16
    %p86 = scmp.eq.s32.totalorder %s85, 0
    %s88 = sadd.s32 %s87, 1
    %s89 = scalar_select %p86, %s87, %s88
    %p92 = pneg %p86
    %p93 = scmp.eq.s32.totalorder %s9, 3
    %p94 = por %p92, %p93
    %p95 = scmp.ne.s32.totalorder %s87, %s90
    %p96 = scmp.eq.s32.totalorder %s9, 0
    %p97 = por %p95, %p96
    %p98 = scmp.ne.s32.totalorder %s87, %s90
    %p99 = scmp.eq.s32.totalorder %s14, 3
    %p100 = por %p98, %p99
    %p101 = scmp.ne.s32.totalorder %s90, %s91
    %p102 = scmp.eq.s32.totalorder %s14, 0
    %p103 = por %p101, %p102
    %p104 = scmp.ne.s32.totalorder %s90, %s91
    %p105 = scmp.eq.s32.totalorder %s15, 3
    %p106 = por %p104, %p105
    %p108 = scmp.ne.s32.totalorder %s91, %s107
    %p109 = scmp.eq.s32.totalorder %s15, 0
    %p110 = por %p108, %p109
    %p111 = scmp.le.s32.totalorder 1, %s9
    %p112 = scmp.lt.s32.totalorder %s9, 5
    %p113 = pnand %p111, %p112
    %p114 = pneg %p113
    // Predicated region
    $region9: #{esa_forward.20} parent=5 // pred_check
      _
    $region10: #{esa_forward.20} parent=5 // pred_check_branch
      %116 = sbr.rel (%p113) target = $region12
    $region11: #{esa_forward.20} parent=5 // pred_region
      %s117 = ssub.s32 %s9, 1
      // Predicated region
      $region13: #{esa_forward.20} parent=11 // pred_check
        %p118 = pneg %p56
      $region14: #{esa_forward.20} parent=11 // pred_check_branch
        %120 = sbr.rel (%p118) target = $region16
      $region15: #{esa_forward.20} parent=11 // pred_region
        _
      $region16: #{esa_forward.20} parent=11 // pred_fallthru
        _
      // Predicated region
      $region17: #{esa_forward.20} parent=11 // pred_check
        %p121 = pneg %p77
      $region18: #{esa_forward.20} parent=11 // pred_check_branch
        %123 = sbr.rel (%p121) target = $region20
      $region19: #{esa_forward.20} parent=11 // pred_region
        _
      $region20: #{esa_forward.20} parent=11 // pred_fallthru
        _
    $region12: #{esa_forward.20} parent=5 // pred_fallthru
      _
    %p124 = scmp.lt.s32.totalorder %s9, 4
    // Predicated region
    $region21: #{esa_forward.20} parent=5 // pred_check
      %p125 = pneg %p124
    $region22: #{esa_forward.20} parent=5 // pred_check_branch
      %127 = sbr.rel (%p125) target = $region24
    $region23: #{esa_forward.20} parent=5 // pred_region
      // Predicated region
      $region25: #{esa_forward.20} parent=23 // pred_check
        %p128 = pneg %p29
      $region26: #{esa_forward.20} parent=23 // pred_check_branch
        %130 = sbr.rel (%p128) target = $region28
      $region27: #{esa_forward.20} parent=23 // pred_region
        %s131 = smul.u32 64, %s9
        %p132 = scmp.lt.s32.totalorder %s131, 255
        %s133 = scalar_select %p132, %s131, 255
        %s134 = smul.addr %s133, 4
        %s135 = scalar_lea.vmem %s0, %s134
        %s136 = smul.u32 64, %s9
      $region28: #{esa_forward.20} parent=23 // pred_fallthru
        _
    $region24: #{esa_forward.20} parent=5 // pred_fallthru
      _
    %p137 = scmp.le.s32.totalorder 1, %s9
    %p138 = scmp.lt.s32.totalorder %s9, 5
    %p139 = pnand %p137, %p138
    %p140 = pneg %p139
    // Predicated region
    $region29: #{esa_forward.20} parent=5 // pred_check
      _
    $region30: #{esa_forward.20} parent=5 // pred_check_branch
      %142 = sbr.rel (%p139) target = $region32
    $region31: #{esa_forward.20} parent=5 // pred_region
      %s143 = ssub.s32 %s9, 1
      %s144 = smul.u32 64, %s14
      %p145 = scmp.lt.s32.totalorder %s144, 255
      %s146 = scalar_select %p145, %s144, 255
      %s147 = smul.addr %s146, 4
      %s148 = scalar_lea.vmem %s0, %s147
      %p149 = pneg %p35
      %p150 = pneg %p32
      %p151 = pneg %p56
      %p152 = pneg %p53
      %p153 = pneg %p77
      %p154 = pneg %p74
      %p155 = pneg %p103
      %p156 = pneg %p100
      %s157 = smul.u32 64, %s14
      %p158 = scmp.lt.s32.totalorder %s157, 255
      %s159 = scalar_select %p158, %s157, 255
      %s160 = smul.addr %s159, 4
      %s161 = scalar_lea.vmem %s3, %s160
      %s162 = smul.u32 64, %s14
      %p163 = scmp.lt.s32.totalorder %s162, 255
      %s164 = scalar_select %p163, %s162, 255
      %s165 = smul.addr %s164, 4
      %s166 = scalar_lea.vmem %s0, %s165
      %s167 = smul.u32 64, %s14
      %s168 = smul.u32 64, %s14
      %p169 = scmp.lt.s32.totalorder %s168, 255
      %s170 = scalar_select %p169, %s168, 255
      %s171 = smul.addr %s170, 4
      %s172 = scalar_lea.vmem %s3, %s171
      %s173 = smul.u32 64, %s14
      %v175 = vld [vmem:[%s166] sm:$0xf]
      %v176 = vld [vmem:[%s166 + $0x4] sm:$0xf]
      %v177 = vld [vmem:[%s166 + $0x8] sm:$0xf]
      %v178 = vld [vmem:[%s166 + $0xc] sm:$0xf]
      %v179 = vld [vmem:[%s166 + $0x10] sm:$0xf]
      %v180 = vld [vmem:[%s166 + $0x14] sm:$0xf]
      %v181 = vld [vmem:[%s166 + $0x18] sm:$0xf]
      %v182 = vld [vmem:[%s166 + $0x1c] sm:$0xf]
      %v183 = vld [vmem:[%s166 + $0x20] sm:$0xf]
      %v184 = vld [vmem:[%s166 + $0x24] sm:$0xf]
      %v185 = vld [vmem:[%s166 + $0x28] sm:$0xf]
      %v186 = vld [vmem:[%s166 + $0x2c] sm:$0xf]
      %v187 = vld [vmem:[%s166 + $0x30] sm:$0xf]
      %v188 = vld [vmem:[%s166 + $0x34] sm:$0xf]
      %v189 = vld [vmem:[%s166 + $0x38] sm:$0xf]
      %v190 = vld [vmem:[%s166 + $0x3c] sm:$0xf]
      %v191 = vld [vmem:[%s166 + $0x40] sm:$0xf]
      %v192 = vld [vmem:[%s166 + $0x44] sm:$0xf]
      %v193 = vld [vmem:[%s166 + $0x48] sm:$0xf]
      %v194 = vld [vmem:[%s166 + $0x4c] sm:$0xf]
      %v195 = vld [vmem:[%s166 + $0x50] sm:$0xf]
      %v196 = vld [vmem:[%s166 + $0x54] sm:$0xf]
      %v197 = vld [vmem:[%s166 + $0x58] sm:$0xf]
      %v198 = vld [vmem:[%s166 + $0x5c] sm:$0xf]
      %v199 = vld [vmem:[%s166 + $0x60] sm:$0xf]
      %v200 = vld [vmem:[%s166 + $0x64] sm:$0xf]
      %v201 = vld [vmem:[%s166 + $0x68] sm:$0xf]
      %v202 = vld [vmem:[%s166 + $0x6c] sm:$0xf]
      %v203 = vld [vmem:[%s166 + $0x70] sm:$0xf]
      %v204 = vld [vmem:[%s166 + $0x74] sm:$0xf]
      %v205 = vld [vmem:[%s166 + $0x78] sm:$0xf]
      %v206 = vld [vmem:[%s166 + $0x7c] sm:$0xf]
      %v207 = vld [vmem:[%s166 + $0x80] sm:$0xf]
      %v208 = vld [vmem:[%s166 + $0x84] sm:$0xf]
      %v209 = vld [vmem:[%s166 + $0x88] sm:$0xf]
      %v210 = vld [vmem:[%s166 + $0x8c] sm:$0xf]
      %v211 = vld [vmem:[%s166 + $0x90] sm:$0xf]
      %v212 = vld [vmem:[%s166 + $0x94] sm:$0xf]
      %v213 = vld [vmem:[%s166 + $0x98] sm:$0xf]
      %v214 = vld [vmem:[%s166 + $0x9c] sm:$0xf]
      %v215 = vld [vmem:[%s166 + $0xa0] sm:$0xf]
      %v216 = vld [vmem:[%s166 + $0xa4] sm:$0xf]
      %v217 = vld [vmem:[%s166 + $0xa8] sm:$0xf]
      %v218 = vld [vmem:[%s166 + $0xac] sm:$0xf]
      %v219 = vld [vmem:[%s166 + $0xb0] sm:$0xf]
      %v220 = vld [vmem:[%s166 + $0xb4] sm:$0xf]
      %v221 = vld [vmem:[%s166 + $0xb8] sm:$0xf]
      %v222 = vld [vmem:[%s166 + $0xbc] sm:$0xf]
      %v223 = vld [vmem:[%s166 + $0xc0] sm:$0xf]
      %v224 = vld [vmem:[%s166 + $0xc4] sm:$0xf]
      %v225 = vld [vmem:[%s166 + $0xc8] sm:$0xf]
      %v226 = vld [vmem:[%s166 + $0xcc] sm:$0xf]
      %v227 = vld [vmem:[%s166 + $0xd0] sm:$0xf]
      %v228 = vld [vmem:[%s166 + $0xd4] sm:$0xf]
      %v229 = vld [vmem:[%s166 + $0xd8] sm:$0xf]
      %v230 = vld [vmem:[%s166 + $0xdc] sm:$0xf]
      %v231 = vld [vmem:[%s166 + $0xe0] sm:$0xf]
      %v232 = vld [vmem:[%s166 + $0xe4] sm:$0xf]
      %v233 = vld [vmem:[%s166 + $0xe8] sm:$0xf]
      %v234 = vld [vmem:[%s166 + $0xec] sm:$0xf]
      %v235 = vld [vmem:[%s166 + $0xf0] sm:$0xf]
      %v236 = vld [vmem:[%s166 + $0xf4] sm:$0xf]
      %v237 = vld [vmem:[%s166 + $0xf8] sm:$0xf]
      %v238 = vld [vmem:[%s166 + $0xfc] sm:$0xf]
      %v239 = vld [vmem:[%s1] sm:$0x3]
      %v240 = vld [vmem:[%s2] sm:$0x1]
      %v242 = vperm.slane %v240, 0
      %v308 = vunpack.c.l.b16 %v175
      %v309 = vunpack.c.l.b16 %v176
      %v310 = vunpack.c.l.b16 %v177
      %v311 = vunpack.c.l.b16 %v178
      %v312 = vunpack.c.l.b16 %v179
      %v313 = vunpack.c.l.b16 %v180
      %v314 = vunpack.c.l.b16 %v181
      %v315 = vunpack.c.l.b16 %v182
      %v316 = vunpack.c.l.b16 %v183
      %v317 = vunpack.c.l.b16 %v184
      %v318 = vunpack.c.l.b16 %v185
      %v319 = vunpack.c.l.b16 %v186
      %v320 = vunpack.c.l.b16 %v187
      %v321 = vunpack.c.l.b16 %v188
      %v322 = vunpack.c.l.b16 %v189
      %v323 = vunpack.c.l.b16 %v190
      %v324 = vunpack.c.l.b16 %v191
      %v325 = vunpack.c.l.b16 %v192
      %v326 = vunpack.c.l.b16 %v193
      %v327 = vunpack.c.l.b16 %v194
      %v328 = vunpack.c.l.b16 %v195
      %v329 = vunpack.c.l.b16 %v196
      %v330 = vunpack.c.l.b16 %v197
      %v331 = vunpack.c.l.b16 %v198
      %v332 = vunpack.c.l.b16 %v199
      %v333 = vunpack.c.l.b16 %v200
      %v334 = vunpack.c.l.b16 %v201
      %v335 = vunpack.c.l.b16 %v202
      %v336 = vunpack.c.l.b16 %v203
      %v337 = vunpack.c.l.b16 %v204
      %v338 = vunpack.c.l.b16 %v205
      %v339 = vunpack.c.l.b16 %v206
      %v340 = vunpack.c.l.b16 %v207
      %v341 = vunpack.c.l.b16 %v208
      %v342 = vunpack.c.l.b16 %v209
      %v343 = vunpack.c.l.b16 %v210
      %v344 = vunpack.c.l.b16 %v211
      %v345 = vunpack.c.l.b16 %v212
      %v346 = vunpack.c.l.b16 %v213
      %v347 = vunpack.c.l.b16 %v214
      %v348 = vunpack.c.l.b16 %v215
      %v349 = vunpack.c.l.b16 %v216
      %v350 = vunpack.c.l.b16 %v217
      %v351 = vunpack.c.l.b16 %v218
      %v352 = vunpack.c.l.b16 %v219
      %v353 = vunpack.c.l.b16 %v220
      %v354 = vunpack.c.l.b16 %v221
      %v355 = vunpack.c.l.b16 %v222
      %v356 = vunpack.c.l.b16 %v223
      %v357 = vunpack.c.l.b16 %v224
      %v358 = vunpack.c.l.b16 %v225
      %v359 = vunpack.c.l.b16 %v226
      %v360 = vunpack.c.l.b16 %v227
      %v361 = vunpack.c.l.b16 %v228
      %v362 = vunpack.c.l.b16 %v229
      %v363 = vunpack.c.l.b16 %v230
      %v364 = vunpack.c.l.b16 %v231
      %v365 = vunpack.c.l.b16 %v232
      %v366 = vunpack.c.l.b16 %v233
      %v367 = vunpack.c.l.b16 %v234
      %v368 = vunpack.c.l.b16 %v235
      %v369 = vunpack.c.l.b16 %v236
      %v370 = vunpack.c.l.b16 %v237
      %v371 = vunpack.c.l.b16 %v238
      %v372 = vpack.c.b16 %v309, %v308
      %v373 = vpack.c.b16 %v311, %v310
      %v374 = vpack.c.b16 %v313, %v312
      %v375 = vpack.c.b16 %v315, %v314
      %v376 = vpack.c.b16 %v317, %v316
      %v377 = vpack.c.b16 %v319, %v318
      %v378 = vpack.c.b16 %v321, %v320
      %v379 = vpack.c.b16 %v323, %v322
      %v380 = vpack.c.b16 %v325, %v324
      %v381 = vpack.c.b16 %v327, %v326
      %v382 = vpack.c.b16 %v329, %v328
      %v383 = vpack.c.b16 %v331, %v330
      %v384 = vpack.c.b16 %v333, %v332
      %v385 = vpack.c.b16 %v335, %v334
      %v386 = vpack.c.b16 %v337, %v336
      %v387 = vpack.c.b16 %v339, %v338
      %v388 = vpack.c.b16 %v341, %v340
      %v389 = vpack.c.b16 %v343, %v342
      %v390 = vpack.c.b16 %v345, %v344
      %v391 = vpack.c.b16 %v347, %v346
      %v392 = vpack.c.b16 %v349, %v348
      %v393 = vpack.c.b16 %v351, %v350
      %v394 = vpack.c.b16 %v353, %v352
      %v395 = vpack.c.b16 %v355, %v354
      %v396 = vpack.c.b16 %v357, %v356
      %v397 = vpack.c.b16 %v359, %v358
      %v398 = vpack.c.b16 %v361, %v360
      %v399 = vpack.c.b16 %v363, %v362
      %v400 = vpack.c.b16 %v365, %v364
      %v401 = vpack.c.b16 %v367, %v366
      %v402 = vpack.c.b16 %v369, %v368
      %v403 = vpack.c.b16 %v371, %v370
      %vm404 = vcmask 31744
      %v406 = vsel %vm404, %v372, 0
      %v409 = vsel %vm404, %v373, 0
      %v412 = vsel %vm404, %v374, 0
      %v415 = vsel %vm404, %v375, 0
      %v418 = vsel %vm404, %v376, 0
      %v421 = vsel %vm404, %v377, 0
      %v424 = vsel %vm404, %v378, 0
      %v427 = vsel %vm404, %v379, 0
      %v430 = vsel %vm404, %v380, 0
      %v433 = vsel %vm404, %v381, 0
      %v436 = vsel %vm404, %v382, 0
      %v439 = vsel %vm404, %v383, 0
      %v442 = vsel %vm404, %v384, 0
      %v445 = vsel %vm404, %v385, 0
      %v448 = vsel %vm404, %v386, 0
      %v451 = vsel %vm404, %v387, 0
      %v454 = vsel %vm404, %v388, 0
      %v457 = vsel %vm404, %v389, 0
      %v460 = vsel %vm404, %v390, 0
      %v463 = vsel %vm404, %v391, 0
      %v466 = vsel %vm404, %v392, 0
      %v469 = vsel %vm404, %v393, 0
      %v472 = vsel %vm404, %v394, 0
      %v475 = vsel %vm404, %v395, 0
      %v478 = vsel %vm404, %v396, 0
      %v481 = vsel %vm404, %v397, 0
      %v484 = vsel %vm404, %v398, 0
      %v487 = vsel %vm404, %v399, 0
      %v490 = vsel %vm404, %v400, 0
      %v493 = vsel %vm404, %v401, 0
      %v496 = vsel %vm404, %v402, 0
      %v499 = vsel %vm404, %v403, 0
      %vm501 = vcmask 1041408
      %v503 = vsel %vm501, %v239, 0
      %505 = vmatpush.bf16.msra.mxu0 0
      %506 = vmatpush.bf16.msra.mxu0 0
      %507 = vmatpush.bf16.msra.mxu0 0
      %508 = vmatpush.bf16.msra.mxu0 0
      %509 = vmatpush.bf16.msra.mxu0 0
      %510 = vmatpush.bf16.msra.mxu0 0
      %511 = vmatpush.bf16.msra.mxu0 0
      %512 = vmatpush.bf16.msra.mxu0 %v503
      %513 = vmatmul.bf16.gmra.mxu0 %v406
      %v514 = vpop.f32.mrf.mxu0
      %v515 = vadd.f32 %v242, %v514
      %v516 = vpop.f32.mrf.mxu0
      %v517 = vadd.f32 %v242, %v516
      %518 = vmatmul.bf16.gmra.mxu0 %v409
      %v519 = vpop.f32.mrf.mxu0
      %v520 = vadd.f32 %v242, %v519
      %v521 = vpop.f32.mrf.mxu0
      %v522 = vadd.f32 %v242, %v521
      %523 = vmatmul.bf16.gmra.mxu0 %v412
      %v524 = vpop.f32.mrf.mxu0
      %v525 = vadd.f32 %v242, %v524
      %v526 = vpop.f32.mrf.mxu0
      %v527 = vadd.f32 %v242, %v526
      %528 = vmatmul.bf16.gmra.mxu0 %v415
      %v529 = vpop.f32.mrf.mxu0
      %v530 = vadd.f32 %v242, %v529
      %v531 = vpop.f32.mrf.mxu0
      %v532 = vadd.f32 %v242, %v531
      %533 = vmatmul.bf16.gmra.mxu0 %v418
      %v534 = vpop.f32.mrf.mxu0
      %v535 = vadd.f32 %v242, %v534
      %v536 = vpop.f32.mrf.mxu0
      %v537 = vadd.f32 %v242, %v536
      %538 = vmatmul.bf16.gmra.mxu0 %v421
      %v539 = vpop.f32.mrf.mxu0
      %v540 = vadd.f32 %v242, %v539
      %v541 = vpop.f32.mrf.mxu0
      %v542 = vadd.f32 %v242, %v541
      %543 = vmatmul.bf16.gmra.mxu0 %v424
      %v544 = vpop.f32.mrf.mxu0
      %v545 = vadd.f32 %v242, %v544
      %v546 = vpop.f32.mrf.mxu0
      %v547 = vadd.f32 %v242, %v546
      %548 = vmatmul.bf16.gmra.mxu0 %v427
      %v549 = vpop.f32.mrf.mxu0
      %v550 = vadd.f32 %v242, %v549
      %v551 = vpop.f32.mrf.mxu0
      %v552 = vadd.f32 %v242, %v551
      %553 = vmatmul.bf16.gmra.mxu0 %v430
      %v554 = vpop.f32.mrf.mxu0
      %v555 = vadd.f32 %v242, %v554
      %v556 = vpop.f32.mrf.mxu0
      %v557 = vadd.f32 %v242, %v556
      %558 = vmatmul.bf16.gmra.mxu0 %v433
      %v559 = vpop.f32.mrf.mxu0
      %v560 = vadd.f32 %v242, %v559
      %v561 = vpop.f32.mrf.mxu0
      %v562 = vadd.f32 %v242, %v561
      %563 = vmatmul.bf16.gmra.mxu0 %v436
      %v564 = vpop.f32.mrf.mxu0
      %v565 = vadd.f32 %v242, %v564
      %v566 = vpop.f32.mrf.mxu0
      %v567 = vadd.f32 %v242, %v566
      %568 = vmatmul.bf16.gmra.mxu0 %v439
      %v569 = vpop.f32.mrf.mxu0
      %v570 = vadd.f32 %v242, %v569
      %v571 = vpop.f32.mrf.mxu0
      %v572 = vadd.f32 %v242, %v571
      %573 = vmatmul.bf16.gmra.mxu0 %v442
      %v574 = vpop.f32.mrf.mxu0
      %v575 = vadd.f32 %v242, %v574
      %v576 = vpop.f32.mrf.mxu0
      %v577 = vadd.f32 %v242, %v576
      %578 = vmatmul.bf16.gmra.mxu0 %v445
      %v579 = vpop.f32.mrf.mxu0
      %v580 = vadd.f32 %v242, %v579
      %v581 = vpop.f32.mrf.mxu0
      %v582 = vadd.f32 %v242, %v581
      %583 = vmatmul.bf16.gmra.mxu0 %v448
      %v584 = vpop.f32.mrf.mxu0
      %v585 = vadd.f32 %v242, %v584
      %v586 = vpop.f32.mrf.mxu0
      %v587 = vadd.f32 %v242, %v586
      %588 = vmatmul.bf16.gmra.mxu0 %v451
      %v589 = vpop.f32.mrf.mxu0
      %v590 = vadd.f32 %v242, %v589
      %v591 = vpop.f32.mrf.mxu0
      %v592 = vadd.f32 %v242, %v591
      %593 = vmatmul.bf16.gmra.mxu0 %v454
      %v594 = vpop.f32.mrf.mxu0
      %v595 = vadd.f32 %v242, %v594
      %v596 = vpop.f32.mrf.mxu0
      %v597 = vadd.f32 %v242, %v596
      %598 = vmatmul.bf16.gmra.mxu0 %v457
      %v599 = vpop.f32.mrf.mxu0
      %v600 = vadd.f32 %v242, %v599
      %v601 = vpop.f32.mrf.mxu0
      %v602 = vadd.f32 %v242, %v601
      %603 = vmatmul.bf16.gmra.mxu0 %v460
      %v604 = vpop.f32.mrf.mxu0
      %v605 = vadd.f32 %v242, %v604
      %v606 = vpop.f32.mrf.mxu0
      %v607 = vadd.f32 %v242, %v606
      %608 = vmatmul.bf16.gmra.mxu0 %v463
      %v609 = vpop.f32.mrf.mxu0
      %v610 = vadd.f32 %v242, %v609
      %v611 = vpop.f32.mrf.mxu0
      %v612 = vadd.f32 %v242, %v611
      %613 = vmatmul.bf16.gmra.mxu0 %v466
      %v614 = vpop.f32.mrf.mxu0
      %v615 = vadd.f32 %v242, %v614
      %v616 = vpop.f32.mrf.mxu0
      %v617 = vadd.f32 %v242, %v616
      %618 = vmatmul.bf16.gmra.mxu0 %v469
      %v619 = vpop.f32.mrf.mxu0
      %v620 = vadd.f32 %v242, %v619
      %v621 = vpop.f32.mrf.mxu0
      %v622 = vadd.f32 %v242, %v621
      %623 = vmatmul.bf16.gmra.mxu0 %v472
      %v624 = vpop.f32.mrf.mxu0
      %v625 = vadd.f32 %v242, %v624
      %v626 = vpop.f32.mrf.mxu0
      %v627 = vadd.f32 %v242, %v626
      %628 = vmatmul.bf16.gmra.mxu0 %v475
      %v629 = vpop.f32.mrf.mxu0
      %v630 = vadd.f32 %v242, %v629
      %v631 = vpop.f32.mrf.mxu0
      %v632 = vadd.f32 %v242, %v631
      %633 = vmatmul.bf16.gmra.mxu0 %v478
      %v634 = vpop.f32.mrf.mxu0
      %v635 = vadd.f32 %v242, %v634
      %v636 = vpop.f32.mrf.mxu0
      %v637 = vadd.f32 %v242, %v636
      %638 = vmatmul.bf16.gmra.mxu0 %v481
      %v639 = vpop.f32.mrf.mxu0
      %v640 = vadd.f32 %v242, %v639
      %v641 = vpop.f32.mrf.mxu0
      %v642 = vadd.f32 %v242, %v641
      %643 = vmatmul.bf16.gmra.mxu0 %v484
      %v644 = vpop.f32.mrf.mxu0
      %v645 = vadd.f32 %v242, %v644
      %v646 = vpop.f32.mrf.mxu0
      %v647 = vadd.f32 %v242, %v646
      %648 = vmatmul.bf16.gmra.mxu0 %v487
      %v649 = vpop.f32.mrf.mxu0
      %v650 = vadd.f32 %v242, %v649
      %v651 = vpop.f32.mrf.mxu0
      %v652 = vadd.f32 %v242, %v651
      %653 = vmatmul.bf16.gmra.mxu0 %v490
      %v654 = vpop.f32.mrf.mxu0
      %v655 = vadd.f32 %v242, %v654
      %v656 = vpop.f32.mrf.mxu0
      %v657 = vadd.f32 %v242, %v656
      %658 = vmatmul.bf16.gmra.mxu0 %v493
      %v659 = vpop.f32.mrf.mxu0
      %v660 = vadd.f32 %v242, %v659
      %v661 = vpop.f32.mrf.mxu0
      %v662 = vadd.f32 %v242, %v661
      %663 = vmatmul.bf16.gmra.mxu0 %v496
      %v664 = vpop.f32.mrf.mxu0
      %v665 = vadd.f32 %v242, %v664
      %v666 = vpop.f32.mrf.mxu0
      %v667 = vadd.f32 %v242, %v666
      %668 = vmatmul.bf16.gmra.mxu0 %v499
      %v669 = vpop.f32.mrf.mxu0
      %v670 = vadd.f32 %v242, %v669
      %v671 = vpop.f32.mrf.mxu0
      %v672 = vadd.f32 %v242, %v671
      %673 = vdwg.mxu0
      %v674 = vpack.c.bf16 %v515, %v515
      %v675 = vpack.c.bf16 %v517, %v517
      %v676 = vpack.c.bf16 %v520, %v520
      %v677 = vpack.c.bf16 %v522, %v522
      %v678 = vpack.c.bf16 %v525, %v525
      %v679 = vpack.c.bf16 %v527, %v527
      %v680 = vpack.c.bf16 %v530, %v530
      %v681 = vpack.c.bf16 %v532, %v532
      %v682 = vpack.c.bf16 %v535, %v535
      %v683 = vpack.c.bf16 %v537, %v537
      %v684 = vpack.c.bf16 %v540, %v540
      %v685 = vpack.c.bf16 %v542, %v542
      %v686 = vpack.c.bf16 %v545, %v545
      %v687 = vpack.c.bf16 %v547, %v547
      %v688 = vpack.c.bf16 %v550, %v550
      %v689 = vpack.c.bf16 %v552, %v552
      %v690 = vpack.c.bf16 %v555, %v555
      %v691 = vpack.c.bf16 %v557, %v557
      %v692 = vpack.c.bf16 %v560, %v560
      %v693 = vpack.c.bf16 %v562, %v562
      %v694 = vpack.c.bf16 %v565, %v565
      %v695 = vpack.c.bf16 %v567, %v567
      %v696 = vpack.c.bf16 %v570, %v570
      %v697 = vpack.c.bf16 %v572, %v572
      %v698 = vpack.c.bf16 %v575, %v575
      %v699 = vpack.c.bf16 %v577, %v577
      %v700 = vpack.c.bf16 %v580, %v580
      %v701 = vpack.c.bf16 %v582, %v582
      %v702 = vpack.c.bf16 %v585, %v585
      %v703 = vpack.c.bf16 %v587, %v587
      %v704 = vpack.c.bf16 %v590, %v590
      %v705 = vpack.c.bf16 %v592, %v592
      %v706 = vpack.c.bf16 %v595, %v595
      %v707 = vpack.c.bf16 %v597, %v597
      %v708 = vpack.c.bf16 %v600, %v600
      %v709 = vpack.c.bf16 %v602, %v602
      %v710 = vpack.c.bf16 %v605, %v605
      %v711 = vpack.c.bf16 %v607, %v607
      %v712 = vpack.c.bf16 %v610, %v610
      %v713 = vpack.c.bf16 %v612, %v612
      %v714 = vpack.c.bf16 %v615, %v615
      %v715 = vpack.c.bf16 %v617, %v617
      %v716 = vpack.c.bf16 %v620, %v620
      %v717 = vpack.c.bf16 %v622, %v622
      %v718 = vpack.c.bf16 %v625, %v625
      %v719 = vpack.c.bf16 %v627, %v627
      %v720 = vpack.c.bf16 %v630, %v630
      %v721 = vpack.c.bf16 %v632, %v632
      %v722 = vpack.c.bf16 %v635, %v635
      %v723 = vpack.c.bf16 %v637, %v637
      %v724 = vpack.c.bf16 %v640, %v640
      %v725 = vpack.c.bf16 %v642, %v642
      %v726 = vpack.c.bf16 %v645, %v645
      %v727 = vpack.c.bf16 %v647, %v647
      %v728 = vpack.c.bf16 %v650, %v650
      %v729 = vpack.c.bf16 %v652, %v652
      %v730 = vpack.c.bf16 %v655, %v655
      %v731 = vpack.c.bf16 %v657, %v657
      %v732 = vpack.c.bf16 %v660, %v660
      %v733 = vpack.c.bf16 %v662, %v662
      %v734 = vpack.c.bf16 %v665, %v665
      %v735 = vpack.c.bf16 %v667, %v667
      %v736 = vpack.c.bf16 %v670, %v670
      %v737 = vpack.c.bf16 %v672, %v672
      %vm738 = vcmask 125952
      %739 = vst.msk [vmem:[%s172] sm:$0xf] %vm738, %v674
      %740 = vst.msk [vmem:[%s172 + $0x4] sm:$0xf] %vm738, %v675
      %741 = vst.msk [vmem:[%s172 + $0x8] sm:$0xf] %vm738, %v676
      %742 = vst.msk [vmem:[%s172 + $0xc] sm:$0xf] %vm738, %v677
      %743 = vst.msk [vmem:[%s172 + $0x10] sm:$0xf] %vm738, %v678
      %744 = vst.msk [vmem:[%s172 + $0x14] sm:$0xf] %vm738, %v679
      %745 = vst.msk [vmem:[%s172 + $0x18] sm:$0xf] %vm738, %v680
      %746 = vst.msk [vmem:[%s172 + $0x1c] sm:$0xf] %vm738, %v681
      %747 = vst.msk [vmem:[%s172 + $0x20] sm:$0xf] %vm738, %v682
      %748 = vst.msk [vmem:[%s172 + $0x24] sm:$0xf] %vm738, %v683
      %749 = vst.msk [vmem:[%s172 + $0x28] sm:$0xf] %vm738, %v684
      %750 = vst.msk [vmem:[%s172 + $0x2c] sm:$0xf] %vm738, %v685
      %751 = vst.msk [vmem:[%s172 + $0x30] sm:$0xf] %vm738, %v686
      %752 = vst.msk [vmem:[%s172 + $0x34] sm:$0xf] %vm738, %v687
      %753 = vst.msk [vmem:[%s172 + $0x38] sm:$0xf] %vm738, %v688
      %754 = vst.msk [vmem:[%s172 + $0x3c] sm:$0xf] %vm738, %v689
      %755 = vst.msk [vmem:[%s172 + $0x40] sm:$0xf] %vm738, %v690
      %756 = vst.msk [vmem:[%s172 + $0x44] sm:$0xf] %vm738, %v691
      %757 = vst.msk [vmem:[%s172 + $0x48] sm:$0xf] %vm738, %v692
      %758 = vst.msk [vmem:[%s172 + $0x4c] sm:$0xf] %vm738, %v693
      %759 = vst.msk [vmem:[%s172 + $0x50] sm:$0xf] %vm738, %v694
      %760 = vst.msk [vmem:[%s172 + $0x54] sm:$0xf] %vm738, %v695
      %761 = vst.msk [vmem:[%s172 + $0x58] sm:$0xf] %vm738, %v696
      %762 = vst.msk [vmem:[%s172 + $0x5c] sm:$0xf] %vm738, %v697
      %763 = vst.msk [vmem:[%s172 + $0x60] sm:$0xf] %vm738, %v698
      %764 = vst.msk [vmem:[%s172 + $0x64] sm:$0xf] %vm738, %v699
      %765 = vst.msk [vmem:[%s172 + $0x68] sm:$0xf] %vm738, %v700
      %766 = vst.msk [vmem:[%s172 + $0x6c] sm:$0xf] %vm738, %v701
      %767 = vst.msk [vmem:[%s172 + $0x70] sm:$0xf] %vm738, %v702
      %768 = vst.msk [vmem:[%s172 + $0x74] sm:$0xf] %vm738, %v703
      %769 = vst.msk [vmem:[%s172 + $0x78] sm:$0xf] %vm738, %v704
      %770 = vst.msk [vmem:[%s172 + $0x7c] sm:$0xf] %vm738, %v705
      %771 = vst.msk [vmem:[%s172 + $0x80] sm:$0xf] %vm738, %v706
      %772 = vst.msk [vmem:[%s172 + $0x84] sm:$0xf] %vm738, %v707
      %773 = vst.msk [vmem:[%s172 + $0x88] sm:$0xf] %vm738, %v708
      %774 = vst.msk [vmem:[%s172 + $0x8c] sm:$0xf] %vm738, %v709
      %775 = vst.msk [vmem:[%s172 + $0x90] sm:$0xf] %vm738, %v710
      %776 = vst.msk [vmem:[%s172 + $0x94] sm:$0xf] %vm738, %v711
      %777 = vst.msk [vmem:[%s172 + $0x98] sm:$0xf] %vm738, %v712
      %778 = vst.msk [vmem:[%s172 + $0x9c] sm:$0xf] %vm738, %v713
      %779 = vst.msk [vmem:[%s172 + $0xa0] sm:$0xf] %vm738, %v714
      %780 = vst.msk [vmem:[%s172 + $0xa4] sm:$0xf] %vm738, %v715
      %781 = vst.msk [vmem:[%s172 + $0xa8] sm:$0xf] %vm738, %v716
      %782 = vst.msk [vmem:[%s172 + $0xac] sm:$0xf] %vm738, %v717
      %783 = vst.msk [vmem:[%s172 + $0xb0] sm:$0xf] %vm738, %v718
      %784 = vst.msk [vmem:[%s172 + $0xb4] sm:$0xf] %vm738, %v719
      %785 = vst.msk [vmem:[%s172 + $0xb8] sm:$0xf] %vm738, %v720
      %786 = vst.msk [vmem:[%s172 + $0xbc] sm:$0xf] %vm738, %v721
      %787 = vst.msk [vmem:[%s172 + $0xc0] sm:$0xf] %vm738, %v722
      %788 = vst.msk [vmem:[%s172 + $0xc4] sm:$0xf] %vm738, %v723
      %789 = vst.msk [vmem:[%s172 + $0xc8] sm:$0xf] %vm738, %v724
      %790 = vst.msk [vmem:[%s172 + $0xcc] sm:$0xf] %vm738, %v725
      %791 = vst.msk [vmem:[%s172 + $0xd0] sm:$0xf] %vm738, %v726
      %792 = vst.msk [vmem:[%s172 + $0xd4] sm:$0xf] %vm738, %v727
      %793 = vst.msk [vmem:[%s172 + $0xd8] sm:$0xf] %vm738, %v728
      %794 = vst.msk [vmem:[%s172 + $0xdc] sm:$0xf] %vm738, %v729
      %795 = vst.msk [vmem:[%s172 + $0xe0] sm:$0xf] %vm738, %v730
      %796 = vst.msk [vmem:[%s172 + $0xe4] sm:$0xf] %vm738, %v731
      %797 = vst.msk [vmem:[%s172 + $0xe8] sm:$0xf] %vm738, %v732
      %798 = vst.msk [vmem:[%s172 + $0xec] sm:$0xf] %vm738, %v733
      %799 = vst.msk [vmem:[%s172 + $0xf0] sm:$0xf] %vm738, %v734
      %800 = vst.msk [vmem:[%s172 + $0xf4] sm:$0xf] %vm738, %v735
      %801 = vst.msk [vmem:[%s172 + $0xf8] sm:$0xf] %vm738, %v736
      %802 = vst.msk [vmem:[%s172 + $0xfc] sm:$0xf] %vm738, %v737
      %s803 = smul.u32 64, %s14
      %p804 = scmp.lt.s32.totalorder %s803, 255
      %s805 = scalar_select %p804, %s803, 255
      %s806 = smul.addr %s805, 4
      %s807 = scalar_lea.vmem %s3, %s806
      // Predicated region
      $region33: #{esa_forward.20} parent=31 // pred_check
        %p808 = pneg %p100
      $region34: #{esa_forward.20} parent=31 // pred_check_branch
        %810 = sbr.rel (%p808) target = $region36
      $region35: #{esa_forward.20} parent=31 // pred_region
        %s811 = smul.u32 64, %s14
      $region36: #{esa_forward.20} parent=31 // pred_fallthru
        _
    $region32: #{esa_forward.20} parent=5 // pred_fallthru
      _
    %p812 = scmp.le.s32.totalorder 2, %s9
    // Predicated region
    $region37: #{esa_forward.20} parent=5 // pred_check
      %p813 = pneg %p812
    $region38: #{esa_forward.20} parent=5 // pred_check_branch
      %815 = sbr.rel (%p813) target = $region40
    $region39: #{esa_forward.20} parent=5 // pred_region
      %s816 = ssub.s32 %s9, 2
      // Predicated region
      $region41: #{esa_forward.20} parent=39 // pred_check
        %p817 = pneg %p106
      $region42: #{esa_forward.20} parent=39 // pred_check_branch
        %819 = sbr.rel (%p817) target = $region44
      $region43: #{esa_forward.20} parent=39 // pred_region
        %s820 = smul.u32 64, %s15
        %p821 = scmp.lt.s32.totalorder %s820, 255
        %s822 = scalar_select %p821, %s820, 255
        %s823 = smul.addr %s822, 4
        %s824 = scalar_lea.vmem %s3, %s823
      $region44: #{esa_forward.20} parent=39 // pred_fallthru
        _
    $region40: #{esa_forward.20} parent=5 // pred_fallthru
      _
  $region6: #{esa_forward.20} parent=0 // loop_footer
    %s13 = sadd.s32 1, %s9
  $region7: #{esa_forward.20} parent=0 // loop_footer_branch
    %8 = sbr.rel target = $region3
  $region8: #{esa_forward.20} parent=0 // loop_exit
    _

// kernel: esa_forward.21
$region0: #{esa_forward.21}
  #allocation0 [shape = 'u32[]', space=smem, size = 0x4, offset = 0x4, fixed_abs, tag = 'smem constant byte address 0x4 - core index']
  #allocation1 [shape = 'u32[72,128]{1,0:T(1,128)}', space=vmem, size = 0x9000, scoped, tag = 'internal scratch']
  %s0 = inlined_call_operand.vmem [shape: bf16[32,3], index: 0, kind: input, shape index: {}]
  %s1 = inlined_call_operand.vmem [shape: bf16[2,3,512], index: 1, kind: input, shape index: {}]
  %s2 = inlined_call_operand.vmem [shape: bf16[2,32,512], index: 2, kind: input, shape index: {}]
  %s3 = inlined_call_operand.vmem [shape: f32[2,32,512], index: 3, kind: input, shape index: {}]
  %s4 = inlined_call_operand.vmem [shape: f32[2,32,512], index: 4, kind: output, shape index: {}]
  %s5 = sld [smem:[#allocation0]]
  $region49: #{esa_forward.21} parent=0
    _
  %s7 = ssub.s32 1, %s5
  %s8 = scalar_select 0, %s7, %s5
  loop: start=0, step=1, limit=4
  $region2: #{esa_forward.21} parent=0 // loop_pre_header
    _
  $region3: #{esa_forward.21} parent=0 // loop_header
    %s10 = sphi 0, %s14
    %p11 = scmp.ge.s32.totalorder %s10, 4
    %s17 = sphi 0, %s29
    %s18 = sphi 0, %s25
    %s19 = sphi 0, %s17
    %s20 = sphi 0, %s18
    %s21 = sphi 0, %s19
    %s22 = sphi 0, %s20
    %s32 = sphi 0, %s34
    %s35 = sphi 0, %s32
    %s36 = sphi 0, %s35
    %s52 = sphi 0, %s36
    %s58 = sphi 0, %s60
    %s61 = sphi 0, %s58
    %s62 = sphi 0, %s61
    %s78 = sphi 0, %s62
    %s86 = sphi 0, %s88
    %s89 = sphi 0, %s86
    %s90 = sphi 0, %s89
    %s106 = sphi 0, %s90
    %s114 = sphi 0, %s116
    %s117 = sphi 0, %s114
    %s118 = sphi 0, %s117
    %s134 = sphi 0, %s118
    %s142 = sphi 0, %s144
    %s145 = sphi 0, %s142
    %s146 = sphi 0, %s145
    %s162 = sphi 0, %s146
  $region4: #{esa_forward.21} parent=0 // loop_header_branch
    %13 = sbr.rel (%p11) target = $region8
  $region5: #{esa_forward.21} parent=0 // loop_body
    %s15 = ssub.s32 %s10, 1
    %s16 = ssub.s32 %s10, 2
    %s23 = sadd.s32 1, %s18
    %p24 = scmp.ge.s32.totalorder %s23, 1
    %s25 = scalar_select %p24, 0, %s23
    %s26 = sadd.s32 1, %s17
    %s27 = scalar_select %p24, %s26, %s17
    %p28 = scmp.ge.s32.totalorder %s27, 2
    %s29 = scalar_select %p28, 0, %s27
    %s30 = ssub.s32 %s18, %s25
    %p31 = scmp.eq.s32.totalorder %s30, 0
    %s33 = sadd.s32 %s32, 1
    %s34 = scalar_select %p31, %s32, %s33
    %p37 = pneg %p31
    %p38 = scmp.eq.s32.totalorder %s10, 1
    %p39 = por %p37, %p38
    %p40 = scmp.ne.s32.totalorder %s32, %s35
    %p41 = scmp.eq.s32.totalorder %s10, 0
    %p42 = por %p40, %p41
    %p43 = scmp.ne.s32.totalorder %s32, %s35
    %p44 = scmp.eq.s32.totalorder %s15, 1
    %p45 = por %p43, %p44
    %p46 = scmp.ne.s32.totalorder %s35, %s36
    %p47 = scmp.eq.s32.totalorder %s15, 0
    %p48 = por %p46, %p47
    %p49 = scmp.ne.s32.totalorder %s35, %s36
    %p50 = scmp.eq.s32.totalorder %s16, 1
    %p51 = por %p49, %p50
    %p53 = scmp.ne.s32.totalorder %s36, %s52
    %p54 = scmp.eq.s32.totalorder %s16, 0
    %p55 = por %p53, %p54
    %s56 = ssub.s32 %s17, %s29
    %p57 = scmp.eq.s32.totalorder %s56, 0
    %s59 = sadd.s32 %s58, 1
    %s60 = scalar_select %p57, %s58, %s59
    %p63 = pneg %p57
    %p64 = scmp.eq.s32.totalorder %s10, 1
    %p65 = por %p63, %p64
    %p66 = scmp.ne.s32.totalorder %s58, %s61
    %p67 = scmp.eq.s32.totalorder %s10, 0
    %p68 = por %p66, %p67
    %p69 = scmp.ne.s32.totalorder %s58, %s61
    %p70 = scmp.eq.s32.totalorder %s15, 1
    %p71 = por %p69, %p70
    %p72 = scmp.ne.s32.totalorder %s61, %s62
    %p73 = scmp.eq.s32.totalorder %s15, 0
    %p74 = por %p72, %p73
    %p75 = scmp.ne.s32.totalorder %s61, %s62
    %p76 = scmp.eq.s32.totalorder %s16, 1
    %p77 = por %p75, %p76
    %p79 = scmp.ne.s32.totalorder %s62, %s78
    %p80 = scmp.eq.s32.totalorder %s16, 0
    %p81 = por %p79, %p80
    %s82 = ssub.s32 %s17, %s29
    %s83 = ssub.s32 %s18, %s25
    %s84 = sor.u32 %s82, %s83
    %p85 = scmp.eq.s32.totalorder %s84, 0
    %s87 = sadd.s32 %s86, 1
    %s88 = scalar_select %p85, %s86, %s87
    %p91 = pneg %p85
    %p92 = scmp.eq.s32.totalorder %s10, 1
    %p93 = por %p91, %p92
    %p94 = scmp.ne.s32.totalorder %s86, %s89
    %p95 = scmp.eq.s32.totalorder %s10, 0
    %p96 = por %p94, %p95
    %p97 = scmp.ne.s32.totalorder %s86, %s89
    %p98 = scmp.eq.s32.totalorder %s15, 1
    %p99 = por %p97, %p98
    %p100 = scmp.ne.s32.totalorder %s89, %s90
    %p101 = scmp.eq.s32.totalorder %s15, 0
    %p102 = por %p100, %p101
    %p103 = scmp.ne.s32.totalorder %s89, %s90
    %p104 = scmp.eq.s32.totalorder %s16, 1
    %p105 = por %p103, %p104
    %p107 = scmp.ne.s32.totalorder %s90, %s106
    %p108 = scmp.eq.s32.totalorder %s16, 0
    %p109 = por %p107, %p108
    %s110 = ssub.s32 %s17, %s29
    %s111 = ssub.s32 %s18, %s25
    %s112 = sor.u32 %s110, %s111
    %p113 = scmp.eq.s32.totalorder %s112, 0
    %s115 = sadd.s32 %s114, 1
    %s116 = scalar_select %p113, %s114, %s115
    %p119 = pneg %p113
    %p120 = scmp.eq.s32.totalorder %s10, 1
    %p121 = por %p119, %p120
    %p122 = scmp.ne.s32.totalorder %s114, %s117
    %p123 = scmp.eq.s32.totalorder %s10, 0
    %p124 = por %p122, %p123
    %p125 = scmp.ne.s32.totalorder %s114, %s117
    %p126 = scmp.eq.s32.totalorder %s15, 1
    %p127 = por %p125, %p126
    %p128 = scmp.ne.s32.totalorder %s117, %s118
    %p129 = scmp.eq.s32.totalorder %s15, 0
    %p130 = por %p128, %p129
    %p131 = scmp.ne.s32.totalorder %s117, %s118
    %p132 = scmp.eq.s32.totalorder %s16, 1
    %p133 = por %p131, %p132
    %p135 = scmp.ne.s32.totalorder %s118, %s134
    %p136 = scmp.eq.s32.totalorder %s16, 0
    %p137 = por %p135, %p136
    %s138 = ssub.s32 %s17, %s29
    %s139 = ssub.s32 %s18, %s25
    %s140 = sor.u32 %s138, %s139
    %p141 = scmp.eq.s32.totalorder %s140, 0
    %s143 = sadd.s32 %s142, 1
    %s144 = scalar_select %p141, %s142, %s143
    %p147 = pneg %p141
    %p148 = scmp.eq.s32.totalorder %s10, 1
    %p149 = por %p147, %p148
    %p150 = scmp.ne.s32.totalorder %s142, %s145
    %p151 = scmp.eq.s32.totalorder %s10, 0
    %p152 = por %p150, %p151
    %p153 = scmp.ne.s32.totalorder %s142, %s145
    %p154 = scmp.eq.s32.totalorder %s15, 1
    %p155 = por %p153, %p154
    %p156 = scmp.ne.s32.totalorder %s145, %s146
    %p157 = scmp.eq.s32.totalorder %s15, 0
    %p158 = por %p156, %p157
    %p159 = scmp.ne.s32.totalorder %s145, %s146
    %p160 = scmp.eq.s32.totalorder %s16, 1
    %p161 = por %p159, %p160
    %p163 = scmp.ne.s32.totalorder %s146, %s162
    %p164 = scmp.eq.s32.totalorder %s16, 0
    %p165 = por %p163, %p164
    %p166 = scmp.le.s32.totalorder 1, %s10
    %p167 = scmp.lt.s32.totalorder %s10, 3
    %p168 = pnand %p166, %p167
    %p169 = pneg %p168
    // Predicated region
    $region9: #{esa_forward.21} parent=5 // pred_check
      _
    $region10: #{esa_forward.21} parent=5 // pred_check_branch
      %171 = sbr.rel (%p168) target = $region12
    $region11: #{esa_forward.21} parent=5 // pred_region
      %s172 = ssub.s32 %s10, 1
      // Predicated region
      $region13: #{esa_forward.21} parent=11 // pred_check
        %p173 = pneg %p48
      $region14: #{esa_forward.21} parent=11 // pred_check_branch
        %175 = sbr.rel (%p173) target = $region16
      $region15: #{esa_forward.21} parent=11 // pred_region
        %s176 = smul.u32 4, %s20
        %p177 = scmp.lt.s32.totalorder %s176, 3
        %s178 = scalar_select %p177, %s176, 3
        %s179 = smul.addr %s178, 4
        %s180 = scalar_lea.vmem %s0, %s179
        %s181 = smul.u32 4, %s20
      $region16: #{esa_forward.21} parent=11 // pred_fallthru
        _
    $region12: #{esa_forward.21} parent=5 // pred_fallthru
      _
    %p182 = scmp.lt.s32.totalorder %s10, 2
    // Predicated region
    $region17: #{esa_forward.21} parent=5 // pred_check
      %p183 = pneg %p182
    $region18: #{esa_forward.21} parent=5 // pred_check_branch
      %185 = sbr.rel (%p183) target = $region20
    $region19: #{esa_forward.21} parent=5 // pred_region
      // Predicated region
      $region21: #{esa_forward.21} parent=19 // pred_check
        %p186 = pneg %p68
      $region22: #{esa_forward.21} parent=19 // pred_check_branch
        %188 = sbr.rel (%p186) target = $region24
      $region23: #{esa_forward.21} parent=19 // pred_region
        %p189 = scmp.lt.s32.totalorder %s17, 1
        %s190 = scalar_select %p189, %s17, 1
        %s191 = smul.addr %s190, 4
        %s192 = smul.addr %s191, 2
        %s193 = scalar_lea.vmem %s1, %s192
      $region24: #{esa_forward.21} parent=19 // pred_fallthru
        _
      // Predicated region
      $region25: #{esa_forward.21} parent=19 // pred_check
        %p194 = pneg %p96
      $region26: #{esa_forward.21} parent=19 // pred_check_branch
        %196 = sbr.rel (%p194) target = $region28
      $region27: #{esa_forward.21} parent=19 // pred_region
        %s197 = smul.u32 4, %s18
        %p198 = scmp.lt.s32.totalorder %s17, 1
        %s199 = scalar_select %p198, %s17, 1
        %p200 = scmp.lt.s32.totalorder %s197, 3
        %s201 = scalar_select %p200, %s197, 3
        %s202 = smul.addr %s201, 4
        %s203 = smul.addr %s199, 16
        %s204 = sadd.s32 %s202, %s203
        %s205 = smul.addr %s204, 4
        %s206 = scalar_lea.vmem %s2, %s205
        %s207 = smul.u32 4, %s18
      $region28: #{esa_forward.21} parent=19 // pred_fallthru
        _
      // Predicated region
      $region29: #{esa_forward.21} parent=19 // pred_check
        %p208 = pneg %p124
      $region30: #{esa_forward.21} parent=19 // pred_check_branch
        %210 = sbr.rel (%p208) target = $region32
      $region31: #{esa_forward.21} parent=19 // pred_region
        %s211 = smul.u32 4, %s18
        %p212 = scmp.lt.s32.totalorder %s17, 1
        %s213 = scalar_select %p212, %s17, 1
        %p214 = scmp.lt.s32.totalorder %s211, 3
        %s215 = scalar_select %p214, %s211, 3
        %s216 = smul.addr %s215, 4
        %s217 = smul.addr %s213, 16
        %s218 = sadd.s32 %s216, %s217
        %s219 = smul.addr %s218, 8
        %s220 = scalar_lea.vmem %s3, %s219
        %s221 = smul.u32 4, %s18
      $region32: #{esa_forward.21} parent=19 // pred_fallthru
        _
    $region20: #{esa_forward.21} parent=5 // pred_fallthru
      _
    %p222 = scmp.le.s32.totalorder 1, %s10
    %p223 = scmp.lt.s32.totalorder %s10, 3
    %p224 = pnand %p222, %p223
    %p225 = pneg %p224
    // Predicated region
    $region33: #{esa_forward.21} parent=5 // pred_check
      _
    $region34: #{esa_forward.21} parent=5 // pred_check_branch
      %227 = sbr.rel (%p224) target = $region36
    $region35: #{esa_forward.21} parent=5 // pred_region
      %s228 = ssub.s32 %s10, 1
      %s229 = smul.u32 4, %s20
      %p230 = scmp.lt.s32.totalorder %s229, 3
      %s231 = scalar_select %p230, %s229, 3
      %s232 = smul.addr %s231, 4
      %s233 = scalar_lea.vmem %s0, %s232
      %p234 = pneg %p48
      %p235 = pneg %p45
      %p236 = scmp.lt.s32.totalorder %s19, 1
      %s237 = scalar_select %p236, %s19, 1
      %s238 = smul.addr %s237, 4
      %s239 = smul.addr %s238, 2
      %s240 = scalar_lea.vmem %s1, %s239
      %p241 = pneg %p74
      %p242 = pneg %p71
      %s243 = smul.u32 4, %s20
      %p244 = scmp.lt.s32.totalorder %s19, 1
      %s245 = scalar_select %p244, %s19, 1
      %p246 = scmp.lt.s32.totalorder %s243, 3
      %s247 = scalar_select %p246, %s243, 3
      %s248 = smul.addr %s247, 4
      %s249 = smul.addr %s245, 16
      %s250 = sadd.s32 %s248, %s249
      %s251 = smul.addr %s250, 4
      %s252 = scalar_lea.vmem %s2, %s251
      %p253 = pneg %p102
      %p254 = pneg %p99
      %s255 = smul.u32 4, %s20
      %p256 = scmp.lt.s32.totalorder %s19, 1
      %s257 = scalar_select %p256, %s19, 1
      %p258 = scmp.lt.s32.totalorder %s255, 3
      %s259 = scalar_select %p258, %s255, 3
      %s260 = smul.addr %s259, 4
      %s261 = smul.addr %s257, 16
      %s262 = sadd.s32 %s260, %s261
      %s263 = smul.addr %s262, 8
      %s264 = scalar_lea.vmem %s3, %s263
      %p265 = pneg %p130
      %p266 = pneg %p127
      %p267 = pneg %p158
      %p268 = pneg %p155
      %s269 = smul.u32 4, %s20
      %p270 = scmp.lt.s32.totalorder %s19, 1
      %s271 = scalar_select %p270, %s19, 1
      %p272 = scmp.lt.s32.totalorder %s269, 3
      %s273 = scalar_select %p272, %s269, 3
      %s274 = smul.addr %s273, 4
      %s275 = smul.addr %s271, 16
      %s276 = sadd.s32 %s274, %s275
      %s277 = smul.addr %s276, 8
      %s278 = scalar_lea.vmem %s4, %s277
      %s279 = smul.u32 4, %s20
      %p280 = scmp.lt.s32.totalorder %s279, 3
      %s281 = scalar_select %p280, %s279, 3
      %s282 = smul.addr %s281, 4
      %s283 = scalar_lea.vmem %s0, %s282
      %s284 = smul.u32 4, %s20
      %p285 = scmp.lt.s32.totalorder %s19, 1
      %s286 = scalar_select %p285, %s19, 1
      %s287 = smul.addr %s286, 4
      %s288 = smul.addr %s287, 2
      %s289 = scalar_lea.vmem %s1, %s288
      %s290 = smul.u32 4, %s20
      %p291 = scmp.lt.s32.totalorder %s19, 1
      %s292 = scalar_select %p291, %s19, 1
      %p293 = scmp.lt.s32.totalorder %s290, 3
      %s294 = scalar_select %p293, %s290, 3
      %s295 = smul.addr %s294, 4
      %s296 = smul.addr %s292, 16
      %s297 = sadd.s32 %s295, %s296
      %s298 = smul.addr %s297, 4
      %s299 = scalar_lea.vmem %s2, %s298
      %s300 = smul.u32 4, %s20
      %s301 = smul.u32 4, %s20
      %p302 = scmp.lt.s32.totalorder %s19, 1
      %s303 = scalar_select %p302, %s19, 1
      %p304 = scmp.lt.s32.totalorder %s301, 3
      %s305 = scalar_select %p304, %s301, 3
      %s306 = smul.addr %s305, 4
      %s307 = smul.addr %s303, 16
      %s308 = sadd.s32 %s306, %s307
      %s309 = smul.addr %s308, 8
      %s310 = scalar_lea.vmem %s3, %s309
      %s311 = smul.u32 4, %s20
      %s312 = smul.u32 4, %s20
      %p313 = scmp.lt.s32.totalorder %s19, 1
      %s314 = scalar_select %p313, %s19, 1
      %p315 = scmp.lt.s32.totalorder %s312, 3
      %s316 = scalar_select %p315, %s312, 3
      %s317 = smul.addr %s316, 4
      %s318 = smul.addr %s314, 16
      %s319 = sadd.s32 %s317, %s318
      %s320 = smul.addr %s319, 8
      %s321 = scalar_lea.vmem %s4, %s320
      %s322 = smul.u32 4, %s20
      %v324 = vld [vmem:[%s283] sm:$0xf]
      %v325 = vld [vmem:[%s283 + $0x4] sm:$0xf]
      %v326 = vld [vmem:[%s283 + $0x8] sm:$0xf]
      %v327 = vld [vmem:[%s283 + $0xc] sm:$0xf]
      %v328 = vld [vmem:[%s289] sm:$0xff]
      %v329 = vld [vmem:[%s299] sm:$0xff]
      %v330 = vld [vmem:[%s299 + $0x8] sm:$0xff]
      %v331 = vld [vmem:[%s299 + $0x10] sm:$0xff]
      %v332 = vld [vmem:[%s299 + $0x18] sm:$0xff]
      %v333 = vld [vmem:[%s299 + $0x20] sm:$0xff]
      %v334 = vld [vmem:[%s299 + $0x28] sm:$0xff]
      %v335 = vld [vmem:[%s299 + $0x30] sm:$0xff]
      %v336 = vld [vmem:[%s299 + $0x38] sm:$0xff]
      %v337 = vunpack.c.l.bf16 %v329
      %v338 = vunpack.c.h.bf16 %v329
      %v339 = vunpack.c.l.bf16 %v330
      %v340 = vunpack.c.h.bf16 %v330
      %v341 = vunpack.c.l.bf16 %v331
      %v342 = vunpack.c.h.bf16 %v331
      %v343 = vunpack.c.l.bf16 %v332
      %v344 = vunpack.c.h.bf16 %v332
      %v345 = vunpack.c.l.bf16 %v333
      %v346 = vunpack.c.h.bf16 %v333
      %v347 = vunpack.c.l.bf16 %v334
      %v348 = vunpack.c.h.bf16 %v334
      %v349 = vunpack.c.l.bf16 %v335
      %v350 = vunpack.c.h.bf16 %v335
      %v351 = vunpack.c.l.bf16 %v336
      %v352 = vunpack.c.h.bf16 %v336
      %v357 = vunpack.c.l.b16 %v324
      %v358 = vunpack.c.l.b16 %v325
      %v359 = vunpack.c.l.b16 %v326
      %v360 = vunpack.c.l.b16 %v327
      %v361 = vpack.c.b16 %v358, %v357
      %v362 = vpack.c.b16 %v360, %v359
      %364 = vst [vmem:[#allocation1] ss:$4 sm:$0xff] %v328
      %v365 = vld.sshfl [vmem:[#allocation1] sm:$0xff pattern:$0x73625140]
      %v366 = vld.sshfl [vmem:[#allocation1 + $0x8] sm:$0xff pattern:$0x73625140]
      %v367 = vld.sshfl [vmem:[#allocation1 + $0x10] sm:$0xff pattern:$0x73625140]
      %v368 = vld.sshfl [vmem:[#allocation1 + $0x18] sm:$0xff pattern:$0x73625140]
      %vm369 = vcmask 23552
      %v371 = vsel %vm369, %v361, 0
      %v374 = vsel %vm369, %v362, 0
      %vm376 = vcmask 1040384
      %vm377 = vcmask 1041408
      %v378 = vsel %vm376, 4294967295, 65535
      %v379 = vsel %vm377, %v378, 0
      %v380 = vand.u32 %v365, %v379
      %v382 = vand.u32 %v366, %v379
      %v384 = vand.u32 %v367, %v379
      %v386 = vand.u32 %v368, %v379
      %388 = vmatpush.bf16.msra.mxu0 0
      %389 = vmatpush.bf16.msra.mxu0 0
      %390 = vmatpush.bf16.msra.mxu0 0
      %391 = vmatpush.bf16.msra.mxu0 0
      %392 = vmatpush.bf16.msra.mxu0 0
      %393 = vmatpush.bf16.msra.mxu0 0
      %394 = vmatpush.bf16.msra.mxu0 0
      %395 = vmatpush.bf16.msra.mxu0 %v380
      %396 = vmatmul.bf16.gmra.mxu0 %v371
      %v397 = vpop.f32.mrf.mxu0
      %v398 = vadd.f32 %v337, %v397
      %v399 = vpop.f32.mrf.mxu0
      %v400 = vadd.f32 %v341, %v399
      %401 = vmatmul.bf16.gmra.mxu0 %v374
      %v402 = vpop.f32.mrf.mxu0
      %v403 = vadd.f32 %v345, %v402
      %v404 = vpop.f32.mrf.mxu0
      %v405 = vadd.f32 %v349, %v404
      %406 = vdwg.mxu0
      %407 = vmatpush.bf16.msra.mxu0 0
      %408 = vmatpush.bf16.msra.mxu0 0
      %409 = vmatpush.bf16.msra.mxu0 0
      %410 = vmatpush.bf16.msra.mxu0 0
      %411 = vmatpush.bf16.msra.mxu0 0
      %412 = vmatpush.bf16.msra.mxu0 0
      %413 = vmatpush.bf16.msra.mxu0 0
      %414 = vmatpush.bf16.msra.mxu0 %v382
      %415 = vmatmul.bf16.gmra.mxu0 %v371
      %v416 = vpop.f32.mrf.mxu0
      %v417 = vadd.f32 %v338, %v416
      %v418 = vpop.f32.mrf.mxu0
      %v419 = vadd.f32 %v342, %v418
      %420 = vmatmul.bf16.gmra.mxu0 %v374
      %v421 = vpop.f32.mrf.mxu0
      %v422 = vadd.f32 %v346, %v421
      %v423 = vpop.f32.mrf.mxu0
      %v424 = vadd.f32 %v350, %v423
      %425 = vdwg.mxu0
      %426 = vmatpush.bf16.msra.mxu0 0
      %427 = vmatpush.bf16.msra.mxu0 0
      %428 = vmatpush.bf16.msra.mxu0 0
      %429 = vmatpush.bf16.msra.mxu0 0
      %430 = vmatpush.bf16.msra.mxu0 0
      %431 = vmatpush.bf16.msra.mxu0 0
      %432 = vmatpush.bf16.msra.mxu0 0
      %433 = vmatpush.bf16.msra.mxu0 %v384
      %434 = vmatmul.bf16.gmra.mxu0 %v371
      %v435 = vpop.f32.mrf.mxu0
      %v436 = vadd.f32 %v339, %v435
      %v437 = vpop.f32.mrf.mxu0
      %v438 = vadd.f32 %v343, %v437
      %439 = vmatmul.bf16.gmra.mxu0 %v374
      %v440 = vpop.f32.mrf.mxu0
      %v441 = vadd.f32 %v347, %v440
      %v442 = vpop.f32.mrf.mxu0
      %v443 = vadd.f32 %v351, %v442
      %444 = vdwg.mxu0
      %445 = vmatpush.bf16.msra.mxu0 0
      %446 = vmatpush.bf16.msra.mxu0 0
      %447 = vmatpush.bf16.msra.mxu0 0
      %448 = vmatpush.bf16.msra.mxu0 0
      %449 = vmatpush.bf16.msra.mxu0 0
      %450 = vmatpush.bf16.msra.mxu0 0
      %451 = vmatpush.bf16.msra.mxu0 0
      %452 = vmatpush.bf16.msra.mxu0 %v386
      %453 = vmatmul.bf16.gmra.mxu0 %v371
      %v454 = vpop.f32.mrf.mxu0
      %v455 = vadd.f32 %v340, %v454
      %v456 = vpop.f32.mrf.mxu0
      %v457 = vadd.f32 %v344, %v456
      %458 = vmatmul.bf16.gmra.mxu0 %v374
      %v459 = vpop.f32.mrf.mxu0
      %v460 = vadd.f32 %v348, %v459
      %v461 = vpop.f32.mrf.mxu0
      %v462 = vadd.f32 %v352, %v461
      %463 = vdwg.mxu0
      %v464 = vsub.f32 0.0, %v398
      %v465 = vsub.f32 0.0, %v417
      %v466 = vsub.f32 0.0, %v436
      %v467 = vsub.f32 0.0, %v455
      %v468 = vsub.f32 0.0, %v400
      %v469 = vsub.f32 0.0, %v419
      %v470 = vsub.f32 0.0, %v438
      %v471 = vsub.f32 0.0, %v457
      %v472 = vsub.f32 0.0, %v403
      %v473 = vsub.f32 0.0, %v422
      %v474 = vsub.f32 0.0, %v441
      %v475 = vsub.f32 0.0, %v460
      %v476 = vsub.f32 0.0, %v405
      %v477 = vsub.f32 0.0, %v424
      %v478 = vsub.f32 0.0, %v443
      %v479 = vsub.f32 0.0, %v462
      %v480 = vmul.f32 %v464, 1.442695
      %v481 = vpow.pop %v480
      %v482 = vmul.f32 %v465, 1.442695
      %v483 = vpow.pop %v482
      %v484 = vmul.f32 %v466, 1.442695
      %v485 = vpow.pop %v484
      %v486 = vmul.f32 %v467, 1.442695
      %v487 = vpow.pop %v486
      %v488 = vmul.f32 %v468, 1.442695
      %v489 = vpow.pop %v488
      %v490 = vmul.f32 %v469, 1.442695
      %v491 = vpow.pop %v490
      %v492 = vmul.f32 %v470, 1.442695
      %v493 = vpow.pop %v492
      %v494 = vmul.f32 %v471, 1.442695
      %v495 = vpow.pop %v494
      %v496 = vmul.f32 %v472, 1.442695
      %v497 = vpow.pop %v496
      %v498 = vmul.f32 %v473, 1.442695
      %v499 = vpow.pop %v498
      %v500 = vmul.f32 %v474, 1.442695
      %v501 = vpow.pop %v500
      %v502 = vmul.f32 %v475, 1.442695
      %v503 = vpow.pop %v502
      %v504 = vmul.f32 %v476, 1.442695
      %v505 = vpow.pop %v504
      %v506 = vmul.f32 %v477, 1.442695
      %v507 = vpow.pop %v506
      %v508 = vmul.f32 %v478, 1.442695
      %v509 = vpow.pop %v508
      %v510 = vmul.f32 %v479, 1.442695
      %v511 = vpow.pop %v510
      %v512 = vadd.f32 %v481, 1.0
      %v513 = vadd.f32 %v483, 1.0
      %v514 = vadd.f32 %v485, 1.0
      %v515 = vadd.f32 %v487, 1.0
      %v516 = vadd.f32 %v489, 1.0
      %v517 = vadd.f32 %v491, 1.0
      %v518 = vadd.f32 %v493, 1.0
      %v519 = vadd.f32 %v495, 1.0
      %v520 = vadd.f32 %v497, 1.0
      %v521 = vadd.f32 %v499, 1.0
      %v522 = vadd.f32 %v501, 1.0
      %v523 = vadd.f32 %v503, 1.0
      %v524 = vadd.f32 %v505, 1.0
      %v525 = vadd.f32 %v507, 1.0
      %v526 = vadd.f32 %v509, 1.0
      %v527 = vadd.f32 %v511, 1.0
      %v528 = vrcp.pop %v512
      %v529 = vrcp.pop %v513
      %v530 = vrcp.pop %v514
      %v531 = vrcp.pop %v515
      %v532 = vrcp.pop %v516
      %v533 = vrcp.pop %v517
      %v534 = vrcp.pop %v518
      %v535 = vrcp.pop %v519
      %v536 = vrcp.pop %v520
      %v537 = vrcp.pop %v521
      %v538 = vrcp.pop %v522
      %v539 = vrcp.pop %v523
      %v540 = vrcp.pop %v524
      %v541 = vrcp.pop %v525
      %v542 = vrcp.pop %v526
      %v543 = vrcp.pop %v527
      %v544 = vld [vmem:[%s310] sm:$0xff]
      %v545 = vld [vmem:[%s310 + $0x8] sm:$0xff]
      %v546 = vld [vmem:[%s310 + $0x10] sm:$0xff]
      %v547 = vld [vmem:[%s310 + $0x18] sm:$0xff]
      %v548 = vld [vmem:[%s310 + $0x20] sm:$0xff]
      %v549 = vld [vmem:[%s310 + $0x28] sm:$0xff]
      %v550 = vld [vmem:[%s310 + $0x30] sm:$0xff]
      %v551 = vld [vmem:[%s310 + $0x38] sm:$0xff]
      %v552 = vld [vmem:[%s310 + $0x40] sm:$0xff]
      %v553 = vld [vmem:[%s310 + $0x48] sm:$0xff]
      %v554 = vld [vmem:[%s310 + $0x50] sm:$0xff]
      %v555 = vld [vmem:[%s310 + $0x58] sm:$0xff]
      %v556 = vld [vmem:[%s310 + $0x60] sm:$0xff]
      %v557 = vld [vmem:[%s310 + $0x68] sm:$0xff]
      %v558 = vld [vmem:[%s310 + $0x70] sm:$0xff]
      %v559 = vld [vmem:[%s310 + $0x78] sm:$0xff]
      %v560 = vmul.f32 %v544, %v528
      %v561 = vmul.f32 %v545, %v529
      %v562 = vmul.f32 %v546, %v530
      %v563 = vmul.f32 %v547, %v531
      %v564 = vmul.f32 %v548, %v532
      %v565 = vmul.f32 %v549, %v533
      %v566 = vmul.f32 %v550, %v534
      %v567 = vmul.f32 %v551, %v535
      %v568 = vmul.f32 %v552, %v536
      %v569 = vmul.f32 %v553, %v537
      %v570 = vmul.f32 %v554, %v538
      %v571 = vmul.f32 %v555, %v539
      %v572 = vmul.f32 %v556, %v540
      %v573 = vmul.f32 %v557, %v541
      %v574 = vmul.f32 %v558, %v542
      %v575 = vmul.f32 %v559, %v543
      %576 = vst [vmem:[%s321] sm:$0xff] %v560
      %577 = vst [vmem:[%s321 + $0x8] sm:$0xff] %v561
      %578 = vst [vmem:[%s321 + $0x10] sm:$0xff] %v562
      %579 = vst [vmem:[%s321 + $0x18] sm:$0xff] %v563
      %580 = vst [vmem:[%s321 + $0x20] sm:$0xff] %v564
      %581 = vst [vmem:[%s321 + $0x28] sm:$0xff] %v565
      %582 = vst [vmem:[%s321 + $0x30] sm:$0xff] %v566
      %583 = vst [vmem:[%s321 + $0x38] sm:$0xff] %v567
      %584 = vst [vmem:[%s321 + $0x40] sm:$0xff] %v568
      %585 = vst [vmem:[%s321 + $0x48] sm:$0xff] %v569
      %586 = vst [vmem:[%s321 + $0x50] sm:$0xff] %v570
      %587 = vst [vmem:[%s321 + $0x58] sm:$0xff] %v571
      %588 = vst [vmem:[%s321 + $0x60] sm:$0xff] %v572
      %589 = vst [vmem:[%s321 + $0x68] sm:$0xff] %v573
      %590 = vst [vmem:[%s321 + $0x70] sm:$0xff] %v574
      %591 = vst [vmem:[%s321 + $0x78] sm:$0xff] %v575
      %s592 = smul.u32 4, %s20
      %p593 = scmp.lt.s32.totalorder %s19, 1
      %s594 = scalar_select %p593, %s19, 1
      %p595 = scmp.lt.s32.totalorder %s592, 3
      %s596 = scalar_select %p595, %s592, 3
      %s597 = smul.addr %s596, 4
      %s598 = smul.addr %s594, 16
      %s599 = sadd.s32 %s597, %s598
      %s600 = smul.addr %s599, 8
      %s601 = scalar_lea.vmem %s4, %s600
      // Predicated region
      $region37: #{esa_forward.21} parent=35 // pred_check
        %p602 = pneg %p155
      $region38: #{esa_forward.21} parent=35 // pred_check_branch
        %604 = sbr.rel (%p602) target = $region40
      $region39: #{esa_forward.21} parent=35 // pred_region
        %s605 = smul.u32 4, %s20
      $region40: #{esa_forward.21} parent=35 // pred_fallthru
        _
    $region36: #{esa_forward.21} parent=5 // pred_fallthru
      _
    %p606 = scmp.le.s32.totalorder 2, %s10
    // Predicated region
    $region41: #{esa_forward.21} parent=5 // pred_check
      %p607 = pneg %p606
    $region42: #{esa_forward.21} parent=5 // pred_check_branch
      %609 = sbr.rel (%p607) target = $region44
    $region43: #{esa_forward.21} parent=5 // pred_region
      %s610 = ssub.s32 %s10, 2
      // Predicated region
      $region45: #{esa_forward.21} parent=43 // pred_check
        %p611 = pneg %p161
      $region46: #{esa_forward.21} parent=43 // pred_check_branch
        %613 = sbr.rel (%p611) target = $region48
      $region47: #{esa_forward.21} parent=43 // pred_region
        %s614 = smul.u32 4, %s22
        %p615 = scmp.lt.s32.totalorder %s21, 1
        %s616 = scalar_select %p615, %s21, 1
        %p617 = scmp.lt.s32.totalorder %s614, 3
        %s618 = scalar_select %p617, %s614, 3
        %s619 = smul.addr %s618, 4
        %s620 = smul.addr %s616, 16
        %s621 = sadd.s32 %s619, %s620
        %s622 = smul.addr %s621, 8
        %s623 = scalar_lea.vmem %s4, %s622
      $region48: #{esa_forward.21} parent=43 // pred_fallthru
        _
    $region44: #{esa_forward.21} parent=5 // pred_fallthru
      _
  $region6: #{esa_forward.21} parent=0 // loop_footer
    %s14 = sadd.s32 1, %s10
  $region7: #{esa_forward.21} parent=0 // loop_footer_branch
    %9 = sbr.rel target = $region3
  $region8: #{esa_forward.21} parent=0 // loop_exit
    _

</llo_original>
